<compile_context>
chip_gen: v6e
topology: v6e:2x2x1
jax: 0.10.0
libtpu: 0.0.40
codegen_flags: <defaults>
</compile_context>

<pallas_src>
import math

import numpy as np
import jax
import jax.numpy as jnp
from jax import lax
from jax.experimental import pallas as pl
from jax.experimental.pallas import tpu as pltpu


WCOLS = 256   # bf16 weight-slab lane width
ACOLS = 384   # f32 aux-slab lane width (3 x 128 for the RevIN columns)


def _round_up(x, m):
    return ((x + m - 1) // m) * m


# ---------------------------------------------------------------------------
# Fused kernel factory
# ---------------------------------------------------------------------------

def make_fused_kernel(meta):
    eps = meta["eps"]
    L = meta["seq_len"]
    D = meta["enc_in"]
    P = meta["patch_len"]
    S = meta["stride"]
    pn1 = meta["pn1"]
    pred_len = meta["pred_len"]
    B_BLK = meta["b_blk"]
    blocks = meta["blocks"]
    kan = meta["kan"]
    rev_off = meta["rev_off"]
    knots = meta["knots"]          # python floats (uniform grid)
    order = meta["spline_order"]
    gh = meta["grid_h"]
    KROWS = meta["kan_k_rows"]
    NB = B_BLK * D

    def kan_features(x):
        # x: (NB, 128) f32.  Uniform-grid Cox-de Boor: knots and reciprocal
        # denominators are compile-time constants -> pure VALU mul/add.
        ge = [(x >= k).astype(jnp.float32) for k in knots]      # one cmp / knot
        bases = [ge[j] - ge[j + 1] for j in range(len(knots) - 1)]
        for k in range(1, order + 1):
            inv = 1.0 / (k * gh)
            bases = [(x - knots[j]) * inv * bases[j]
                     + (knots[j + k + 1] - x) * inv * bases[j + 1]
                     for j in range(len(bases) - 1)]
        # Every group is already 128 lanes wide -> concat offsets are vreg
        # boundaries (pure placement, no XLU rotates).
        feat = jnp.concatenate([x * jax.nn.sigmoid(x)] + bases, axis=1)
        return feat.astype(jnp.bfloat16)

    def kernel(x_ref, w_ref, aux_ref, o_ref):
        # ---- fold the (B_BLK, L, D) -> (NB, L) transpose into the kernel ----
        x = jnp.concatenate([x_ref[b].T for b in range(B_BLK)], axis=0)

        # ---- RevIN 'norm' (lane-axis reduction over the sequence) ----
        w_col = aux_ref[rev_off:rev_off + NB, 0:1]
        b_col = aux_ref[rev_off:rev_off + NB, 128:129]
        iw_col = aux_ref[rev_off:rev_off + NB, 256:257]
        mean = jnp.mean(x, axis=1, keepdims=True)
        var = jnp.mean((x - mean) ** 2, axis=1, keepdims=True)  # unbiased=False
        inv_std = lax.rsqrt(var + eps)
        std = (var + eps) * inv_std                              # == sqrt(var+eps)
        z = (x - mean) * (inv_std * w_col) + b_col               # (NB, L)

        # ---- Patching (identity when stride == patch_len tiles the sequence) ----
        if S == P and pn1 * P == L:
            h = z
        else:
            h = jnp.concatenate([z[:, i * S:i * S + P] for i in range(pn1)],
                                axis=1)
        if h.shape[1] < 128:       # pad to one full 128-lane group
            h = jnp.concatenate(
                [h, jnp.zeros((NB, 128 - h.shape[1]), h.dtype)], axis=1)

        # ---- TCN residual blocks: conv1 & 1x1 conv3 fused into one matmul ----
        for bm in blocks:
            wcols = 256 if bm["has_conv3"] else 128
            w13 = w_ref[bm["w13_off"]:bm["w13_off"] + 128, 0:wcols]
            b13 = aux_ref[bm["b13_off"]:bm["b13_off"] + NB, 0:wcols]
            y13 = jnp.dot(h.astype(jnp.bfloat16), w13,
                          preferred_element_type=jnp.float32) + b13
            a = jnp.maximum(y13[:, 0:128], 0.0)      # ReLU (dropout == identity)
            w2 = w_ref[bm["w2_off"]:bm["w2_off"] + 128, 0:128]
            b2 = aux_ref[bm["b2_off"]:bm["b2_off"] + NB, 0:128]
            y2 = jnp.dot(a.astype(jnp.bfloat16), w2,
                         preferred_element_type=jnp.float32) + b2
            if bm["relu2"]:
                y2 = jnp.maximum(y2, 0.0)
            res = y13[:, 128:256] if bm["has_conv3"] else h
            h = y2 + res                             # (NB, 128)

        # ---- KAN head: one matmul per KANLinear layer ----
        for km in kan:
            wk = w_ref[km["w_off"]:km["w_off"] + KROWS, 0:128]
            h = jnp.dot(kan_features(h), wk, preferred_element_type=jnp.float32)

        # ---- RevIN 'denorm' + output transpose folded into the kernel ----
        y = (h[:, 0:pred_len] - b_col) * iw_col * std + mean     # (NB, pred)
        for b in range(B_BLK):
            o_ref[b, :, :] = y[b * D:(b + 1) * D, :].T           # (pred, D)

    return kernel


# ---------------------------------------------------------------------------
# Host-side parameter preparation (packed, tile-aligned slabs)
# ---------------------------------------------------------------------------

class Configs:
    def __init__(self):
        self.seq_len = 32
        self.pred_len = 8
        self.enc_in = 4
        self.batch_size = 2
        self.patch_len = 4
        self.stride = 4
        self.padding_patch = "end"


def _conv1d_init(key, cout, cin, k):
    bound = 1.0 / math.sqrt(cin * k)
    kw, kb = jax.random.split(key)
    w = jax.random.uniform(kw, (cout, cin, k), jnp.float32, -bound, bound)
    b = jax.random.uniform(kb, (cout,), jnp.float32, -bound, bound)
    return np.asarray(w), np.asarray(b)


def _unroll_causal_conv(w, dilation, Lp):
    """Torch Conv1d weight (Cout, Cin, K) -> dense matrix (Cin*Lp, Cout*Lp)
    acting on lane-packed activations h[n, c*Lp + t]; causal left zero-padding
    of dilation*(K-1) is folded in (source times < 0 simply stay zero)."""
    Cout, Cin, K = w.shape
    Wb = np.zeros((Cin * Lp, Cout * Lp), np.float32)
    for k in range(K):
        shift = (K - 1 - k) * dilation
        for t_out in range(Lp):
            t_in = t_out - shift
            if t_in < 0:
                continue
            for f in range(Cout):
                for c in range(Cin):
                    Wb[c * Lp + t_in, f * Lp + t_out] = w[f, c, k]
    return Wb


def build_model(configs, key):
    D = configs.enc_in
    B = configs.batch_size
    L = configs.seq_len
    pred_len = configs.pred_len
    P, S = configs.patch_len, configs.stride
    eps = 1e-5

    patch_num = int((L - P) // S) + 1
    if configs.padding_patch == "end":
        patch_num += 1
    pn1 = patch_num - 1

    n_filters, kernel_size, dilation_base = 3, 3, 2
    num_layers = math.ceil(math.log(
        (patch_num - 1) * (dilation_base - 1) / (kernel_size - 1) / 2 + 1,
        dilation_base))

    # 128-lane-group packing scheme requires per-stage widths <= 128.
    assert pn1 * P <= 128 and n_filters * P <= 128
    assert pred_len <= 128 and 10 <= 128

    B_BLK = B if B <= 8 else 8
    assert B % B_BLK == 0, "batch must be divisible by the per-grid-step block"
    NB = B_BLK * D
    NB_pad = _round_up(NB, 8)

    # ---- KAN spec (efficient-kan defaults) ----
    grid_size, spline_order = 5, 3
    n_bases = grid_size + spline_order
    grid_h = 2.0 / grid_size
    knots = tuple(float((g - spline_order) * grid_h - 1.0)
                  for g in range(grid_size + 2 * spline_order + 1))
    kan_dims = [P * pn1, 10, pred_len]
    kan_k_rows = (n_bases + 1) * 128

    # ---- packed slabs ----
    w_parts, a_parts = [], []
    w_off_ctr, a_off_ctr = [0], [0]

    def add_w(block):                       # block: (rows, WCOLS), rows % 16 == 0
        w_parts.append(block)
        off = w_off_ctr[0]
        w_off_ctr[0] += block.shape[0]
        return off

    def add_a(block):                       # block: (rows, ACOLS), rows % 8 == 0
        a_parts.append(block)
        off = a_off_ctr[0]
        a_off_ctr[0] += block.shape[0]
        return off

    # TCN residual blocks -> fused [conv1|conv3] matrix + conv2 matrix + biases.
    block_meta = []
    for i in range(num_layers):
        key, k1, k2, k3 = jax.random.split(key, 4)
        input_dim = pn1 if i == 0 else n_filters
        output_dim = pn1 if i == num_layers - 1 else n_filters
        dilation = dilation_base ** i
        has_conv3 = input_dim != output_dim

        w1, b1 = _conv1d_init(k1, n_filters, input_dim, kernel_size)
        w2, b2 = _conv1d_init(k2, output_dim, n_filters, kernel_size)
        w1u = _unroll_causal_conv(w1, dilation, P)   # (input_dim*P, n_filters*P)
        w2u = _unroll_causal_conv(w2, dilation, P)   # (n_filters*P, output_dim*P)

        w13 = np.zeros((128, WCOLS), np.float32)
        w13[:w1u.shape[0], :w1u.shape[1]] = w1u
        b13 = np.zeros((NB_pad, ACOLS), np.float32)
        b13[:NB, :n_filters * P] = np.repeat(b1, P)[None, :]

        w2b = np.zeros((128, WCOLS), np.float32)
        w2b[:w2u.shape[0], :w2u.shape[1]] = w2u
        b2m = np.zeros((NB_pad, ACOLS), np.float32)
        b2m[:NB, :output_dim * P] = np.repeat(b2, P)[None, :]

        if has_conv3:
            w3, b3 = _conv1d_init(k3, output_dim, input_dim, 1)
            w3u = _unroll_causal_conv(w3, 1, P)      # (input_dim*P, output_dim*P)
            w13[:w3u.shape[0], 128:128 + w3u.shape[1]] = w3u
            b13[:NB, 128:128 + output_dim * P] = np.repeat(b3, P)[None, :]

        block_meta.append(dict(
            w13_off=add_w(w13), w2_off=add_w(w2b),
            b13_off=add_a(b13), b2_off=add_a(b2m),
            has_conv3=has_conv3, relu2=(i < num_layers - 1)))

    # KAN head [P*pn1, 10, pred_len]: combined (SiLU + spline) weight per layer,
    # with zero rows for the padded lanes and zero cols beyond out_features.
    kan_meta = []
    for in_f, out_f in zip(kan_dims[:-1], kan_dims[1:]):
        key, kb, ks, kc = jax.random.split(key, 4)
        bound = 1.0 / math.sqrt(in_f)
        base_w = np.asarray(jax.random.uniform(
            kb, (out_f, in_f), jnp.float32, -bound, bound))
        spline_w = np.asarray(jax.random.uniform(
            ks, (out_f, in_f, n_bases), jnp.float32, -0.1, 0.1))
        scaler = np.asarray(jax.random.uniform(
            kc, (out_f, in_f), jnp.float32, -bound, bound))
        scaled = spline_w * scaler[:, :, None]                    # (out, in, nb)
        wk = np.zeros((kan_k_rows, WCOLS), np.float32)
        wk[0:in_f, 0:out_f] = base_w.T                            # group 0 = SiLU
        for j in range(n_bases):
            r = (j + 1) * 128
            wk[r:r + in_f, 0:out_f] = scaled[:, :, j].T           # group j+1 = B_j
        kan_meta.append(dict(w_off=add_w(wk)))

    # RevIN affine (torch init: weight=1, bias=0), packed at lane offsets 0/128/256.
    rev_w = np.ones((D,), np.float32)
    rev_b = np.zeros((D,), np.float32)
    rev = np.zeros((NB_pad, ACOLS), np.float32)
    rev[:NB, 0] = np.tile(rev_w, B_BLK)
    rev[:NB, 128] = np.tile(rev_b, B_BLK)
    rev[:NB, 256] = np.tile(1.0 / (rev_w + eps * eps), B_BLK)
    rev_off = add_a(rev)

    w_slab = jnp.asarray(np.concatenate(w_parts, axis=0), dtype=jnp.bfloat16)
    aux_slab = jnp.asarray(np.concatenate(a_parts, axis=0))

    meta = dict(
        eps=eps, seq_len=L, enc_in=D, pred_len=pred_len,
        patch_len=P, stride=S, pn1=pn1, b_blk=B_BLK,
        knots=knots, spline_order=spline_order, grid_h=grid_h,
        blocks=block_meta, kan=kan_meta, rev_off=rev_off,
        kan_k_rows=kan_k_rows,
    )
    return meta, w_slab, aux_slab


# ---------------------------------------------------------------------------
# Forward (single fused pallas_call, 3 inputs, batch-parallel grid)
# ---------------------------------------------------------------------------

def build_forward(configs, key):
    meta, w_slab, aux_slab = build_model(configs, key)
    kern = make_fused_kernel(meta)

    B = configs.batch_size
    L = configs.seq_len
    D = configs.enc_in
    pred_len = configs.pred_len
    B_BLK = meta["b_blk"]
    WR, WC = w_slab.shape
    AR, AC = aux_slab.shape

    call = pl.pallas_call(
        kern,
        out_shape=jax.ShapeDtypeStruct((B, pred_len, D), jnp.float32),
        grid=(B // B_BLK,),
        in_specs=[
            pl.BlockSpec((B_BLK, L, D), lambda i: (i, 0, 0)),
            pl.BlockSpec((WR, WC), lambda i: (0, 0)),   # weight slab, resident
            pl.BlockSpec((AR, AC), lambda i: (0, 0)),   # bias/RevIN slab, resident
        ],
        out_specs=pl.BlockSpec((B_BLK, pred_len, D), lambda i: (i, 0, 0)),
        compiler_params=pltpu.CompilerParams(
            dimension_semantics=("parallel",)),
    )

    @jax.jit
    def _forward(x, w, a):
        return call(x, w, a)

    def model_forward(x, x_mark, y_true, y_mark):
        # x_mark / y_true / y_mark are unused by the reference forward.
        del x_mark, y_true, y_mark
        return _forward(x, w_slab, aux_slab)

    return model_forward


# ---------------------------------------------------------------------------
# Main
# ---------------------------------------------------------------------------

if __name__ == "__main__":
    configs = Configs()
    key = jax.random.PRNGKey(0)
    key, kp, kx = jax.random.split(key, 3)

    model_forward = build_forward(configs, kp)

    B, L, D = configs.batch_size, configs.seq_len, configs.enc_in
    x = jax.random.normal(kx, (B, L, D), jnp.float32)
    x_mark = jnp.zeros((B, L, 4), jnp.float32)
    y_true = jnp.zeros((B, configs.pred_len, D), jnp.float32)
    y_mark = jnp.zeros((B, configs.pred_len, 4), jnp.float32)

    out = model_forward(x, x_mark, y_true, y_mark)
    out = jax.block_until_ready(out)
    assert out.shape == (B, configs.pred_len, D), out.shape
    assert bool(jnp.all(jnp.isfinite(out)))
    print("KERNEL_OK")
</pallas_src>

<mosaic_0001>
module attributes {stable_mosaic.version = 11 : i64} {
  func.func @kernel(%arg0: i32, %arg1: memref<2x32x4xf32, #tpu.memory_space<vmem>>, %arg2: memref<2816x256xbf16, #tpu.memory_space<vmem>>, %arg3: memref<40x384xf32, #tpu.memory_space<vmem>>, %arg4: memref<2x8x4xf32, #tpu.memory_space<vmem>>) attributes {dimension_semantics = [#tpu.dimension_semantics<parallel>], iteration_bounds = array<i64: 1>, scalar_prefetch = 0 : i64, scratch_operands = 0 : i64, tpu.core_type = #tpu.core_type<tc>, window_params = [{transform_indices = @transform_0, window_bounds = array<i64: 2, 32, 4>}, {pipeline_mode = #tpu.pipeline_mode<synchronous>, transform_indices = @transform_1, window_bounds = array<i64: 2816, 256>}, {pipeline_mode = #tpu.pipeline_mode<synchronous>, transform_indices = @transform_2, window_bounds = array<i64: 40, 384>}, {transform_indices = @transform_3, window_bounds = array<i64: 2, 8, 4>}]} {
    %c0 = arith.constant 0 : index
    %c0_0 = arith.constant 0 : index
    %c0_1 = arith.constant 0 : index
    %0 = vector.load %arg1[%c0, %c0_0, %c0_1] : memref<2x32x4xf32, #tpu.memory_space<vmem>>, vector<1x32x4xf32>
    %1 = vector.shape_cast %0 : vector<1x32x4xf32> to vector<32x4xf32>
    %2 = tpu.transpose %1, [1, 0] : vector<32x4xf32> -> vector<4x32xf32>
    %c1 = arith.constant 1 : index
    %c0_2 = arith.constant 0 : index
    %c0_3 = arith.constant 0 : index
    %3 = vector.load %arg1[%c1, %c0_2, %c0_3] : memref<2x32x4xf32, #tpu.memory_space<vmem>>, vector<1x32x4xf32>
    %4 = vector.shape_cast %3 : vector<1x32x4xf32> to vector<32x4xf32>
    %5 = tpu.transpose %4, [1, 0] : vector<32x4xf32> -> vector<4x32xf32>
    %6 = tpu.concatenate %2, %5 in 0 : vector<4x32xf32>, vector<4x32xf32> -> vector<8x32xf32>
    %c32 = arith.constant 32 : index
    %c0_4 = arith.constant 0 : index
    %7 = vector.load %arg3[%c32, %c0_4] : memref<40x384xf32, #tpu.memory_space<vmem>>, vector<8x1xf32>
    %c32_5 = arith.constant 32 : index
    %c128 = arith.constant 128 : index
    %8 = vector.load %arg3[%c32_5, %c128] : memref<40x384xf32, #tpu.memory_space<vmem>>, vector<8x1xf32>
    %c32_6 = arith.constant 32 : index
    %c256 = arith.constant 256 : index
    %9 = vector.load %arg3[%c32_6, %c256] : memref<40x384xf32, #tpu.memory_space<vmem>>, vector<8x1xf32>
    %cst = arith.constant dense<0.000000e+00> : vector<8xf32>
    %10 = vector.multi_reduction <add>, %6, %cst [1] : vector<8x32xf32> to vector<8xf32>
    %11 = vector.shape_cast %10 : vector<8xf32> to vector<8x1xf32>
    %cst_7 = arith.constant 3.200000e+01 : f32
    %12 = vector.broadcast %cst_7 : f32 to vector<8x1xf32>
    %13 = arith.divf %11, %12 : vector<8x1xf32>
    %14 = vector.broadcast %13 : vector<8x1xf32> to vector<8x32xf32>
    %15 = arith.subf %6, %14 : vector<8x32xf32>
    %16 = arith.mulf %15, %15 : vector<8x32xf32>
    %cst_8 = arith.constant dense<0.000000e+00> : vector<8xf32>
    %17 = vector.multi_reduction <add>, %16, %cst_8 [1] : vector<8x32xf32> to vector<8xf32>
    %18 = vector.shape_cast %17 : vector<8xf32> to vector<8x1xf32>
    %cst_9 = arith.constant 3.200000e+01 : f32
    %19 = vector.broadcast %cst_9 : f32 to vector<8x1xf32>
    %20 = arith.divf %18, %19 : vector<8x1xf32>
    %cst_10 = arith.constant 9.99999974E-6 : f32
    %21 = vector.broadcast %cst_10 : f32 to vector<8x1xf32>
    %22 = arith.addf %20, %21 : vector<8x1xf32>
    %23 = math.rsqrt %22 : vector<8x1xf32>
    %cst_11 = arith.constant 9.99999974E-6 : f32
    %24 = vector.broadcast %cst_11 : f32 to vector<8x1xf32>
    %25 = arith.addf %20, %24 : vector<8x1xf32>
    %26 = arith.mulf %25, %23 : vector<8x1xf32>
    %27 = vector.broadcast %13 : vector<8x1xf32> to vector<8x32xf32>
    %28 = arith.subf %6, %27 : vector<8x32xf32>
    %29 = arith.mulf %23, %7 : vector<8x1xf32>
    %30 = vector.broadcast %29 : vector<8x1xf32> to vector<8x32xf32>
    %31 = arith.mulf %28, %30 : vector<8x32xf32>
    %32 = vector.broadcast %8 : vector<8x1xf32> to vector<8x32xf32>
    %33 = arith.addf %31, %32 : vector<8x32xf32>
    %cst_12 = arith.constant 0.000000e+00 : f32
    %34 = vector.broadcast %cst_12 : f32 to vector<8x96xf32>
    %35 = tpu.concatenate %33, %34 in 1 : vector<8x32xf32>, vector<8x96xf32> -> vector<8x128xf32>
    %c0_13 = arith.constant 0 : index
    %c0_14 = arith.constant 0 : index
    %36 = vector.load %arg2[%c0_13, %c0_14] : memref<2816x256xbf16, #tpu.memory_space<vmem>>, vector<128x256xbf16>
    %c0_15 = arith.constant 0 : index
    %c0_16 = arith.constant 0 : index
    %37 = vector.load %arg3[%c0_15, %c0_16] : memref<40x384xf32, #tpu.memory_space<vmem>>, vector<8x256xf32>
    %38 = arith.truncf %35 : vector<8x128xf32> to vector<8x128xbf16>
    %cst_17 = arith.constant dense<0.000000e+00> : vector<8x256xf32>
    %39 = tpu.matmul %38, %36, %cst_17 {dimension_numbers = #tpu.dot_dimension_numbers<[1], [0], [0], [1], [0, 0, 1, 1], [], []>} : vector<8x128xbf16>, vector<128x256xbf16>, vector<8x256xf32> -> vector<8x256xf32>
    %40 = arith.addf %39, %37 : vector<8x256xf32>
    %41 = vector.extract_strided_slice %40 {offsets = [0, 0], sizes = [8, 128], strides = [1, 1]} : vector<8x256xf32> to vector<8x128xf32>
    %cst_18 = arith.constant 0.000000e+00 : f32
    %42 = vector.broadcast %cst_18 : f32 to vector<8x128xf32>
    %43 = arith.maximumf %41, %42 : vector<8x128xf32>
    %c128_19 = arith.constant 128 : index
    %c0_20 = arith.constant 0 : index
    %44 = vector.load %arg2[%c128_19, %c0_20] : memref<2816x256xbf16, #tpu.memory_space<vmem>>, vector<128x128xbf16>
    %c8 = arith.constant 8 : index
    %c0_21 = arith.constant 0 : index
    %45 = vector.load %arg3[%c8, %c0_21] : memref<40x384xf32, #tpu.memory_space<vmem>>, vector<8x128xf32>
    %46 = arith.truncf %43 : vector<8x128xf32> to vector<8x128xbf16>
    %cst_22 = arith.constant dense<0.000000e+00> : vector<8x128xf32>
    %47 = tpu.matmul %46, %44, %cst_22 {dimension_numbers = #tpu.dot_dimension_numbers<[1], [0], [0], [1], [0, 0, 1, 1], [], []>} : vector<8x128xbf16>, vector<128x128xbf16>, vector<8x128xf32> -> vector<8x128xf32>
    %48 = arith.addf %47, %45 : vector<8x128xf32>
    %cst_23 = arith.constant 0.000000e+00 : f32
    %49 = vector.broadcast %cst_23 : f32 to vector<8x128xf32>
    %50 = arith.maximumf %48, %49 : vector<8x128xf32>
    %51 = vector.extract_strided_slice %40 {offsets = [0, 128], sizes = [8, 128], strides = [1, 1]} : vector<8x256xf32> to vector<8x128xf32>
    %52 = arith.addf %50, %51 : vector<8x128xf32>
    %c256_24 = arith.constant 256 : index
    %c0_25 = arith.constant 0 : index
    %53 = vector.load %arg2[%c256_24, %c0_25] : memref<2816x256xbf16, #tpu.memory_space<vmem>>, vector<128x256xbf16>
    %c16 = arith.constant 16 : index
    %c0_26 = arith.constant 0 : index
    %54 = vector.load %arg3[%c16, %c0_26] : memref<40x384xf32, #tpu.memory_space<vmem>>, vector<8x256xf32>
    %55 = arith.truncf %52 : vector<8x128xf32> to vector<8x128xbf16>
    %cst_27 = arith.constant dense<0.000000e+00> : vector<8x256xf32>
    %56 = tpu.matmul %55, %53, %cst_27 {dimension_numbers = #tpu.dot_dimension_numbers<[1], [0], [0], [1], [0, 0, 1, 1], [], []>} : vector<8x128xbf16>, vector<128x256xbf16>, vector<8x256xf32> -> vector<8x256xf32>
    %57 = arith.addf %56, %54 : vector<8x256xf32>
    %58 = vector.extract_strided_slice %57 {offsets = [0, 0], sizes = [8, 128], strides = [1, 1]} : vector<8x256xf32> to vector<8x128xf32>
    %cst_28 = arith.constant 0.000000e+00 : f32
    %59 = vector.broadcast %cst_28 : f32 to vector<8x128xf32>
    %60 = arith.maximumf %58, %59 : vector<8x128xf32>
    %c384 = arith.constant 384 : index
    %c0_29 = arith.constant 0 : index
    %61 = vector.load %arg2[%c384, %c0_29] : memref<2816x256xbf16, #tpu.memory_space<vmem>>, vector<128x128xbf16>
    %c24 = arith.constant 24 : index
    %c0_30 = arith.constant 0 : index
    %62 = vector.load %arg3[%c24, %c0_30] : memref<40x384xf32, #tpu.memory_space<vmem>>, vector<8x128xf32>
    %63 = arith.truncf %60 : vector<8x128xf32> to vector<8x128xbf16>
    %cst_31 = arith.constant dense<0.000000e+00> : vector<8x128xf32>
    %64 = tpu.matmul %63, %61, %cst_31 {dimension_numbers = #tpu.dot_dimension_numbers<[1], [0], [0], [1], [0, 0, 1, 1], [], []>} : vector<8x128xbf16>, vector<128x128xbf16>, vector<8x128xf32> -> vector<8x128xf32>
    %65 = arith.addf %64, %62 : vector<8x128xf32>
    %66 = vector.extract_strided_slice %57 {offsets = [0, 128], sizes = [8, 128], strides = [1, 1]} : vector<8x256xf32> to vector<8x128xf32>
    %67 = arith.addf %65, %66 : vector<8x128xf32>
    %c512 = arith.constant 512 : index
    %c0_32 = arith.constant 0 : index
    %68 = vector.load %arg2[%c512, %c0_32] : memref<2816x256xbf16, #tpu.memory_space<vmem>>, vector<1152x128xbf16>
    %cst_33 = arith.constant -2.200000e+00 : f32
    %69 = vector.broadcast %cst_33 : f32 to vector<8x128xf32>
    %70 = arith.cmpf oge, %67, %69 : vector<8x128xf32>
    %71 = arith.extui %70 : vector<8x128xi1> to vector<8x128xi32>
    %72 = arith.sitofp %71 : vector<8x128xi32> to vector<8x128xf32>
    %cst_34 = arith.constant -1.800000e+00 : f32
    %73 = vector.broadcast %cst_34 : f32 to vector<8x128xf32>
    %74 = arith.cmpf oge, %67, %73 : vector<8x128xf32>
    %75 = arith.extui %74 : vector<8x128xi1> to vector<8x128xi32>
    %76 = arith.sitofp %75 : vector<8x128xi32> to vector<8x128xf32>
    %cst_35 = arith.constant -1.400000e+00 : f32
    %77 = vector.broadcast %cst_35 : f32 to vector<8x128xf32>
    %78 = arith.cmpf oge, %67, %77 : vector<8x128xf32>
    %79 = arith.extui %78 : vector<8x128xi1> to vector<8x128xi32>
    %80 = arith.sitofp %79 : vector<8x128xi32> to vector<8x128xf32>
    %cst_36 = arith.constant -1.000000e+00 : f32
    %81 = vector.broadcast %cst_36 : f32 to vector<8x128xf32>
    %82 = arith.cmpf oge, %67, %81 : vector<8x128xf32>
    %83 = arith.extui %82 : vector<8x128xi1> to vector<8x128xi32>
    %84 = arith.sitofp %83 : vector<8x128xi32> to vector<8x128xf32>
    %cst_37 = arith.constant -6.000000e-01 : f32
    %85 = vector.broadcast %cst_37 : f32 to vector<8x128xf32>
    %86 = arith.cmpf oge, %67, %85 : vector<8x128xf32>
    %87 = arith.extui %86 : vector<8x128xi1> to vector<8x128xi32>
    %88 = arith.sitofp %87 : vector<8x128xi32> to vector<8x128xf32>
    %cst_38 = arith.constant -2.000000e-01 : f32
    %89 = vector.broadcast %cst_38 : f32 to vector<8x128xf32>
    %90 = arith.cmpf oge, %67, %89 : vector<8x128xf32>
    %91 = arith.extui %90 : vector<8x128xi1> to vector<8x128xi32>
    %92 = arith.sitofp %91 : vector<8x128xi32> to vector<8x128xf32>
    %cst_39 = arith.constant 2.000000e-01 : f32
    %93 = vector.broadcast %cst_39 : f32 to vector<8x128xf32>
    %94 = arith.cmpf oge, %67, %93 : vector<8x128xf32>
    %95 = arith.extui %94 : vector<8x128xi1> to vector<8x128xi32>
    %96 = arith.sitofp %95 : vector<8x128xi32> to vector<8x128xf32>
    %cst_40 = arith.constant 6.000000e-01 : f32
    %97 = vector.broadcast %cst_40 : f32 to vector<8x128xf32>
    %98 = arith.cmpf oge, %67, %97 : vector<8x128xf32>
    %99 = arith.extui %98 : vector<8x128xi1> to vector<8x128xi32>
    %100 = arith.sitofp %99 : vector<8x128xi32> to vector<8x128xf32>
    %cst_41 = arith.constant 1.000000e+00 : f32
    %101 = vector.broadcast %cst_41 : f32 to vector<8x128xf32>
    %102 = arith.cmpf oge, %67, %101 : vector<8x128xf32>
    %103 = arith.extui %102 : vector<8x128xi1> to vector<8x128xi32>
    %104 = arith.sitofp %103 : vector<8x128xi32> to vector<8x128xf32>
    %cst_42 = arith.constant 1.400000e+00 : f32
    %105 = vector.broadcast %cst_42 : f32 to vector<8x128xf32>
    %106 = arith.cmpf oge, %67, %105 : vector<8x128xf32>
    %107 = arith.extui %106 : vector<8x128xi1> to vector<8x128xi32>
    %108 = arith.sitofp %107 : vector<8x128xi32> to vector<8x128xf32>
    %cst_43 = arith.constant 1.800000e+00 : f32
    %109 = vector.broadcast %cst_43 : f32 to vector<8x128xf32>
    %110 = arith.cmpf oge, %67, %109 : vector<8x128xf32>
    %111 = arith.extui %110 : vector<8x128xi1> to vector<8x128xi32>
    %112 = arith.sitofp %111 : vector<8x128xi32> to vector<8x128xf32>
    %cst_44 = arith.constant 2.200000e+00 : f32
    %113 = vector.broadcast %cst_44 : f32 to vector<8x128xf32>
    %114 = arith.cmpf oge, %67, %113 : vector<8x128xf32>
    %115 = arith.extui %114 : vector<8x128xi1> to vector<8x128xi32>
    %116 = arith.sitofp %115 : vector<8x128xi32> to vector<8x128xf32>
    %117 = arith.subf %72, %76 : vector<8x128xf32>
    %118 = arith.subf %76, %80 : vector<8x128xf32>
    %119 = arith.subf %80, %84 : vector<8x128xf32>
    %120 = arith.subf %84, %88 : vector<8x128xf32>
    %121 = arith.subf %88, %92 : vector<8x128xf32>
    %122 = arith.subf %92, %96 : vector<8x128xf32>
    %123 = arith.subf %96, %100 : vector<8x128xf32>
    %124 = arith.subf %100, %104 : vector<8x128xf32>
    %125 = arith.subf %104, %108 : vector<8x128xf32>
    %126 = arith.subf %108, %112 : vector<8x128xf32>
    %127 = arith.subf %112, %116 : vector<8x128xf32>
    %cst_45 = arith.constant -2.200000e+00 : f32
    %128 = vector.broadcast %cst_45 : f32 to vector<8x128xf32>
    %129 = arith.subf %67, %128 : vector<8x128xf32>
    %cst_46 = arith.constant 2.500000e+00 : f32
    %130 = vector.broadcast %cst_46 : f32 to vector<8x128xf32>
    %131 = arith.mulf %129, %130 : vector<8x128xf32>
    %132 = arith.mulf %131, %117 : vector<8x128xf32>
    %cst_47 = arith.constant -1.400000e+00 : f32
    %133 = vector.broadcast %cst_47 : f32 to vector<8x128xf32>
    %134 = arith.subf %133, %67 : vector<8x128xf32>
    %cst_48 = arith.constant 2.500000e+00 : f32
    %135 = vector.broadcast %cst_48 : f32 to vector<8x128xf32>
    %136 = arith.mulf %134, %135 : vector<8x128xf32>
    %137 = arith.mulf %136, %118 : vector<8x128xf32>
    %138 = arith.addf %132, %137 : vector<8x128xf32>
    %cst_49 = arith.constant -1.800000e+00 : f32
    %139 = vector.broadcast %cst_49 : f32 to vector<8x128xf32>
    %140 = arith.subf %67, %139 : vector<8x128xf32>
    %cst_50 = arith.constant 2.500000e+00 : f32
    %141 = vector.broadcast %cst_50 : f32 to vector<8x128xf32>
    %142 = arith.mulf %140, %141 : vector<8x128xf32>
    %143 = arith.mulf %142, %118 : vector<8x128xf32>
    %cst_51 = arith.constant -1.000000e+00 : f32
    %144 = vector.broadcast %cst_51 : f32 to vector<8x128xf32>
    %145 = arith.subf %144, %67 : vector<8x128xf32>
    %cst_52 = arith.constant 2.500000e+00 : f32
    %146 = vector.broadcast %cst_52 : f32 to vector<8x128xf32>
    %147 = arith.mulf %145, %146 : vector<8x128xf32>
    %148 = arith.mulf %147, %119 : vector<8x128xf32>
    %149 = arith.addf %143, %148 : vector<8x128xf32>
    %cst_53 = arith.constant -1.400000e+00 : f32
    %150 = vector.broadcast %cst_53 : f32 to vector<8x128xf32>
    %151 = arith.subf %67, %150 : vector<8x128xf32>
    %cst_54 = arith.constant 2.500000e+00 : f32
    %152 = vector.broadcast %cst_54 : f32 to vector<8x128xf32>
    %153 = arith.mulf %151, %152 : vector<8x128xf32>
    %154 = arith.mulf %153, %119 : vector<8x128xf32>
    %cst_55 = arith.constant -6.000000e-01 : f32
    %155 = vector.broadcast %cst_55 : f32 to vector<8x128xf32>
    %156 = arith.subf %155, %67 : vector<8x128xf32>
    %cst_56 = arith.constant 2.500000e+00 : f32
    %157 = vector.broadcast %cst_56 : f32 to vector<8x128xf32>
    %158 = arith.mulf %156, %157 : vector<8x128xf32>
    %159 = arith.mulf %158, %120 : vector<8x128xf32>
    %160 = arith.addf %154, %159 : vector<8x128xf32>
    %cst_57 = arith.constant -1.000000e+00 : f32
    %161 = vector.broadcast %cst_57 : f32 to vector<8x128xf32>
    %162 = arith.subf %67, %161 : vector<8x128xf32>
    %cst_58 = arith.constant 2.500000e+00 : f32
    %163 = vector.broadcast %cst_58 : f32 to vector<8x128xf32>
    %164 = arith.mulf %162, %163 : vector<8x128xf32>
    %165 = arith.mulf %164, %120 : vector<8x128xf32>
    %cst_59 = arith.constant -2.000000e-01 : f32
    %166 = vector.broadcast %cst_59 : f32 to vector<8x128xf32>
    %167 = arith.subf %166, %67 : vector<8x128xf32>
    %cst_60 = arith.constant 2.500000e+00 : f32
    %168 = vector.broadcast %cst_60 : f32 to vector<8x128xf32>
    %169 = arith.mulf %167, %168 : vector<8x128xf32>
    %170 = arith.mulf %169, %121 : vector<8x128xf32>
    %171 = arith.addf %165, %170 : vector<8x128xf32>
    %cst_61 = arith.constant -6.000000e-01 : f32
    %172 = vector.broadcast %cst_61 : f32 to vector<8x128xf32>
    %173 = arith.subf %67, %172 : vector<8x128xf32>
    %cst_62 = arith.constant 2.500000e+00 : f32
    %174 = vector.broadcast %cst_62 : f32 to vector<8x128xf32>
    %175 = arith.mulf %173, %174 : vector<8x128xf32>
    %176 = arith.mulf %175, %121 : vector<8x128xf32>
    %cst_63 = arith.constant 2.000000e-01 : f32
    %177 = vector.broadcast %cst_63 : f32 to vector<8x128xf32>
    %178 = arith.subf %177, %67 : vector<8x128xf32>
    %cst_64 = arith.constant 2.500000e+00 : f32
    %179 = vector.broadcast %cst_64 : f32 to vector<8x128xf32>
    %180 = arith.mulf %178, %179 : vector<8x128xf32>
    %181 = arith.mulf %180, %122 : vector<8x128xf32>
    %182 = arith.addf %176, %181 : vector<8x128xf32>
    %cst_65 = arith.constant -2.000000e-01 : f32
    %183 = vector.broadcast %cst_65 : f32 to vector<8x128xf32>
    %184 = arith.subf %67, %183 : vector<8x128xf32>
    %cst_66 = arith.constant 2.500000e+00 : f32
    %185 = vector.broadcast %cst_66 : f32 to vector<8x128xf32>
    %186 = arith.mulf %184, %185 : vector<8x128xf32>
    %187 = arith.mulf %186, %122 : vector<8x128xf32>
    %cst_67 = arith.constant 6.000000e-01 : f32
    %188 = vector.broadcast %cst_67 : f32 to vector<8x128xf32>
    %189 = arith.subf %188, %67 : vector<8x128xf32>
    %cst_68 = arith.constant 2.500000e+00 : f32
    %190 = vector.broadcast %cst_68 : f32 to vector<8x128xf32>
    %191 = arith.mulf %189, %190 : vector<8x128xf32>
    %192 = arith.mulf %191, %123 : vector<8x128xf32>
    %193 = arith.addf %187, %192 : vector<8x128xf32>
    %cst_69 = arith.constant 2.000000e-01 : f32
    %194 = vector.broadcast %cst_69 : f32 to vector<8x128xf32>
    %195 = arith.subf %67, %194 : vector<8x128xf32>
    %cst_70 = arith.constant 2.500000e+00 : f32
    %196 = vector.broadcast %cst_70 : f32 to vector<8x128xf32>
    %197 = arith.mulf %195, %196 : vector<8x128xf32>
    %198 = arith.mulf %197, %123 : vector<8x128xf32>
    %cst_71 = arith.constant 1.000000e+00 : f32
    %199 = vector.broadcast %cst_71 : f32 to vector<8x128xf32>
    %200 = arith.subf %199, %67 : vector<8x128xf32>
    %cst_72 = arith.constant 2.500000e+00 : f32
    %201 = vector.broadcast %cst_72 : f32 to vector<8x128xf32>
    %202 = arith.mulf %200, %201 : vector<8x128xf32>
    %203 = arith.mulf %202, %124 : vector<8x128xf32>
    %204 = arith.addf %198, %203 : vector<8x128xf32>
    %cst_73 = arith.constant 6.000000e-01 : f32
    %205 = vector.broadcast %cst_73 : f32 to vector<8x128xf32>
    %206 = arith.subf %67, %205 : vector<8x128xf32>
    %cst_74 = arith.constant 2.500000e+00 : f32
    %207 = vector.broadcast %cst_74 : f32 to vector<8x128xf32>
    %208 = arith.mulf %206, %207 : vector<8x128xf32>
    %209 = arith.mulf %208, %124 : vector<8x128xf32>
    %cst_75 = arith.constant 1.400000e+00 : f32
    %210 = vector.broadcast %cst_75 : f32 to vector<8x128xf32>
    %211 = arith.subf %210, %67 : vector<8x128xf32>
    %cst_76 = arith.constant 2.500000e+00 : f32
    %212 = vector.broadcast %cst_76 : f32 to vector<8x128xf32>
    %213 = arith.mulf %211, %212 : vector<8x128xf32>
    %214 = arith.mulf %213, %125 : vector<8x128xf32>
    %215 = arith.addf %209, %214 : vector<8x128xf32>
    %cst_77 = arith.constant 1.000000e+00 : f32
    %216 = vector.broadcast %cst_77 : f32 to vector<8x128xf32>
    %217 = arith.subf %67, %216 : vector<8x128xf32>
    %cst_78 = arith.constant 2.500000e+00 : f32
    %218 = vector.broadcast %cst_78 : f32 to vector<8x128xf32>
    %219 = arith.mulf %217, %218 : vector<8x128xf32>
    %220 = arith.mulf %219, %125 : vector<8x128xf32>
    %cst_79 = arith.constant 1.800000e+00 : f32
    %221 = vector.broadcast %cst_79 : f32 to vector<8x128xf32>
    %222 = arith.subf %221, %67 : vector<8x128xf32>
    %cst_80 = arith.constant 2.500000e+00 : f32
    %223 = vector.broadcast %cst_80 : f32 to vector<8x128xf32>
    %224 = arith.mulf %222, %223 : vector<8x128xf32>
    %225 = arith.mulf %224, %126 : vector<8x128xf32>
    %226 = arith.addf %220, %225 : vector<8x128xf32>
    %cst_81 = arith.constant 1.400000e+00 : f32
    %227 = vector.broadcast %cst_81 : f32 to vector<8x128xf32>
    %228 = arith.subf %67, %227 : vector<8x128xf32>
    %cst_82 = arith.constant 2.500000e+00 : f32
    %229 = vector.broadcast %cst_82 : f32 to vector<8x128xf32>
    %230 = arith.mulf %228, %229 : vector<8x128xf32>
    %231 = arith.mulf %230, %126 : vector<8x128xf32>
    %cst_83 = arith.constant 2.200000e+00 : f32
    %232 = vector.broadcast %cst_83 : f32 to vector<8x128xf32>
    %233 = arith.subf %232, %67 : vector<8x128xf32>
    %cst_84 = arith.constant 2.500000e+00 : f32
    %234 = vector.broadcast %cst_84 : f32 to vector<8x128xf32>
    %235 = arith.mulf %233, %234 : vector<8x128xf32>
    %236 = arith.mulf %235, %127 : vector<8x128xf32>
    %237 = arith.addf %231, %236 : vector<8x128xf32>
    %cst_85 = arith.constant -2.200000e+00 : f32
    %238 = vector.broadcast %cst_85 : f32 to vector<8x128xf32>
    %239 = arith.subf %67, %238 : vector<8x128xf32>
    %cst_86 = arith.constant 1.250000e+00 : f32
    %240 = vector.broadcast %cst_86 : f32 to vector<8x128xf32>
    %241 = arith.mulf %239, %240 : vector<8x128xf32>
    %242 = arith.mulf %241, %138 : vector<8x128xf32>
    %cst_87 = arith.constant -1.000000e+00 : f32
    %243 = vector.broadcast %cst_87 : f32 to vector<8x128xf32>
    %244 = arith.subf %243, %67 : vector<8x128xf32>
    %cst_88 = arith.constant 1.250000e+00 : f32
    %245 = vector.broadcast %cst_88 : f32 to vector<8x128xf32>
    %246 = arith.mulf %244, %245 : vector<8x128xf32>
    %247 = arith.mulf %246, %149 : vector<8x128xf32>
    %248 = arith.addf %242, %247 : vector<8x128xf32>
    %cst_89 = arith.constant -1.800000e+00 : f32
    %249 = vector.broadcast %cst_89 : f32 to vector<8x128xf32>
    %250 = arith.subf %67, %249 : vector<8x128xf32>
    %cst_90 = arith.constant 1.250000e+00 : f32
    %251 = vector.broadcast %cst_90 : f32 to vector<8x128xf32>
    %252 = arith.mulf %250, %251 : vector<8x128xf32>
    %253 = arith.mulf %252, %149 : vector<8x128xf32>
    %cst_91 = arith.constant -6.000000e-01 : f32
    %254 = vector.broadcast %cst_91 : f32 to vector<8x128xf32>
    %255 = arith.subf %254, %67 : vector<8x128xf32>
    %cst_92 = arith.constant 1.250000e+00 : f32
    %256 = vector.broadcast %cst_92 : f32 to vector<8x128xf32>
    %257 = arith.mulf %255, %256 : vector<8x128xf32>
    %258 = arith.mulf %257, %160 : vector<8x128xf32>
    %259 = arith.addf %253, %258 : vector<8x128xf32>
    %cst_93 = arith.constant -1.400000e+00 : f32
    %260 = vector.broadcast %cst_93 : f32 to vector<8x128xf32>
    %261 = arith.subf %67, %260 : vector<8x128xf32>
    %cst_94 = arith.constant 1.250000e+00 : f32
    %262 = vector.broadcast %cst_94 : f32 to vector<8x128xf32>
    %263 = arith.mulf %261, %262 : vector<8x128xf32>
    %264 = arith.mulf %263, %160 : vector<8x128xf32>
    %cst_95 = arith.constant -2.000000e-01 : f32
    %265 = vector.broadcast %cst_95 : f32 to vector<8x128xf32>
    %266 = arith.subf %265, %67 : vector<8x128xf32>
    %cst_96 = arith.constant 1.250000e+00 : f32
    %267 = vector.broadcast %cst_96 : f32 to vector<8x128xf32>
    %268 = arith.mulf %266, %267 : vector<8x128xf32>
    %269 = arith.mulf %268, %171 : vector<8x128xf32>
    %270 = arith.addf %264, %269 : vector<8x128xf32>
    %cst_97 = arith.constant -1.000000e+00 : f32
    %271 = vector.broadcast %cst_97 : f32 to vector<8x128xf32>
    %272 = arith.subf %67, %271 : vector<8x128xf32>
    %cst_98 = arith.constant 1.250000e+00 : f32
    %273 = vector.broadcast %cst_98 : f32 to vector<8x128xf32>
    %274 = arith.mulf %272, %273 : vector<8x128xf32>
    %275 = arith.mulf %274, %171 : vector<8x128xf32>
    %cst_99 = arith.constant 2.000000e-01 : f32
    %276 = vector.broadcast %cst_99 : f32 to vector<8x128xf32>
    %277 = arith.subf %276, %67 : vector<8x128xf32>
    %cst_100 = arith.constant 1.250000e+00 : f32
    %278 = vector.broadcast %cst_100 : f32 to vector<8x128xf32>
    %279 = arith.mulf %277, %278 : vector<8x128xf32>
    %280 = arith.mulf %279, %182 : vector<8x128xf32>
    %281 = arith.addf %275, %280 : vector<8x128xf32>
    %cst_101 = arith.constant -6.000000e-01 : f32
    %282 = vector.broadcast %cst_101 : f32 to vector<8x128xf32>
    %283 = arith.subf %67, %282 : vector<8x128xf32>
    %cst_102 = arith.constant 1.250000e+00 : f32
    %284 = vector.broadcast %cst_102 : f32 to vector<8x128xf32>
    %285 = arith.mulf %283, %284 : vector<8x128xf32>
    %286 = arith.mulf %285, %182 : vector<8x128xf32>
    %cst_103 = arith.constant 6.000000e-01 : f32
    %287 = vector.broadcast %cst_103 : f32 to vector<8x128xf32>
    %288 = arith.subf %287, %67 : vector<8x128xf32>
    %cst_104 = arith.constant 1.250000e+00 : f32
    %289 = vector.broadcast %cst_104 : f32 to vector<8x128xf32>
    %290 = arith.mulf %288, %289 : vector<8x128xf32>
    %291 = arith.mulf %290, %193 : vector<8x128xf32>
    %292 = arith.addf %286, %291 : vector<8x128xf32>
    %cst_105 = arith.constant -2.000000e-01 : f32
    %293 = vector.broadcast %cst_105 : f32 to vector<8x128xf32>
    %294 = arith.subf %67, %293 : vector<8x128xf32>
    %cst_106 = arith.constant 1.250000e+00 : f32
    %295 = vector.broadcast %cst_106 : f32 to vector<8x128xf32>
    %296 = arith.mulf %294, %295 : vector<8x128xf32>
    %297 = arith.mulf %296, %193 : vector<8x128xf32>
    %cst_107 = arith.constant 1.000000e+00 : f32
    %298 = vector.broadcast %cst_107 : f32 to vector<8x128xf32>
    %299 = arith.subf %298, %67 : vector<8x128xf32>
    %cst_108 = arith.constant 1.250000e+00 : f32
    %300 = vector.broadcast %cst_108 : f32 to vector<8x128xf32>
    %301 = arith.mulf %299, %300 : vector<8x128xf32>
    %302 = arith.mulf %301, %204 : vector<8x128xf32>
    %303 = arith.addf %297, %302 : vector<8x128xf32>
    %cst_109 = arith.constant 2.000000e-01 : f32
    %304 = vector.broadcast %cst_109 : f32 to vector<8x128xf32>
    %305 = arith.subf %67, %304 : vector<8x128xf32>
    %cst_110 = arith.constant 1.250000e+00 : f32
    %306 = vector.broadcast %cst_110 : f32 to vector<8x128xf32>
    %307 = arith.mulf %305, %306 : vector<8x128xf32>
    %308 = arith.mulf %307, %204 : vector<8x128xf32>
    %cst_111 = arith.constant 1.400000e+00 : f32
    %309 = vector.broadcast %cst_111 : f32 to vector<8x128xf32>
    %310 = arith.subf %309, %67 : vector<8x128xf32>
    %cst_112 = arith.constant 1.250000e+00 : f32
    %311 = vector.broadcast %cst_112 : f32 to vector<8x128xf32>
    %312 = arith.mulf %310, %311 : vector<8x128xf32>
    %313 = arith.mulf %312, %215 : vector<8x128xf32>
    %314 = arith.addf %308, %313 : vector<8x128xf32>
    %cst_113 = arith.constant 6.000000e-01 : f32
    %315 = vector.broadcast %cst_113 : f32 to vector<8x128xf32>
    %316 = arith.subf %67, %315 : vector<8x128xf32>
    %cst_114 = arith.constant 1.250000e+00 : f32
    %317 = vector.broadcast %cst_114 : f32 to vector<8x128xf32>
    %318 = arith.mulf %316, %317 : vector<8x128xf32>
    %319 = arith.mulf %318, %215 : vector<8x128xf32>
    %cst_115 = arith.constant 1.800000e+00 : f32
    %320 = vector.broadcast %cst_115 : f32 to vector<8x128xf32>
    %321 = arith.subf %320, %67 : vector<8x128xf32>
    %cst_116 = arith.constant 1.250000e+00 : f32
    %322 = vector.broadcast %cst_116 : f32 to vector<8x128xf32>
    %323 = arith.mulf %321, %322 : vector<8x128xf32>
    %324 = arith.mulf %323, %226 : vector<8x128xf32>
    %325 = arith.addf %319, %324 : vector<8x128xf32>
    %cst_117 = arith.constant 1.000000e+00 : f32
    %326 = vector.broadcast %cst_117 : f32 to vector<8x128xf32>
    %327 = arith.subf %67, %326 : vector<8x128xf32>
    %cst_118 = arith.constant 1.250000e+00 : f32
    %328 = vector.broadcast %cst_118 : f32 to vector<8x128xf32>
    %329 = arith.mulf %327, %328 : vector<8x128xf32>
    %330 = arith.mulf %329, %226 : vector<8x128xf32>
    %cst_119 = arith.constant 2.200000e+00 : f32
    %331 = vector.broadcast %cst_119 : f32 to vector<8x128xf32>
    %332 = arith.subf %331, %67 : vector<8x128xf32>
    %cst_120 = arith.constant 1.250000e+00 : f32
    %333 = vector.broadcast %cst_120 : f32 to vector<8x128xf32>
    %334 = arith.mulf %332, %333 : vector<8x128xf32>
    %335 = arith.mulf %334, %237 : vector<8x128xf32>
    %336 = arith.addf %330, %335 : vector<8x128xf32>
    %cst_121 = arith.constant -2.200000e+00 : f32
    %337 = vector.broadcast %cst_121 : f32 to vector<8x128xf32>
    %338 = arith.subf %67, %337 : vector<8x128xf32>
    %cst_122 = arith.constant 0.833333313 : f32
    %339 = vector.broadcast %cst_122 : f32 to vector<8x128xf32>
    %340 = arith.mulf %338, %339 : vector<8x128xf32>
    %341 = arith.mulf %340, %248 : vector<8x128xf32>
    %cst_123 = arith.constant -6.000000e-01 : f32
    %342 = vector.broadcast %cst_123 : f32 to vector<8x128xf32>
    %343 = arith.subf %342, %67 : vector<8x128xf32>
    %cst_124 = arith.constant 0.833333313 : f32
    %344 = vector.broadcast %cst_124 : f32 to vector<8x128xf32>
    %345 = arith.mulf %343, %344 : vector<8x128xf32>
    %346 = arith.mulf %345, %259 : vector<8x128xf32>
    %347 = arith.addf %341, %346 : vector<8x128xf32>
    %cst_125 = arith.constant -1.800000e+00 : f32
    %348 = vector.broadcast %cst_125 : f32 to vector<8x128xf32>
    %349 = arith.subf %67, %348 : vector<8x128xf32>
    %cst_126 = arith.constant 0.833333313 : f32
    %350 = vector.broadcast %cst_126 : f32 to vector<8x128xf32>
    %351 = arith.mulf %349, %350 : vector<8x128xf32>
    %352 = arith.mulf %351, %259 : vector<8x128xf32>
    %cst_127 = arith.constant -2.000000e-01 : f32
    %353 = vector.broadcast %cst_127 : f32 to vector<8x128xf32>
    %354 = arith.subf %353, %67 : vector<8x128xf32>
    %cst_128 = arith.constant 0.833333313 : f32
    %355 = vector.broadcast %cst_128 : f32 to vector<8x128xf32>
    %356 = arith.mulf %354, %355 : vector<8x128xf32>
    %357 = arith.mulf %356, %270 : vector<8x128xf32>
    %358 = arith.addf %352, %357 : vector<8x128xf32>
    %cst_129 = arith.constant -1.400000e+00 : f32
    %359 = vector.broadcast %cst_129 : f32 to vector<8x128xf32>
    %360 = arith.subf %67, %359 : vector<8x128xf32>
    %cst_130 = arith.constant 0.833333313 : f32
    %361 = vector.broadcast %cst_130 : f32 to vector<8x128xf32>
    %362 = arith.mulf %360, %361 : vector<8x128xf32>
    %363 = arith.mulf %362, %270 : vector<8x128xf32>
    %cst_131 = arith.constant 2.000000e-01 : f32
    %364 = vector.broadcast %cst_131 : f32 to vector<8x128xf32>
    %365 = arith.subf %364, %67 : vector<8x128xf32>
    %cst_132 = arith.constant 0.833333313 : f32
    %366 = vector.broadcast %cst_132 : f32 to vector<8x128xf32>
    %367 = arith.mulf %365, %366 : vector<8x128xf32>
    %368 = arith.mulf %367, %281 : vector<8x128xf32>
    %369 = arith.addf %363, %368 : vector<8x128xf32>
    %cst_133 = arith.constant -1.000000e+00 : f32
    %370 = vector.broadcast %cst_133 : f32 to vector<8x128xf32>
    %371 = arith.subf %67, %370 : vector<8x128xf32>
    %cst_134 = arith.constant 0.833333313 : f32
    %372 = vector.broadcast %cst_134 : f32 to vector<8x128xf32>
    %373 = arith.mulf %371, %372 : vector<8x128xf32>
    %374 = arith.mulf %373, %281 : vector<8x128xf32>
    %cst_135 = arith.constant 6.000000e-01 : f32
    %375 = vector.broadcast %cst_135 : f32 to vector<8x128xf32>
    %376 = arith.subf %375, %67 : vector<8x128xf32>
    %cst_136 = arith.constant 0.833333313 : f32
    %377 = vector.broadcast %cst_136 : f32 to vector<8x128xf32>
    %378 = arith.mulf %376, %377 : vector<8x128xf32>
    %379 = arith.mulf %378, %292 : vector<8x128xf32>
    %380 = arith.addf %374, %379 : vector<8x128xf32>
    %cst_137 = arith.constant -6.000000e-01 : f32
    %381 = vector.broadcast %cst_137 : f32 to vector<8x128xf32>
    %382 = arith.subf %67, %381 : vector<8x128xf32>
    %cst_138 = arith.constant 0.833333313 : f32
    %383 = vector.broadcast %cst_138 : f32 to vector<8x128xf32>
    %384 = arith.mulf %382, %383 : vector<8x128xf32>
    %385 = arith.mulf %384, %292 : vector<8x128xf32>
    %cst_139 = arith.constant 1.000000e+00 : f32
    %386 = vector.broadcast %cst_139 : f32 to vector<8x128xf32>
    %387 = arith.subf %386, %67 : vector<8x128xf32>
    %cst_140 = arith.constant 0.833333313 : f32
    %388 = vector.broadcast %cst_140 : f32 to vector<8x128xf32>
    %389 = arith.mulf %387, %388 : vector<8x128xf32>
    %390 = arith.mulf %389, %303 : vector<8x128xf32>
    %391 = arith.addf %385, %390 : vector<8x128xf32>
    %cst_141 = arith.constant -2.000000e-01 : f32
    %392 = vector.broadcast %cst_141 : f32 to vector<8x128xf32>
    %393 = arith.subf %67, %392 : vector<8x128xf32>
    %cst_142 = arith.constant 0.833333313 : f32
    %394 = vector.broadcast %cst_142 : f32 to vector<8x128xf32>
    %395 = arith.mulf %393, %394 : vector<8x128xf32>
    %396 = arith.mulf %395, %303 : vector<8x128xf32>
    %cst_143 = arith.constant 1.400000e+00 : f32
    %397 = vector.broadcast %cst_143 : f32 to vector<8x128xf32>
    %398 = arith.subf %397, %67 : vector<8x128xf32>
    %cst_144 = arith.constant 0.833333313 : f32
    %399 = vector.broadcast %cst_144 : f32 to vector<8x128xf32>
    %400 = arith.mulf %398, %399 : vector<8x128xf32>
    %401 = arith.mulf %400, %314 : vector<8x128xf32>
    %402 = arith.addf %396, %401 : vector<8x128xf32>
    %cst_145 = arith.constant 2.000000e-01 : f32
    %403 = vector.broadcast %cst_145 : f32 to vector<8x128xf32>
    %404 = arith.subf %67, %403 : vector<8x128xf32>
    %cst_146 = arith.constant 0.833333313 : f32
    %405 = vector.broadcast %cst_146 : f32 to vector<8x128xf32>
    %406 = arith.mulf %404, %405 : vector<8x128xf32>
    %407 = arith.mulf %406, %314 : vector<8x128xf32>
    %cst_147 = arith.constant 1.800000e+00 : f32
    %408 = vector.broadcast %cst_147 : f32 to vector<8x128xf32>
    %409 = arith.subf %408, %67 : vector<8x128xf32>
    %cst_148 = arith.constant 0.833333313 : f32
    %410 = vector.broadcast %cst_148 : f32 to vector<8x128xf32>
    %411 = arith.mulf %409, %410 : vector<8x128xf32>
    %412 = arith.mulf %411, %325 : vector<8x128xf32>
    %413 = arith.addf %407, %412 : vector<8x128xf32>
    %cst_149 = arith.constant 6.000000e-01 : f32
    %414 = vector.broadcast %cst_149 : f32 to vector<8x128xf32>
    %415 = arith.subf %67, %414 : vector<8x128xf32>
    %cst_150 = arith.constant 0.833333313 : f32
    %416 = vector.broadcast %cst_150 : f32 to vector<8x128xf32>
    %417 = arith.mulf %415, %416 : vector<8x128xf32>
    %418 = arith.mulf %417, %325 : vector<8x128xf32>
    %cst_151 = arith.constant 2.200000e+00 : f32
    %419 = vector.broadcast %cst_151 : f32 to vector<8x128xf32>
    %420 = arith.subf %419, %67 : vector<8x128xf32>
    %cst_152 = arith.constant 0.833333313 : f32
    %421 = vector.broadcast %cst_152 : f32 to vector<8x128xf32>
    %422 = arith.mulf %420, %421 : vector<8x128xf32>
    %423 = arith.mulf %422, %336 : vector<8x128xf32>
    %424 = arith.addf %418, %423 : vector<8x128xf32>
    %425 = arith.negf %67 : vector<8x128xf32>
    %426 = math.exp %425 : vector<8x128xf32>
    %cst_153 = arith.constant 1.000000e+00 : f32
    %427 = vector.broadcast %cst_153 : f32 to vector<8x128xf32>
    %428 = arith.addf %427, %426 : vector<8x128xf32>
    %429 = arith.divf %427, %428 : vector<8x128xf32>
    %430 = arith.mulf %67, %429 : vector<8x128xf32>
    %431 = tpu.concatenate %430, %347, %358, %369, %380, %391, %402, %413, %424 in 1 : vector<8x128xf32>, vector<8x128xf32>, vector<8x128xf32>, vector<8x128xf32>, vector<8x128xf32>, vector<8x128xf32>, vector<8x128xf32>, vector<8x128xf32>, vector<8x128xf32> -> vector<8x1152xf32>
    %432 = arith.truncf %431 : vector<8x1152xf32> to vector<8x1152xbf16>
    %cst_154 = arith.constant dense<0.000000e+00> : vector<8x128xf32>
    %433 = tpu.matmul %432, %68, %cst_154 {dimension_numbers = #tpu.dot_dimension_numbers<[1], [0], [0], [1], [0, 0, 1, 1], [], []>} : vector<8x1152xbf16>, vector<1152x128xbf16>, vector<8x128xf32> -> vector<8x128xf32>
    %c1664 = arith.constant 1664 : index
    %c0_155 = arith.constant 0 : index
    %434 = vector.load %arg2[%c1664, %c0_155] : memref<2816x256xbf16, #tpu.memory_space<vmem>>, vector<1152x128xbf16>
    %cst_156 = arith.constant -2.200000e+00 : f32
    %435 = vector.broadcast %cst_156 : f32 to vector<8x128xf32>
    %436 = arith.cmpf oge, %433, %435 : vector<8x128xf32>
    %437 = arith.extui %436 : vector<8x128xi1> to vector<8x128xi32>
    %438 = arith.sitofp %437 : vector<8x128xi32> to vector<8x128xf32>
    %cst_157 = arith.constant -1.800000e+00 : f32
    %439 = vector.broadcast %cst_157 : f32 to vector<8x128xf32>
    %440 = arith.cmpf oge, %433, %439 : vector<8x128xf32>
    %441 = arith.extui %440 : vector<8x128xi1> to vector<8x128xi32>
    %442 = arith.sitofp %441 : vector<8x128xi32> to vector<8x128xf32>
    %cst_158 = arith.constant -1.400000e+00 : f32
    %443 = vector.broadcast %cst_158 : f32 to vector<8x128xf32>
    %444 = arith.cmpf oge, %433, %443 : vector<8x128xf32>
    %445 = arith.extui %444 : vector<8x128xi1> to vector<8x128xi32>
    %446 = arith.sitofp %445 : vector<8x128xi32> to vector<8x128xf32>
    %cst_159 = arith.constant -1.000000e+00 : f32
    %447 = vector.broadcast %cst_159 : f32 to vector<8x128xf32>
    %448 = arith.cmpf oge, %433, %447 : vector<8x128xf32>
    %449 = arith.extui %448 : vector<8x128xi1> to vector<8x128xi32>
    %450 = arith.sitofp %449 : vector<8x128xi32> to vector<8x128xf32>
    %cst_160 = arith.constant -6.000000e-01 : f32
    %451 = vector.broadcast %cst_160 : f32 to vector<8x128xf32>
    %452 = arith.cmpf oge, %433, %451 : vector<8x128xf32>
    %453 = arith.extui %452 : vector<8x128xi1> to vector<8x128xi32>
    %454 = arith.sitofp %453 : vector<8x128xi32> to vector<8x128xf32>
    %cst_161 = arith.constant -2.000000e-01 : f32
    %455 = vector.broadcast %cst_161 : f32 to vector<8x128xf32>
    %456 = arith.cmpf oge, %433, %455 : vector<8x128xf32>
    %457 = arith.extui %456 : vector<8x128xi1> to vector<8x128xi32>
    %458 = arith.sitofp %457 : vector<8x128xi32> to vector<8x128xf32>
    %cst_162 = arith.constant 2.000000e-01 : f32
    %459 = vector.broadcast %cst_162 : f32 to vector<8x128xf32>
    %460 = arith.cmpf oge, %433, %459 : vector<8x128xf32>
    %461 = arith.extui %460 : vector<8x128xi1> to vector<8x128xi32>
    %462 = arith.sitofp %461 : vector<8x128xi32> to vector<8x128xf32>
    %cst_163 = arith.constant 6.000000e-01 : f32
    %463 = vector.broadcast %cst_163 : f32 to vector<8x128xf32>
    %464 = arith.cmpf oge, %433, %463 : vector<8x128xf32>
    %465 = arith.extui %464 : vector<8x128xi1> to vector<8x128xi32>
    %466 = arith.sitofp %465 : vector<8x128xi32> to vector<8x128xf32>
    %cst_164 = arith.constant 1.000000e+00 : f32
    %467 = vector.broadcast %cst_164 : f32 to vector<8x128xf32>
    %468 = arith.cmpf oge, %433, %467 : vector<8x128xf32>
    %469 = arith.extui %468 : vector<8x128xi1> to vector<8x128xi32>
    %470 = arith.sitofp %469 : vector<8x128xi32> to vector<8x128xf32>
    %cst_165 = arith.constant 1.400000e+00 : f32
    %471 = vector.broadcast %cst_165 : f32 to vector<8x128xf32>
    %472 = arith.cmpf oge, %433, %471 : vector<8x128xf32>
    %473 = arith.extui %472 : vector<8x128xi1> to vector<8x128xi32>
    %474 = arith.sitofp %473 : vector<8x128xi32> to vector<8x128xf32>
    %cst_166 = arith.constant 1.800000e+00 : f32
    %475 = vector.broadcast %cst_166 : f32 to vector<8x128xf32>
    %476 = arith.cmpf oge, %433, %475 : vector<8x128xf32>
    %477 = arith.extui %476 : vector<8x128xi1> to vector<8x128xi32>
    %478 = arith.sitofp %477 : vector<8x128xi32> to vector<8x128xf32>
    %cst_167 = arith.constant 2.200000e+00 : f32
    %479 = vector.broadcast %cst_167 : f32 to vector<8x128xf32>
    %480 = arith.cmpf oge, %433, %479 : vector<8x128xf32>
    %481 = arith.extui %480 : vector<8x128xi1> to vector<8x128xi32>
    %482 = arith.sitofp %481 : vector<8x128xi32> to vector<8x128xf32>
    %483 = arith.subf %438, %442 : vector<8x128xf32>
    %484 = arith.subf %442, %446 : vector<8x128xf32>
    %485 = arith.subf %446, %450 : vector<8x128xf32>
    %486 = arith.subf %450, %454 : vector<8x128xf32>
    %487 = arith.subf %454, %458 : vector<8x128xf32>
    %488 = arith.subf %458, %462 : vector<8x128xf32>
    %489 = arith.subf %462, %466 : vector<8x128xf32>
    %490 = arith.subf %466, %470 : vector<8x128xf32>
    %491 = arith.subf %470, %474 : vector<8x128xf32>
    %492 = arith.subf %474, %478 : vector<8x128xf32>
    %493 = arith.subf %478, %482 : vector<8x128xf32>
    %cst_168 = arith.constant -2.200000e+00 : f32
    %494 = vector.broadcast %cst_168 : f32 to vector<8x128xf32>
    %495 = arith.subf %433, %494 : vector<8x128xf32>
    %cst_169 = arith.constant 2.500000e+00 : f32
    %496 = vector.broadcast %cst_169 : f32 to vector<8x128xf32>
    %497 = arith.mulf %495, %496 : vector<8x128xf32>
    %498 = arith.mulf %497, %483 : vector<8x128xf32>
    %cst_170 = arith.constant -1.400000e+00 : f32
    %499 = vector.broadcast %cst_170 : f32 to vector<8x128xf32>
    %500 = arith.subf %499, %433 : vector<8x128xf32>
    %cst_171 = arith.constant 2.500000e+00 : f32
    %501 = vector.broadcast %cst_171 : f32 to vector<8x128xf32>
    %502 = arith.mulf %500, %501 : vector<8x128xf32>
    %503 = arith.mulf %502, %484 : vector<8x128xf32>
    %504 = arith.addf %498, %503 : vector<8x128xf32>
    %cst_172 = arith.constant -1.800000e+00 : f32
    %505 = vector.broadcast %cst_172 : f32 to vector<8x128xf32>
    %506 = arith.subf %433, %505 : vector<8x128xf32>
    %cst_173 = arith.constant 2.500000e+00 : f32
    %507 = vector.broadcast %cst_173 : f32 to vector<8x128xf32>
    %508 = arith.mulf %506, %507 : vector<8x128xf32>
    %509 = arith.mulf %508, %484 : vector<8x128xf32>
    %cst_174 = arith.constant -1.000000e+00 : f32
    %510 = vector.broadcast %cst_174 : f32 to vector<8x128xf32>
    %511 = arith.subf %510, %433 : vector<8x128xf32>
    %cst_175 = arith.constant 2.500000e+00 : f32
    %512 = vector.broadcast %cst_175 : f32 to vector<8x128xf32>
    %513 = arith.mulf %511, %512 : vector<8x128xf32>
    %514 = arith.mulf %513, %485 : vector<8x128xf32>
    %515 = arith.addf %509, %514 : vector<8x128xf32>
    %cst_176 = arith.constant -1.400000e+00 : f32
    %516 = vector.broadcast %cst_176 : f32 to vector<8x128xf32>
    %517 = arith.subf %433, %516 : vector<8x128xf32>
    %cst_177 = arith.constant 2.500000e+00 : f32
    %518 = vector.broadcast %cst_177 : f32 to vector<8x128xf32>
    %519 = arith.mulf %517, %518 : vector<8x128xf32>
    %520 = arith.mulf %519, %485 : vector<8x128xf32>
    %cst_178 = arith.constant -6.000000e-01 : f32
    %521 = vector.broadcast %cst_178 : f32 to vector<8x128xf32>
    %522 = arith.subf %521, %433 : vector<8x128xf32>
    %cst_179 = arith.constant 2.500000e+00 : f32
    %523 = vector.broadcast %cst_179 : f32 to vector<8x128xf32>
    %524 = arith.mulf %522, %523 : vector<8x128xf32>
    %525 = arith.mulf %524, %486 : vector<8x128xf32>
    %526 = arith.addf %520, %525 : vector<8x128xf32>
    %cst_180 = arith.constant -1.000000e+00 : f32
    %527 = vector.broadcast %cst_180 : f32 to vector<8x128xf32>
    %528 = arith.subf %433, %527 : vector<8x128xf32>
    %cst_181 = arith.constant 2.500000e+00 : f32
    %529 = vector.broadcast %cst_181 : f32 to vector<8x128xf32>
    %530 = arith.mulf %528, %529 : vector<8x128xf32>
    %531 = arith.mulf %530, %486 : vector<8x128xf32>
    %cst_182 = arith.constant -2.000000e-01 : f32
    %532 = vector.broadcast %cst_182 : f32 to vector<8x128xf32>
    %533 = arith.subf %532, %433 : vector<8x128xf32>
    %cst_183 = arith.constant 2.500000e+00 : f32
    %534 = vector.broadcast %cst_183 : f32 to vector<8x128xf32>
    %535 = arith.mulf %533, %534 : vector<8x128xf32>
    %536 = arith.mulf %535, %487 : vector<8x128xf32>
    %537 = arith.addf %531, %536 : vector<8x128xf32>
    %cst_184 = arith.constant -6.000000e-01 : f32
    %538 = vector.broadcast %cst_184 : f32 to vector<8x128xf32>
    %539 = arith.subf %433, %538 : vector<8x128xf32>
    %cst_185 = arith.constant 2.500000e+00 : f32
    %540 = vector.broadcast %cst_185 : f32 to vector<8x128xf32>
    %541 = arith.mulf %539, %540 : vector<8x128xf32>
    %542 = arith.mulf %541, %487 : vector<8x128xf32>
    %cst_186 = arith.constant 2.000000e-01 : f32
    %543 = vector.broadcast %cst_186 : f32 to vector<8x128xf32>
    %544 = arith.subf %543, %433 : vector<8x128xf32>
    %cst_187 = arith.constant 2.500000e+00 : f32
    %545 = vector.broadcast %cst_187 : f32 to vector<8x128xf32>
    %546 = arith.mulf %544, %545 : vector<8x128xf32>
    %547 = arith.mulf %546, %488 : vector<8x128xf32>
    %548 = arith.addf %542, %547 : vector<8x128xf32>
    %cst_188 = arith.constant -2.000000e-01 : f32
    %549 = vector.broadcast %cst_188 : f32 to vector<8x128xf32>
    %550 = arith.subf %433, %549 : vector<8x128xf32>
    %cst_189 = arith.constant 2.500000e+00 : f32
    %551 = vector.broadcast %cst_189 : f32 to vector<8x128xf32>
    %552 = arith.mulf %550, %551 : vector<8x128xf32>
    %553 = arith.mulf %552, %488 : vector<8x128xf32>
    %cst_190 = arith.constant 6.000000e-01 : f32
    %554 = vector.broadcast %cst_190 : f32 to vector<8x128xf32>
    %555 = arith.subf %554, %433 : vector<8x128xf32>
    %cst_191 = arith.constant 2.500000e+00 : f32
    %556 = vector.broadcast %cst_191 : f32 to vector<8x128xf32>
    %557 = arith.mulf %555, %556 : vector<8x128xf32>
    %558 = arith.mulf %557, %489 : vector<8x128xf32>
    %559 = arith.addf %553, %558 : vector<8x128xf32>
    %cst_192 = arith.constant 2.000000e-01 : f32
    %560 = vector.broadcast %cst_192 : f32 to vector<8x128xf32>
    %561 = arith.subf %433, %560 : vector<8x128xf32>
    %cst_193 = arith.constant 2.500000e+00 : f32
    %562 = vector.broadcast %cst_193 : f32 to vector<8x128xf32>
    %563 = arith.mulf %561, %562 : vector<8x128xf32>
    %564 = arith.mulf %563, %489 : vector<8x128xf32>
    %cst_194 = arith.constant 1.000000e+00 : f32
    %565 = vector.broadcast %cst_194 : f32 to vector<8x128xf32>
    %566 = arith.subf %565, %433 : vector<8x128xf32>
    %cst_195 = arith.constant 2.500000e+00 : f32
    %567 = vector.broadcast %cst_195 : f32 to vector<8x128xf32>
    %568 = arith.mulf %566, %567 : vector<8x128xf32>
    %569 = arith.mulf %568, %490 : vector<8x128xf32>
    %570 = arith.addf %564, %569 : vector<8x128xf32>
    %cst_196 = arith.constant 6.000000e-01 : f32
    %571 = vector.broadcast %cst_196 : f32 to vector<8x128xf32>
    %572 = arith.subf %433, %571 : vector<8x128xf32>
    %cst_197 = arith.constant 2.500000e+00 : f32
    %573 = vector.broadcast %cst_197 : f32 to vector<8x128xf32>
    %574 = arith.mulf %572, %573 : vector<8x128xf32>
    %575 = arith.mulf %574, %490 : vector<8x128xf32>
    %cst_198 = arith.constant 1.400000e+00 : f32
    %576 = vector.broadcast %cst_198 : f32 to vector<8x128xf32>
    %577 = arith.subf %576, %433 : vector<8x128xf32>
    %cst_199 = arith.constant 2.500000e+00 : f32
    %578 = vector.broadcast %cst_199 : f32 to vector<8x128xf32>
    %579 = arith.mulf %577, %578 : vector<8x128xf32>
    %580 = arith.mulf %579, %491 : vector<8x128xf32>
    %581 = arith.addf %575, %580 : vector<8x128xf32>
    %cst_200 = arith.constant 1.000000e+00 : f32
    %582 = vector.broadcast %cst_200 : f32 to vector<8x128xf32>
    %583 = arith.subf %433, %582 : vector<8x128xf32>
    %cst_201 = arith.constant 2.500000e+00 : f32
    %584 = vector.broadcast %cst_201 : f32 to vector<8x128xf32>
    %585 = arith.mulf %583, %584 : vector<8x128xf32>
    %586 = arith.mulf %585, %491 : vector<8x128xf32>
    %cst_202 = arith.constant 1.800000e+00 : f32
    %587 = vector.broadcast %cst_202 : f32 to vector<8x128xf32>
    %588 = arith.subf %587, %433 : vector<8x128xf32>
    %cst_203 = arith.constant 2.500000e+00 : f32
    %589 = vector.broadcast %cst_203 : f32 to vector<8x128xf32>
    %590 = arith.mulf %588, %589 : vector<8x128xf32>
    %591 = arith.mulf %590, %492 : vector<8x128xf32>
    %592 = arith.addf %586, %591 : vector<8x128xf32>
    %cst_204 = arith.constant 1.400000e+00 : f32
    %593 = vector.broadcast %cst_204 : f32 to vector<8x128xf32>
    %594 = arith.subf %433, %593 : vector<8x128xf32>
    %cst_205 = arith.constant 2.500000e+00 : f32
    %595 = vector.broadcast %cst_205 : f32 to vector<8x128xf32>
    %596 = arith.mulf %594, %595 : vector<8x128xf32>
    %597 = arith.mulf %596, %492 : vector<8x128xf32>
    %cst_206 = arith.constant 2.200000e+00 : f32
    %598 = vector.broadcast %cst_206 : f32 to vector<8x128xf32>
    %599 = arith.subf %598, %433 : vector<8x128xf32>
    %cst_207 = arith.constant 2.500000e+00 : f32
    %600 = vector.broadcast %cst_207 : f32 to vector<8x128xf32>
    %601 = arith.mulf %599, %600 : vector<8x128xf32>
    %602 = arith.mulf %601, %493 : vector<8x128xf32>
    %603 = arith.addf %597, %602 : vector<8x128xf32>
    %cst_208 = arith.constant -2.200000e+00 : f32
    %604 = vector.broadcast %cst_208 : f32 to vector<8x128xf32>
    %605 = arith.subf %433, %604 : vector<8x128xf32>
    %cst_209 = arith.constant 1.250000e+00 : f32
    %606 = vector.broadcast %cst_209 : f32 to vector<8x128xf32>
    %607 = arith.mulf %605, %606 : vector<8x128xf32>
    %608 = arith.mulf %607, %504 : vector<8x128xf32>
    %cst_210 = arith.constant -1.000000e+00 : f32
    %609 = vector.broadcast %cst_210 : f32 to vector<8x128xf32>
    %610 = arith.subf %609, %433 : vector<8x128xf32>
    %cst_211 = arith.constant 1.250000e+00 : f32
    %611 = vector.broadcast %cst_211 : f32 to vector<8x128xf32>
    %612 = arith.mulf %610, %611 : vector<8x128xf32>
    %613 = arith.mulf %612, %515 : vector<8x128xf32>
    %614 = arith.addf %608, %613 : vector<8x128xf32>
    %cst_212 = arith.constant -1.800000e+00 : f32
    %615 = vector.broadcast %cst_212 : f32 to vector<8x128xf32>
    %616 = arith.subf %433, %615 : vector<8x128xf32>
    %cst_213 = arith.constant 1.250000e+00 : f32
    %617 = vector.broadcast %cst_213 : f32 to vector<8x128xf32>
    %618 = arith.mulf %616, %617 : vector<8x128xf32>
    %619 = arith.mulf %618, %515 : vector<8x128xf32>
    %cst_214 = arith.constant -6.000000e-01 : f32
    %620 = vector.broadcast %cst_214 : f32 to vector<8x128xf32>
    %621 = arith.subf %620, %433 : vector<8x128xf32>
    %cst_215 = arith.constant 1.250000e+00 : f32
    %622 = vector.broadcast %cst_215 : f32 to vector<8x128xf32>
    %623 = arith.mulf %621, %622 : vector<8x128xf32>
    %624 = arith.mulf %623, %526 : vector<8x128xf32>
    %625 = arith.addf %619, %624 : vector<8x128xf32>
    %cst_216 = arith.constant -1.400000e+00 : f32
    %626 = vector.broadcast %cst_216 : f32 to vector<8x128xf32>
    %627 = arith.subf %433, %626 : vector<8x128xf32>
    %cst_217 = arith.constant 1.250000e+00 : f32
    %628 = vector.broadcast %cst_217 : f32 to vector<8x128xf32>
    %629 = arith.mulf %627, %628 : vector<8x128xf32>
    %630 = arith.mulf %629, %526 : vector<8x128xf32>
    %cst_218 = arith.constant -2.000000e-01 : f32
    %631 = vector.broadcast %cst_218 : f32 to vector<8x128xf32>
    %632 = arith.subf %631, %433 : vector<8x128xf32>
    %cst_219 = arith.constant 1.250000e+00 : f32
    %633 = vector.broadcast %cst_219 : f32 to vector<8x128xf32>
    %634 = arith.mulf %632, %633 : vector<8x128xf32>
    %635 = arith.mulf %634, %537 : vector<8x128xf32>
    %636 = arith.addf %630, %635 : vector<8x128xf32>
    %cst_220 = arith.constant -1.000000e+00 : f32
    %637 = vector.broadcast %cst_220 : f32 to vector<8x128xf32>
    %638 = arith.subf %433, %637 : vector<8x128xf32>
    %cst_221 = arith.constant 1.250000e+00 : f32
    %639 = vector.broadcast %cst_221 : f32 to vector<8x128xf32>
    %640 = arith.mulf %638, %639 : vector<8x128xf32>
    %641 = arith.mulf %640, %537 : vector<8x128xf32>
    %cst_222 = arith.constant 2.000000e-01 : f32
    %642 = vector.broadcast %cst_222 : f32 to vector<8x128xf32>
    %643 = arith.subf %642, %433 : vector<8x128xf32>
    %cst_223 = arith.constant 1.250000e+00 : f32
    %644 = vector.broadcast %cst_223 : f32 to vector<8x128xf32>
    %645 = arith.mulf %643, %644 : vector<8x128xf32>
    %646 = arith.mulf %645, %548 : vector<8x128xf32>
    %647 = arith.addf %641, %646 : vector<8x128xf32>
    %cst_224 = arith.constant -6.000000e-01 : f32
    %648 = vector.broadcast %cst_224 : f32 to vector<8x128xf32>
    %649 = arith.subf %433, %648 : vector<8x128xf32>
    %cst_225 = arith.constant 1.250000e+00 : f32
    %650 = vector.broadcast %cst_225 : f32 to vector<8x128xf32>
    %651 = arith.mulf %649, %650 : vector<8x128xf32>
    %652 = arith.mulf %651, %548 : vector<8x128xf32>
    %cst_226 = arith.constant 6.000000e-01 : f32
    %653 = vector.broadcast %cst_226 : f32 to vector<8x128xf32>
    %654 = arith.subf %653, %433 : vector<8x128xf32>
    %cst_227 = arith.constant 1.250000e+00 : f32
    %655 = vector.broadcast %cst_227 : f32 to vector<8x128xf32>
    %656 = arith.mulf %654, %655 : vector<8x128xf32>
    %657 = arith.mulf %656, %559 : vector<8x128xf32>
    %658 = arith.addf %652, %657 : vector<8x128xf32>
    %cst_228 = arith.constant -2.000000e-01 : f32
    %659 = vector.broadcast %cst_228 : f32 to vector<8x128xf32>
    %660 = arith.subf %433, %659 : vector<8x128xf32>
    %cst_229 = arith.constant 1.250000e+00 : f32
    %661 = vector.broadcast %cst_229 : f32 to vector<8x128xf32>
    %662 = arith.mulf %660, %661 : vector<8x128xf32>
    %663 = arith.mulf %662, %559 : vector<8x128xf32>
    %cst_230 = arith.constant 1.000000e+00 : f32
    %664 = vector.broadcast %cst_230 : f32 to vector<8x128xf32>
    %665 = arith.subf %664, %433 : vector<8x128xf32>
    %cst_231 = arith.constant 1.250000e+00 : f32
    %666 = vector.broadcast %cst_231 : f32 to vector<8x128xf32>
    %667 = arith.mulf %665, %666 : vector<8x128xf32>
    %668 = arith.mulf %667, %570 : vector<8x128xf32>
    %669 = arith.addf %663, %668 : vector<8x128xf32>
    %cst_232 = arith.constant 2.000000e-01 : f32
    %670 = vector.broadcast %cst_232 : f32 to vector<8x128xf32>
    %671 = arith.subf %433, %670 : vector<8x128xf32>
    %cst_233 = arith.constant 1.250000e+00 : f32
    %672 = vector.broadcast %cst_233 : f32 to vector<8x128xf32>
    %673 = arith.mulf %671, %672 : vector<8x128xf32>
    %674 = arith.mulf %673, %570 : vector<8x128xf32>
    %cst_234 = arith.constant 1.400000e+00 : f32
    %675 = vector.broadcast %cst_234 : f32 to vector<8x128xf32>
    %676 = arith.subf %675, %433 : vector<8x128xf32>
    %cst_235 = arith.constant 1.250000e+00 : f32
    %677 = vector.broadcast %cst_235 : f32 to vector<8x128xf32>
    %678 = arith.mulf %676, %677 : vector<8x128xf32>
    %679 = arith.mulf %678, %581 : vector<8x128xf32>
    %680 = arith.addf %674, %679 : vector<8x128xf32>
    %cst_236 = arith.constant 6.000000e-01 : f32
    %681 = vector.broadcast %cst_236 : f32 to vector<8x128xf32>
    %682 = arith.subf %433, %681 : vector<8x128xf32>
    %cst_237 = arith.constant 1.250000e+00 : f32
    %683 = vector.broadcast %cst_237 : f32 to vector<8x128xf32>
    %684 = arith.mulf %682, %683 : vector<8x128xf32>
    %685 = arith.mulf %684, %581 : vector<8x128xf32>
    %cst_238 = arith.constant 1.800000e+00 : f32
    %686 = vector.broadcast %cst_238 : f32 to vector<8x128xf32>
    %687 = arith.subf %686, %433 : vector<8x128xf32>
    %cst_239 = arith.constant 1.250000e+00 : f32
    %688 = vector.broadcast %cst_239 : f32 to vector<8x128xf32>
    %689 = arith.mulf %687, %688 : vector<8x128xf32>
    %690 = arith.mulf %689, %592 : vector<8x128xf32>
    %691 = arith.addf %685, %690 : vector<8x128xf32>
    %cst_240 = arith.constant 1.000000e+00 : f32
    %692 = vector.broadcast %cst_240 : f32 to vector<8x128xf32>
    %693 = arith.subf %433, %692 : vector<8x128xf32>
    %cst_241 = arith.constant 1.250000e+00 : f32
    %694 = vector.broadcast %cst_241 : f32 to vector<8x128xf32>
    %695 = arith.mulf %693, %694 : vector<8x128xf32>
    %696 = arith.mulf %695, %592 : vector<8x128xf32>
    %cst_242 = arith.constant 2.200000e+00 : f32
    %697 = vector.broadcast %cst_242 : f32 to vector<8x128xf32>
    %698 = arith.subf %697, %433 : vector<8x128xf32>
    %cst_243 = arith.constant 1.250000e+00 : f32
    %699 = vector.broadcast %cst_243 : f32 to vector<8x128xf32>
    %700 = arith.mulf %698, %699 : vector<8x128xf32>
    %701 = arith.mulf %700, %603 : vector<8x128xf32>
    %702 = arith.addf %696, %701 : vector<8x128xf32>
    %cst_244 = arith.constant -2.200000e+00 : f32
    %703 = vector.broadcast %cst_244 : f32 to vector<8x128xf32>
    %704 = arith.subf %433, %703 : vector<8x128xf32>
    %cst_245 = arith.constant 0.833333313 : f32
    %705 = vector.broadcast %cst_245 : f32 to vector<8x128xf32>
    %706 = arith.mulf %704, %705 : vector<8x128xf32>
    %707 = arith.mulf %706, %614 : vector<8x128xf32>
    %cst_246 = arith.constant -6.000000e-01 : f32
    %708 = vector.broadcast %cst_246 : f32 to vector<8x128xf32>
    %709 = arith.subf %708, %433 : vector<8x128xf32>
    %cst_247 = arith.constant 0.833333313 : f32
    %710 = vector.broadcast %cst_247 : f32 to vector<8x128xf32>
    %711 = arith.mulf %709, %710 : vector<8x128xf32>
    %712 = arith.mulf %711, %625 : vector<8x128xf32>
    %713 = arith.addf %707, %712 : vector<8x128xf32>
    %cst_248 = arith.constant -1.800000e+00 : f32
    %714 = vector.broadcast %cst_248 : f32 to vector<8x128xf32>
    %715 = arith.subf %433, %714 : vector<8x128xf32>
    %cst_249 = arith.constant 0.833333313 : f32
    %716 = vector.broadcast %cst_249 : f32 to vector<8x128xf32>
    %717 = arith.mulf %715, %716 : vector<8x128xf32>
    %718 = arith.mulf %717, %625 : vector<8x128xf32>
    %cst_250 = arith.constant -2.000000e-01 : f32
    %719 = vector.broadcast %cst_250 : f32 to vector<8x128xf32>
    %720 = arith.subf %719, %433 : vector<8x128xf32>
    %cst_251 = arith.constant 0.833333313 : f32
    %721 = vector.broadcast %cst_251 : f32 to vector<8x128xf32>
    %722 = arith.mulf %720, %721 : vector<8x128xf32>
    %723 = arith.mulf %722, %636 : vector<8x128xf32>
    %724 = arith.addf %718, %723 : vector<8x128xf32>
    %cst_252 = arith.constant -1.400000e+00 : f32
    %725 = vector.broadcast %cst_252 : f32 to vector<8x128xf32>
    %726 = arith.subf %433, %725 : vector<8x128xf32>
    %cst_253 = arith.constant 0.833333313 : f32
    %727 = vector.broadcast %cst_253 : f32 to vector<8x128xf32>
    %728 = arith.mulf %726, %727 : vector<8x128xf32>
    %729 = arith.mulf %728, %636 : vector<8x128xf32>
    %cst_254 = arith.constant 2.000000e-01 : f32
    %730 = vector.broadcast %cst_254 : f32 to vector<8x128xf32>
    %731 = arith.subf %730, %433 : vector<8x128xf32>
    %cst_255 = arith.constant 0.833333313 : f32
    %732 = vector.broadcast %cst_255 : f32 to vector<8x128xf32>
    %733 = arith.mulf %731, %732 : vector<8x128xf32>
    %734 = arith.mulf %733, %647 : vector<8x128xf32>
    %735 = arith.addf %729, %734 : vector<8x128xf32>
    %cst_256 = arith.constant -1.000000e+00 : f32
    %736 = vector.broadcast %cst_256 : f32 to vector<8x128xf32>
    %737 = arith.subf %433, %736 : vector<8x128xf32>
    %cst_257 = arith.constant 0.833333313 : f32
    %738 = vector.broadcast %cst_257 : f32 to vector<8x128xf32>
    %739 = arith.mulf %737, %738 : vector<8x128xf32>
    %740 = arith.mulf %739, %647 : vector<8x128xf32>
    %cst_258 = arith.constant 6.000000e-01 : f32
    %741 = vector.broadcast %cst_258 : f32 to vector<8x128xf32>
    %742 = arith.subf %741, %433 : vector<8x128xf32>
    %cst_259 = arith.constant 0.833333313 : f32
    %743 = vector.broadcast %cst_259 : f32 to vector<8x128xf32>
    %744 = arith.mulf %742, %743 : vector<8x128xf32>
    %745 = arith.mulf %744, %658 : vector<8x128xf32>
    %746 = arith.addf %740, %745 : vector<8x128xf32>
    %cst_260 = arith.constant -6.000000e-01 : f32
    %747 = vector.broadcast %cst_260 : f32 to vector<8x128xf32>
    %748 = arith.subf %433, %747 : vector<8x128xf32>
    %cst_261 = arith.constant 0.833333313 : f32
    %749 = vector.broadcast %cst_261 : f32 to vector<8x128xf32>
    %750 = arith.mulf %748, %749 : vector<8x128xf32>
    %751 = arith.mulf %750, %658 : vector<8x128xf32>
    %cst_262 = arith.constant 1.000000e+00 : f32
    %752 = vector.broadcast %cst_262 : f32 to vector<8x128xf32>
    %753 = arith.subf %752, %433 : vector<8x128xf32>
    %cst_263 = arith.constant 0.833333313 : f32
    %754 = vector.broadcast %cst_263 : f32 to vector<8x128xf32>
    %755 = arith.mulf %753, %754 : vector<8x128xf32>
    %756 = arith.mulf %755, %669 : vector<8x128xf32>
    %757 = arith.addf %751, %756 : vector<8x128xf32>
    %cst_264 = arith.constant -2.000000e-01 : f32
    %758 = vector.broadcast %cst_264 : f32 to vector<8x128xf32>
    %759 = arith.subf %433, %758 : vector<8x128xf32>
    %cst_265 = arith.constant 0.833333313 : f32
    %760 = vector.broadcast %cst_265 : f32 to vector<8x128xf32>
    %761 = arith.mulf %759, %760 : vector<8x128xf32>
    %762 = arith.mulf %761, %669 : vector<8x128xf32>
    %cst_266 = arith.constant 1.400000e+00 : f32
    %763 = vector.broadcast %cst_266 : f32 to vector<8x128xf32>
    %764 = arith.subf %763, %433 : vector<8x128xf32>
    %cst_267 = arith.constant 0.833333313 : f32
    %765 = vector.broadcast %cst_267 : f32 to vector<8x128xf32>
    %766 = arith.mulf %764, %765 : vector<8x128xf32>
    %767 = arith.mulf %766, %680 : vector<8x128xf32>
    %768 = arith.addf %762, %767 : vector<8x128xf32>
    %cst_268 = arith.constant 2.000000e-01 : f32
    %769 = vector.broadcast %cst_268 : f32 to vector<8x128xf32>
    %770 = arith.subf %433, %769 : vector<8x128xf32>
    %cst_269 = arith.constant 0.833333313 : f32
    %771 = vector.broadcast %cst_269 : f32 to vector<8x128xf32>
    %772 = arith.mulf %770, %771 : vector<8x128xf32>
    %773 = arith.mulf %772, %680 : vector<8x128xf32>
    %cst_270 = arith.constant 1.800000e+00 : f32
    %774 = vector.broadcast %cst_270 : f32 to vector<8x128xf32>
    %775 = arith.subf %774, %433 : vector<8x128xf32>
    %cst_271 = arith.constant 0.833333313 : f32
    %776 = vector.broadcast %cst_271 : f32 to vector<8x128xf32>
    %777 = arith.mulf %775, %776 : vector<8x128xf32>
    %778 = arith.mulf %777, %691 : vector<8x128xf32>
    %779 = arith.addf %773, %778 : vector<8x128xf32>
    %cst_272 = arith.constant 6.000000e-01 : f32
    %780 = vector.broadcast %cst_272 : f32 to vector<8x128xf32>
    %781 = arith.subf %433, %780 : vector<8x128xf32>
    %cst_273 = arith.constant 0.833333313 : f32
    %782 = vector.broadcast %cst_273 : f32 to vector<8x128xf32>
    %783 = arith.mulf %781, %782 : vector<8x128xf32>
    %784 = arith.mulf %783, %691 : vector<8x128xf32>
    %cst_274 = arith.constant 2.200000e+00 : f32
    %785 = vector.broadcast %cst_274 : f32 to vector<8x128xf32>
    %786 = arith.subf %785, %433 : vector<8x128xf32>
    %cst_275 = arith.constant 0.833333313 : f32
    %787 = vector.broadcast %cst_275 : f32 to vector<8x128xf32>
    %788 = arith.mulf %786, %787 : vector<8x128xf32>
    %789 = arith.mulf %788, %702 : vector<8x128xf32>
    %790 = arith.addf %784, %789 : vector<8x128xf32>
    %791 = arith.negf %433 : vector<8x128xf32>
    %792 = math.exp %791 : vector<8x128xf32>
    %cst_276 = arith.constant 1.000000e+00 : f32
    %793 = vector.broadcast %cst_276 : f32 to vector<8x128xf32>
    %794 = arith.addf %793, %792 : vector<8x128xf32>
    %795 = arith.divf %793, %794 : vector<8x128xf32>
    %796 = arith.mulf %433, %795 : vector<8x128xf32>
    %797 = tpu.concatenate %796, %713, %724, %735, %746, %757, %768, %779, %790 in 1 : vector<8x128xf32>, vector<8x128xf32>, vector<8x128xf32>, vector<8x128xf32>, vector<8x128xf32>, vector<8x128xf32>, vector<8x128xf32>, vector<8x128xf32>, vector<8x128xf32> -> vector<8x1152xf32>
    %798 = arith.truncf %797 : vector<8x1152xf32> to vector<8x1152xbf16>
    %cst_277 = arith.constant dense<0.000000e+00> : vector<8x128xf32>
    %799 = tpu.matmul %798, %434, %cst_277 {dimension_numbers = #tpu.dot_dimension_numbers<[1], [0], [0], [1], [0, 0, 1, 1], [], []>} : vector<8x1152xbf16>, vector<1152x128xbf16>, vector<8x128xf32> -> vector<8x128xf32>
    %800 = vector.extract_strided_slice %799 {offsets = [0, 0], sizes = [8, 8], strides = [1, 1]} : vector<8x128xf32> to vector<8x8xf32>
    %801 = vector.broadcast %8 : vector<8x1xf32> to vector<8x8xf32>
    %802 = arith.subf %800, %801 : vector<8x8xf32>
    %803 = vector.broadcast %9 : vector<8x1xf32> to vector<8x8xf32>
    %804 = arith.mulf %802, %803 : vector<8x8xf32>
    %805 = vector.broadcast %26 : vector<8x1xf32> to vector<8x8xf32>
    %806 = arith.mulf %804, %805 : vector<8x8xf32>
    %807 = vector.broadcast %13 : vector<8x1xf32> to vector<8x8xf32>
    %808 = arith.addf %806, %807 : vector<8x8xf32>
    %809 = vector.extract_strided_slice %808 {offsets = [0, 0], sizes = [4, 8], strides = [1, 1]} : vector<8x8xf32> to vector<4x8xf32>
    %810 = tpu.transpose %809, [1, 0] : vector<4x8xf32> -> vector<8x4xf32>
    %c0_278 = arith.constant 0 : index
    %c0_279 = arith.constant 0 : index
    %c0_280 = arith.constant 0 : index
    %811 = vector.load %arg4[%c0_278, %c0_279, %c0_280] : memref<2x8x4xf32, #tpu.memory_space<vmem>>, vector<1x8x4xf32>
    %812 = vector.shape_cast %811 : vector<1x8x4xf32> to vector<8x4xf32>
    %813 = vector.shape_cast %810 : vector<8x4xf32> to vector<1x8x4xf32>
    tpu.vector_store %arg4[%c0_278, %c0_279, %c0_280], %813 {strides = array<i32>} : memref<2x8x4xf32, #tpu.memory_space<vmem>>, vector<1x8x4xf32>,
    %814 = vector.extract_strided_slice %808 {offsets = [4, 0], sizes = [4, 8], strides = [1, 1]} : vector<8x8xf32> to vector<4x8xf32>
    %815 = tpu.transpose %814, [1, 0] : vector<4x8xf32> -> vector<8x4xf32>
    %c1_281 = arith.constant 1 : index
    %c0_282 = arith.constant 0 : index
    %c0_283 = arith.constant 0 : index
    %816 = vector.load %arg4[%c1_281, %c0_282, %c0_283] : memref<2x8x4xf32, #tpu.memory_space<vmem>>, vector<1x8x4xf32>
    %817 = vector.shape_cast %816 : vector<1x8x4xf32> to vector<8x4xf32>
    %818 = vector.shape_cast %815 : vector<8x4xf32> to vector<1x8x4xf32>
    tpu.vector_store %arg4[%c1_281, %c0_282, %c0_283], %818 {strides = array<i32>} : memref<2x8x4xf32, #tpu.memory_space<vmem>>, vector<1x8x4xf32>,
    return
  }
  func.func @transform_0(%arg0: i32) -> (i32, i32, i32) {
    %c0_i32 = arith.constant 0 : i32
    %c0_i32_0 = arith.constant 0 : i32
    %c0_i32_1 = arith.constant 0 : i32
    return %arg0, %c0_i32, %c0_i32_0 : i32, i32, i32
  }
  func.func @transform_1(%arg0: i32) -> (i32, i32) {
    %c0_i32 = arith.constant 0 : i32
    %c0_i32_0 = arith.constant 0 : i32
    %c0_i32_1 = arith.constant 0 : i32
    return %c0_i32, %c0_i32_0 : i32, i32
  }
  func.func @transform_2(%arg0: i32) -> (i32, i32) {
    %c0_i32 = arith.constant 0 : i32
    %c0_i32_0 = arith.constant 0 : i32
    %c0_i32_1 = arith.constant 0 : i32
    return %c0_i32, %c0_i32_0 : i32, i32
  }
  func.func @transform_3(%arg0: i32) -> (i32, i32, i32) {
    %c0_i32 = arith.constant 0 : i32
    %c0_i32_0 = arith.constant 0 : i32
    %c0_i32_1 = arith.constant 0 : i32
    return %arg0, %c0_i32, %c0_i32_0 : i32, i32, i32
  }
}

</mosaic_0001>

<llo_original>
// kernel: _forward.1
$region0: #{_forward.1}
  #allocation0 [shape = 'u32[]', space=smem, size = 0x4, offset = 0x4, fixed_abs, tag = 'smem constant byte address 0x4 - core index']
  #allocation1 [shape = 'u32[144,128]{1,0:T(1,128)}', space=vmem, size = 0x12000, scoped, tag = 'internal scratch']
  %s0 = inlined_call_operand.vmem [shape: f32[2,32,4], index: 0, kind: input, shape index: {}]
  %s1 = inlined_call_operand.hbm [shape: bf16[2816,256], index: 1, kind: input, shape index: {}]
  %s2 = inlined_call_operand.hbm [shape: f32[40,384], index: 2, kind: input, shape index: {}]
  %s3 = inlined_call_operand.vmem [shape: f32[2,8,4], index: 3, kind: output, shape index: {}]
  %s4 = sld [smem:[#allocation0]]
  $region30: #{_forward.1} parent=0
    _
  %s6 = ssub.s32 1, %s4
  %s7 = scalar_select 0, %s6, %s4
  $region1: #{_forward.1} parent=0
    #allocation2 [shape = 'u8[1441792]{0}', space=vmem, size = 0x160000, scoped, tag = 'input window, operand 1, single buffered']
    #allocation3 [shape = 's32[1]{0}', space=sflag, size = 0x4, scoped, tag = 'scoped memory for _forward.1']
    #allocation4 [shape = 'u8[61440]{0}', space=vmem, size = 0xf000, scoped, tag = 'input window, operand 2, single buffered']
    #allocation5 [shape = 's32[1]{0}', space=sflag, size = 0x4, scoped, tag = 'scoped memory for _forward.1']
    %8 = vsyncpa [#allocation3], 0
    %9 = vsyncpa [#allocation5], 0
    // Predicated region
    $region2: #{_forward.1} parent=1 // pred_check
      _
    $region3: #{_forward.1} parent=1 // pred_check_branch
      %11 = sbr.rel (0) target = $region5
    $region4: #{_forward.1} parent=1 // pred_region
      _
    $region5: #{_forward.1} parent=1 // pred_fallthru
      _
    // Predicated region
    $region6: #{_forward.1} parent=1 // pred_check
      _
    $region7: #{_forward.1} parent=1 // pred_check_branch
      %13 = sbr.rel (0) target = $region9
    $region8: #{_forward.1} parent=1 // pred_region
      %s15 = ssub.s32 45056, 45056
      %16 = vsyncadd [#allocation3], %s15
      %s17 = sshll.u32 [#allocation2], 4
      %s18 = int_to_ptr.vmem [resolvable:$true] %s17
      %23 = dma.hbm_to_vmem [thread:$0]  %s1, 45056, %s18, [#allocation3], 128, 128, 8
    $region9: #{_forward.1} parent=1 // pred_fallthru
      _
    // Predicated region
    $region10: #{_forward.1} parent=1 // pred_check
      _
    $region11: #{_forward.1} parent=1 // pred_check_branch
      %25 = sbr.rel (0) target = $region13
    $region12: #{_forward.1} parent=1 // pred_region
      %s27 = ssub.s32 1920, 1920
      %28 = vsyncadd [#allocation5], %s27
      %s29 = sshll.u32 [#allocation4], 4
      %s30 = int_to_ptr.vmem [resolvable:$true] %s29
      %35 = dma.hbm_to_vmem [thread:$0]  %s2, 1920, %s30, [#allocation5], 384, 384, 24
    $region13: #{_forward.1} parent=1 // pred_fallthru
      _
    // Predicated region
    $region14: #{_forward.1} parent=1 // pred_check
      _
    $region15: #{_forward.1} parent=1 // pred_check_branch
      %37 = sbr.rel (0) target = $region17
    $region16: #{_forward.1} parent=1 // pred_region
      %38 = dma.done [#allocation3], 45056
    $region17: #{_forward.1} parent=1 // pred_fallthru
      _
    // Predicated region
    $region18: #{_forward.1} parent=1 // pred_check
      _
    $region19: #{_forward.1} parent=1 // pred_check_branch
      %40 = sbr.rel (0) target = $region21
    $region20: #{_forward.1} parent=1 // pred_region
      %41 = dma.done [#allocation5], 1920
    $region21: #{_forward.1} parent=1 // pred_fallthru
      _
    %v43 = vld [vmem:[%s0] sm:$0xff]
    %v44 = vld [vmem:[%s0 + $0x8] sm:$0xff]
    %v45 = vld [vmem:[%s0 + $0x10] sm:$0xff]
    %v46 = vld [vmem:[%s0 + $0x18] sm:$0xff]
    %47 = vxpose.xlu0.b32.start [1/16] %v43, 128
    %48 = vxpose.xlu0.b32.cont [2/16] %v44, 128
    %49 = vxpose.xlu0.b32.cont [3/16] %v45, 128
    %50 = vxpose.xlu0.b32.cont [4/16] %v46, 128
    %51 = vxpose.xlu0.b32.cont [5/16] 0.0, 128
    %52 = vxpose.xlu0.b32.cont [6/16] 0.0, 128
    %53 = vxpose.xlu0.b32.cont [7/16] 0.0, 128
    %54 = vxpose.xlu0.b32.cont [8/16] 0.0, 128
    %55 = vxpose.xlu0.b32.cont [9/16] 0.0, 128
    %56 = vxpose.xlu0.b32.cont [10/16] 0.0, 128
    %57 = vxpose.xlu0.b32.cont [11/16] 0.0, 128
    %58 = vxpose.xlu0.b32.cont [12/16] 0.0, 128
    %59 = vxpose.xlu0.b32.cont [13/16] 0.0, 128
    %60 = vxpose.xlu0.b32.cont [14/16] 0.0, 128
    %61 = vxpose.xlu0.b32.cont [15/16] 0.0, 128
    %62 = vxpose.xlu0.b32.end [16/16] 0.0, 128
    %v63 = vpop.trf.xlu0
    %v64 = vpop.trf.xlu0
    %v65 = vpop.trf.xlu0
    %v66 = vpop.trf.xlu0
    %v67 = vpop.trf.xlu0
    %v68 = vpop.trf.xlu0
    %v69 = vpop.trf.xlu0
    %v70 = vpop.trf.xlu0
    %v71 = vpop.trf.xlu0
    %v72 = vpop.trf.xlu0
    %v73 = vpop.trf.xlu0
    %v74 = vpop.trf.xlu0
    %v75 = vpop.trf.xlu0
    %v76 = vpop.trf.xlu0
    %v77 = vpop.trf.xlu0
    %v78 = vpop.trf.xlu0
    %s79 = scalar_lea.vmem %s0, 32
    %v80 = vld [vmem:[%s79] sm:$0xff]
    %v81 = vld [vmem:[%s79 + $0x8] sm:$0xff]
    %v82 = vld [vmem:[%s79 + $0x10] sm:$0xff]
    %v83 = vld [vmem:[%s79 + $0x18] sm:$0xff]
    %84 = vxpose.xlu0.b32.start [1/16] %v80, 128
    %85 = vxpose.xlu0.b32.cont [2/16] %v81, 128
    %86 = vxpose.xlu0.b32.cont [3/16] %v82, 128
    %87 = vxpose.xlu0.b32.cont [4/16] %v83, 128
    %88 = vxpose.xlu0.b32.cont [5/16] 0.0, 128
    %89 = vxpose.xlu0.b32.cont [6/16] 0.0, 128
    %90 = vxpose.xlu0.b32.cont [7/16] 0.0, 128
    %91 = vxpose.xlu0.b32.cont [8/16] 0.0, 128
    %92 = vxpose.xlu0.b32.cont [9/16] 0.0, 128
    %93 = vxpose.xlu0.b32.cont [10/16] 0.0, 128
    %94 = vxpose.xlu0.b32.cont [11/16] 0.0, 128
    %95 = vxpose.xlu0.b32.cont [12/16] 0.0, 128
    %96 = vxpose.xlu0.b32.cont [13/16] 0.0, 128
    %97 = vxpose.xlu0.b32.cont [14/16] 0.0, 128
    %98 = vxpose.xlu0.b32.cont [15/16] 0.0, 128
    %99 = vxpose.xlu0.b32.end [16/16] 0.0, 128
    %v100 = vpop.trf.xlu0
    %v101 = vpop.trf.xlu0
    %v102 = vpop.trf.xlu0
    %v103 = vpop.trf.xlu0
    %v104 = vpop.trf.xlu0
    %v105 = vpop.trf.xlu0
    %v106 = vpop.trf.xlu0
    %v107 = vpop.trf.xlu0
    %v108 = vpop.trf.xlu0
    %v109 = vpop.trf.xlu0
    %v110 = vpop.trf.xlu0
    %v111 = vpop.trf.xlu0
    %v112 = vpop.trf.xlu0
    %v113 = vpop.trf.xlu0
    %v114 = vpop.trf.xlu0
    %v115 = vpop.trf.xlu0
    %v117 = vrot.slane %v100, 4
    %vm119 = vcmask 1043456
    %v120 = vsel %vm119, %v63, %v117
    %v121 = vld [vmem:[#allocation4 + $0x60] sm:$0xff]
    %v122 = vld [vmem:[#allocation4 + $0x68] sm:$0xff]
    %v123 = vld [vmem:[#allocation4 + $0x70] sm:$0xff]
    %vm124 = vcmask 261120
    %v125 = vsel %vm124, %v120, 0.0
    %126 = vadd.xlane.f32.xlu0 %v125
    %v127 = vpop.xlane.xlu0 %126
    %v128 = vrcp.pop 32.0
    %v129 = vmul.f32 %v127, %v128
    %v130 = vsub.f32 %v120, %v129
    %v131 = vmul.f32 %v130, %v130
    %v132 = vsel %vm124, %v131, 0.0
    %133 = vadd.xlane.f32.xlu0 %v132
    %v134 = vpop.xlane.xlu0 %133
    %v135 = vmul.f32 %v134, %v128
    %v136 = vadd.f32 %v135, 1e-05
    %v137 = vrsqrt.pop %v136
    %v138 = vmul.f32 %v136, %v137
    %v139 = vmul.f32 %v137, %v121
    %141 = vset.pattern.permute.xlu0 0
    %142 = vperm.xlu0 %141, %v139
    %v143 = vpop.permute.xlu0 %142
    %v145 = vmul.f32 %v130, %v143
    %147 = vset.pattern.permute.xlu0 0
    %148 = vperm.xlu0 %147, %v122
    %v149 = vpop.permute.xlu0 %148
    %v151 = vadd.f32 %v145, %v149
    %v152 = vsel %vm124, %v151, 0.0
    %v153 = vld [vmem:[#allocation2] sm:$0xff]
    %v154 = vld [vmem:[#allocation2 + $0x8] sm:$0xff]
    %v155 = vld [vmem:[#allocation2 + $0x10] sm:$0xff]
    %v156 = vld [vmem:[#allocation2 + $0x18] sm:$0xff]
    %v157 = vld [vmem:[#allocation2 + $0x20] sm:$0xff]
    %v158 = vld [vmem:[#allocation2 + $0x28] sm:$0xff]
    %v159 = vld [vmem:[#allocation2 + $0x30] sm:$0xff]
    %v160 = vld [vmem:[#allocation2 + $0x38] sm:$0xff]
    %v161 = vld [vmem:[#allocation2 + $0x40] sm:$0xff]
    %v162 = vld [vmem:[#allocation2 + $0x48] sm:$0xff]
    %v163 = vld [vmem:[#allocation2 + $0x50] sm:$0xff]
    %v164 = vld [vmem:[#allocation2 + $0x58] sm:$0xff]
    %v165 = vld [vmem:[#allocation2 + $0x60] sm:$0xff]
    %v166 = vld [vmem:[#allocation2 + $0x68] sm:$0xff]
    %v167 = vld [vmem:[#allocation2 + $0x70] sm:$0xff]
    %v168 = vld [vmem:[#allocation2 + $0x78] sm:$0xff]
    %v169 = vld [vmem:[#allocation4] sm:$0xff]
    %v170 = vld [vmem:[#allocation4 + $0x8] sm:$0xff]
    %v171 = vpack.c.bf16 %v152, %v152
    %v188 = vunpack.c.l.b16 %v153
    %v189 = vunpack.c.h.b16 %v153
    %v190 = vunpack.c.l.b16 %v154
    %v191 = vunpack.c.h.b16 %v154
    %v192 = vunpack.c.l.b16 %v155
    %v193 = vunpack.c.h.b16 %v155
    %v194 = vunpack.c.l.b16 %v156
    %v195 = vunpack.c.h.b16 %v156
    %v196 = vunpack.c.l.b16 %v157
    %v197 = vunpack.c.h.b16 %v157
    %v198 = vunpack.c.l.b16 %v158
    %v199 = vunpack.c.h.b16 %v158
    %v200 = vunpack.c.l.b16 %v159
    %v201 = vunpack.c.h.b16 %v159
    %v202 = vunpack.c.l.b16 %v160
    %v203 = vunpack.c.h.b16 %v160
    %v204 = vunpack.c.l.b16 %v161
    %v205 = vunpack.c.h.b16 %v161
    %v206 = vunpack.c.l.b16 %v162
    %v207 = vunpack.c.h.b16 %v162
    %v208 = vunpack.c.l.b16 %v163
    %v209 = vunpack.c.h.b16 %v163
    %v210 = vunpack.c.l.b16 %v164
    %v211 = vunpack.c.h.b16 %v164
    %v212 = vunpack.c.l.b16 %v165
    %v213 = vunpack.c.h.b16 %v165
    %v214 = vunpack.c.l.b16 %v166
    %v215 = vunpack.c.h.b16 %v166
    %v216 = vunpack.c.l.b16 %v167
    %v217 = vunpack.c.h.b16 %v167
    %v218 = vunpack.c.l.b16 %v168
    %v219 = vunpack.c.h.b16 %v168
    %v220 = vpack.c.b16 %v190, %v188
    %v221 = vpack.c.b16 %v191, %v189
    %v222 = vpack.c.b16 %v194, %v192
    %v223 = vpack.c.b16 %v195, %v193
    %v224 = vpack.c.b16 %v198, %v196
    %v225 = vpack.c.b16 %v199, %v197
    %v226 = vpack.c.b16 %v202, %v200
    %v227 = vpack.c.b16 %v203, %v201
    %v228 = vpack.c.b16 %v206, %v204
    %v229 = vpack.c.b16 %v207, %v205
    %v230 = vpack.c.b16 %v210, %v208
    %v231 = vpack.c.b16 %v211, %v209
    %v232 = vpack.c.b16 %v214, %v212
    %v233 = vpack.c.b16 %v215, %v213
    %v234 = vpack.c.b16 %v218, %v216
    %v235 = vpack.c.b16 %v219, %v217
    %252 = vmatprep.subr.bf16.mxu0 %v235
    %253 = vmatpush1.bf16.msra.mxu0 %v234
    %254 = vmatprep.subr.bf16.mxu0 %v233
    %255 = vmatpush1.bf16.msra.mxu0 %v232
    %256 = vmatprep.subr.bf16.mxu0 %v231
    %257 = vmatpush1.bf16.msra.mxu0 %v230
    %258 = vmatprep.subr.bf16.mxu0 %v229
    %259 = vmatpush1.bf16.msra.mxu0 %v228
    %260 = vmatprep.subr.bf16.mxu0 %v227
    %261 = vmatpush1.bf16.msra.mxu0 %v226
    %262 = vmatprep.subr.bf16.mxu0 %v225
    %263 = vmatpush1.bf16.msra.mxu0 %v224
    %264 = vmatprep.subr.bf16.mxu0 %v223
    %265 = vmatpush1.bf16.msra.mxu0 %v222
    %266 = vmatprep.subr.bf16.mxu0 %v221
    %267 = vmatpush1.bf16.msra.mxu0 %v220
    %268 = vmatprep.subr.bf16.mxu0 0
    %269 = vmatpush2.bf16.msra.mxu0 0
    %270 = vmatprep.subr.bf16.mxu0 0
    %271 = vmatpush2.bf16.msra.mxu0 0
    %272 = vmatprep.subr.bf16.mxu0 0
    %273 = vmatpush2.bf16.msra.mxu0 0
    %274 = vmatprep.subr.bf16.mxu0 0
    %275 = vmatpush2.bf16.msra.mxu0 0
    %276 = vmatprep.subr.bf16.mxu0 0
    %277 = vmatpush2.bf16.msra.mxu0 0
    %278 = vmatprep.subr.bf16.mxu0 0
    %279 = vmatpush2.bf16.msra.mxu0 0
    %280 = vmatprep.subr.bf16.mxu0 0
    %281 = vmatpush2.bf16.msra.mxu0 0
    %282 = vmatprep.subr.bf16.mxu0 0
    %283 = vmatpush2.bf16.msra.mxu0 0
    %284 = vmatprep.mubr.bf16.mxu0 0
    %285 = vmatmul.mubr.bf16.gmra.mxu0 %v171
    %v286 = vpop.f32.mrf.mxu0
    %v287 = vadd.f32 %v169, %v286
    %v288 = vpop.f32.mrf.mxu0
    %v289 = vadd.f32 %v170, %v288
    %v290 = vpop.f32.mrf.mxu0
    %v291 = vpop.f32.mrf.mxu0
    %292 = vdwg.mxu0
    %v293 = vmax.f32 %v287, 0.0
    %v294 = vld [vmem:[#allocation2 + $0x80] sm:$0xf]
    %v295 = vld [vmem:[#allocation2 + $0x88] sm:$0xf]
    %v296 = vld [vmem:[#allocation2 + $0x90] sm:$0xf]
    %v297 = vld [vmem:[#allocation2 + $0x98] sm:$0xf]
    %v298 = vld [vmem:[#allocation2 + $0xa0] sm:$0xf]
    %v299 = vld [vmem:[#allocation2 + $0xa8] sm:$0xf]
    %v300 = vld [vmem:[#allocation2 + $0xb0] sm:$0xf]
    %v301 = vld [vmem:[#allocation2 + $0xb8] sm:$0xf]
    %v302 = vld [vmem:[#allocation2 + $0xc0] sm:$0xf]
    %v303 = vld [vmem:[#allocation2 + $0xc8] sm:$0xf]
    %v304 = vld [vmem:[#allocation2 + $0xd0] sm:$0xf]
    %v305 = vld [vmem:[#allocation2 + $0xd8] sm:$0xf]
    %v306 = vld [vmem:[#allocation2 + $0xe0] sm:$0xf]
    %v307 = vld [vmem:[#allocation2 + $0xe8] sm:$0xf]
    %v308 = vld [vmem:[#allocation2 + $0xf0] sm:$0xf]
    %v309 = vld [vmem:[#allocation2 + $0xf8] sm:$0xf]
    %v310 = vld [vmem:[#allocation4 + $0x18] sm:$0xff]
    %v311 = vpack.c.bf16 %v293, %v293
    %v328 = vunpack.c.l.b16 %v294
    %v329 = vunpack.c.l.b16 %v295
    %v330 = vunpack.c.l.b16 %v296
    %v331 = vunpack.c.l.b16 %v297
    %v332 = vunpack.c.l.b16 %v298
    %v333 = vunpack.c.l.b16 %v299
    %v334 = vunpack.c.l.b16 %v300
    %v335 = vunpack.c.l.b16 %v301
    %v336 = vunpack.c.l.b16 %v302
    %v337 = vunpack.c.l.b16 %v303
    %v338 = vunpack.c.l.b16 %v304
    %v339 = vunpack.c.l.b16 %v305
    %v340 = vunpack.c.l.b16 %v306
    %v341 = vunpack.c.l.b16 %v307
    %v342 = vunpack.c.l.b16 %v308
    %v343 = vunpack.c.l.b16 %v309
    %v344 = vpack.c.b16 %v329, %v328
    %v345 = vpack.c.b16 %v331, %v330
    %v346 = vpack.c.b16 %v333, %v332
    %v347 = vpack.c.b16 %v335, %v334
    %v348 = vpack.c.b16 %v337, %v336
    %v349 = vpack.c.b16 %v339, %v338
    %v350 = vpack.c.b16 %v341, %v340
    %v351 = vpack.c.b16 %v343, %v342
    %360 = vmatprep.subr.bf16.mxu0 0
    %361 = vmatpush1.bf16.msra.mxu0 %v351
    %362 = vmatprep.subr.bf16.mxu0 0
    %363 = vmatpush1.bf16.msra.mxu0 %v350
    %364 = vmatprep.subr.bf16.mxu0 0
    %365 = vmatpush1.bf16.msra.mxu0 %v349
    %366 = vmatprep.subr.bf16.mxu0 0
    %367 = vmatpush1.bf16.msra.mxu0 %v348
    %368 = vmatprep.subr.bf16.mxu0 0
    %369 = vmatpush1.bf16.msra.mxu0 %v347
    %370 = vmatprep.subr.bf16.mxu0 0
    %371 = vmatpush1.bf16.msra.mxu0 %v346
    %372 = vmatprep.subr.bf16.mxu0 0
    %373 = vmatpush1.bf16.msra.mxu0 %v345
    %374 = vmatprep.subr.bf16.mxu0 0
    %375 = vmatpush1.bf16.msra.mxu0 %v344
    %376 = vmatprep.subr.bf16.mxu0 0
    %377 = vmatpush2.bf16.msra.mxu0 0
    %378 = vmatprep.subr.bf16.mxu0 0
    %379 = vmatpush2.bf16.msra.mxu0 0
    %380 = vmatprep.subr.bf16.mxu0 0
    %381 = vmatpush2.bf16.msra.mxu0 0
    %382 = vmatprep.subr.bf16.mxu0 0
    %383 = vmatpush2.bf16.msra.mxu0 0
    %384 = vmatprep.subr.bf16.mxu0 0
    %385 = vmatpush2.bf16.msra.mxu0 0
    %386 = vmatprep.subr.bf16.mxu0 0
    %387 = vmatpush2.bf16.msra.mxu0 0
    %388 = vmatprep.subr.bf16.mxu0 0
    %389 = vmatpush2.bf16.msra.mxu0 0
    %390 = vmatprep.subr.bf16.mxu0 0
    %391 = vmatpush2.bf16.msra.mxu0 0
    %392 = vmatprep.mubr.bf16.mxu0 0
    %393 = vmatmul.mubr.bf16.gmra.mxu0 %v311
    %v394 = vpop.f32.mrf.mxu0
    %v395 = vadd.f32 %v310, %v394
    %v396 = vpop.f32.mrf.mxu0
    %v397 = vpop.f32.mrf.mxu0
    %v398 = vpop.f32.mrf.mxu0
    %399 = vdwg.mxu0
    %v400 = vmax.f32 %v395, 0.0
    %v401 = vadd.f32 %v400, %v289
    %v402 = vld [vmem:[#allocation2 + $0x100] sm:$0xff]
    %v403 = vld [vmem:[#allocation2 + $0x108] sm:$0xff]
    %v404 = vld [vmem:[#allocation2 + $0x110] sm:$0xff]
    %v405 = vld [vmem:[#allocation2 + $0x118] sm:$0xff]
    %v406 = vld [vmem:[#allocation2 + $0x120] sm:$0xff]
    %v407 = vld [vmem:[#allocation2 + $0x128] sm:$0xff]
    %v408 = vld [vmem:[#allocation2 + $0x130] sm:$0xff]
    %v409 = vld [vmem:[#allocation2 + $0x138] sm:$0xff]
    %v410 = vld [vmem:[#allocation2 + $0x140] sm:$0xff]
    %v411 = vld [vmem:[#allocation2 + $0x148] sm:$0xff]
    %v412 = vld [vmem:[#allocation2 + $0x150] sm:$0xff]
    %v413 = vld [vmem:[#allocation2 + $0x158] sm:$0xff]
    %v414 = vld [vmem:[#allocation2 + $0x160] sm:$0xff]
    %v415 = vld [vmem:[#allocation2 + $0x168] sm:$0xff]
    %v416 = vld [vmem:[#allocation2 + $0x170] sm:$0xff]
    %v417 = vld [vmem:[#allocation2 + $0x178] sm:$0xff]
    %v418 = vld [vmem:[#allocation4 + $0x30] sm:$0xff]
    %v419 = vld [vmem:[#allocation4 + $0x38] sm:$0xff]
    %v420 = vpack.c.bf16 %v401, %v401
    %v437 = vunpack.c.l.b16 %v402
    %v438 = vunpack.c.h.b16 %v402
    %v439 = vunpack.c.l.b16 %v403
    %v440 = vunpack.c.h.b16 %v403
    %v441 = vunpack.c.l.b16 %v404
    %v442 = vunpack.c.h.b16 %v404
    %v443 = vunpack.c.l.b16 %v405
    %v444 = vunpack.c.h.b16 %v405
    %v445 = vunpack.c.l.b16 %v406
    %v446 = vunpack.c.h.b16 %v406
    %v447 = vunpack.c.l.b16 %v407
    %v448 = vunpack.c.h.b16 %v407
    %v449 = vunpack.c.l.b16 %v408
    %v450 = vunpack.c.h.b16 %v408
    %v451 = vunpack.c.l.b16 %v409
    %v452 = vunpack.c.h.b16 %v409
    %v453 = vunpack.c.l.b16 %v410
    %v454 = vunpack.c.h.b16 %v410
    %v455 = vunpack.c.l.b16 %v411
    %v456 = vunpack.c.h.b16 %v411
    %v457 = vunpack.c.l.b16 %v412
    %v458 = vunpack.c.h.b16 %v412
    %v459 = vunpack.c.l.b16 %v413
    %v460 = vunpack.c.h.b16 %v413
    %v461 = vunpack.c.l.b16 %v414
    %v462 = vunpack.c.h.b16 %v414
    %v463 = vunpack.c.l.b16 %v415
    %v464 = vunpack.c.h.b16 %v415
    %v465 = vunpack.c.l.b16 %v416
    %v466 = vunpack.c.h.b16 %v416
    %v467 = vunpack.c.l.b16 %v417
    %v468 = vunpack.c.h.b16 %v417
    %v469 = vpack.c.b16 %v439, %v437
    %v470 = vpack.c.b16 %v440, %v438
    %v471 = vpack.c.b16 %v443, %v441
    %v472 = vpack.c.b16 %v444, %v442
    %v473 = vpack.c.b16 %v447, %v445
    %v474 = vpack.c.b16 %v448, %v446
    %v475 = vpack.c.b16 %v451, %v449
    %v476 = vpack.c.b16 %v452, %v450
    %v477 = vpack.c.b16 %v455, %v453
    %v478 = vpack.c.b16 %v456, %v454
    %v479 = vpack.c.b16 %v459, %v457
    %v480 = vpack.c.b16 %v460, %v458
    %v481 = vpack.c.b16 %v463, %v461
    %v482 = vpack.c.b16 %v464, %v462
    %v483 = vpack.c.b16 %v467, %v465
    %v484 = vpack.c.b16 %v468, %v466
    %501 = vmatprep.subr.bf16.mxu0 %v484
    %502 = vmatpush1.bf16.msra.mxu0 %v483
    %503 = vmatprep.subr.bf16.mxu0 %v482
    %504 = vmatpush1.bf16.msra.mxu0 %v481
    %505 = vmatprep.subr.bf16.mxu0 %v480
    %506 = vmatpush1.bf16.msra.mxu0 %v479
    %507 = vmatprep.subr.bf16.mxu0 %v478
    %508 = vmatpush1.bf16.msra.mxu0 %v477
    %509 = vmatprep.subr.bf16.mxu0 %v476
    %510 = vmatpush1.bf16.msra.mxu0 %v475
    %511 = vmatprep.subr.bf16.mxu0 %v474
    %512 = vmatpush1.bf16.msra.mxu0 %v473
    %513 = vmatprep.subr.bf16.mxu0 %v472
    %514 = vmatpush1.bf16.msra.mxu0 %v471
    %515 = vmatprep.subr.bf16.mxu0 %v470
    %516 = vmatpush1.bf16.msra.mxu0 %v469
    %517 = vmatprep.subr.bf16.mxu0 0
    %518 = vmatpush2.bf16.msra.mxu0 0
    %519 = vmatprep.subr.bf16.mxu0 0
    %520 = vmatpush2.bf16.msra.mxu0 0
    %521 = vmatprep.subr.bf16.mxu0 0
    %522 = vmatpush2.bf16.msra.mxu0 0
    %523 = vmatprep.subr.bf16.mxu0 0
    %524 = vmatpush2.bf16.msra.mxu0 0
    %525 = vmatprep.subr.bf16.mxu0 0
    %526 = vmatpush2.bf16.msra.mxu0 0
    %527 = vmatprep.subr.bf16.mxu0 0
    %528 = vmatpush2.bf16.msra.mxu0 0
    %529 = vmatprep.subr.bf16.mxu0 0
    %530 = vmatpush2.bf16.msra.mxu0 0
    %531 = vmatprep.subr.bf16.mxu0 0
    %532 = vmatpush2.bf16.msra.mxu0 0
    %533 = vmatprep.mubr.bf16.mxu0 0
    %534 = vmatmul.mubr.bf16.gmra.mxu0 %v420
    %v535 = vpop.f32.mrf.mxu0
    %v536 = vadd.f32 %v418, %v535
    %v537 = vpop.f32.mrf.mxu0
    %v538 = vadd.f32 %v419, %v537
    %v539 = vpop.f32.mrf.mxu0
    %v540 = vpop.f32.mrf.mxu0
    %541 = vdwg.mxu0
    %v542 = vmax.f32 %v536, 0.0
    %v543 = vld [vmem:[#allocation2 + $0x180] sm:$0xf]
    %v544 = vld [vmem:[#allocation2 + $0x188] sm:$0xf]
    %v545 = vld [vmem:[#allocation2 + $0x190] sm:$0xf]
    %v546 = vld [vmem:[#allocation2 + $0x198] sm:$0xf]
    %v547 = vld [vmem:[#allocation2 + $0x1a0] sm:$0xf]
    %v548 = vld [vmem:[#allocation2 + $0x1a8] sm:$0xf]
    %v549 = vld [vmem:[#allocation2 + $0x1b0] sm:$0xf]
    %v550 = vld [vmem:[#allocation2 + $0x1b8] sm:$0xf]
    %v551 = vld [vmem:[#allocation2 + $0x1c0] sm:$0xf]
    %v552 = vld [vmem:[#allocation2 + $0x1c8] sm:$0xf]
    %v553 = vld [vmem:[#allocation2 + $0x1d0] sm:$0xf]
    %v554 = vld [vmem:[#allocation2 + $0x1d8] sm:$0xf]
    %v555 = vld [vmem:[#allocation2 + $0x1e0] sm:$0xf]
    %v556 = vld [vmem:[#allocation2 + $0x1e8] sm:$0xf]
    %v557 = vld [vmem:[#allocation2 + $0x1f0] sm:$0xf]
    %v558 = vld [vmem:[#allocation2 + $0x1f8] sm:$0xf]
    %v559 = vld [vmem:[#allocation4 + $0x48] sm:$0xff]
    %v560 = vpack.c.bf16 %v542, %v542
    %v577 = vunpack.c.l.b16 %v543
    %v578 = vunpack.c.l.b16 %v544
    %v579 = vunpack.c.l.b16 %v545
    %v580 = vunpack.c.l.b16 %v546
    %v581 = vunpack.c.l.b16 %v547
    %v582 = vunpack.c.l.b16 %v548
    %v583 = vunpack.c.l.b16 %v549
    %v584 = vunpack.c.l.b16 %v550
    %v585 = vunpack.c.l.b16 %v551
    %v586 = vunpack.c.l.b16 %v552
    %v587 = vunpack.c.l.b16 %v553
    %v588 = vunpack.c.l.b16 %v554
    %v589 = vunpack.c.l.b16 %v555
    %v590 = vunpack.c.l.b16 %v556
    %v591 = vunpack.c.l.b16 %v557
    %v592 = vunpack.c.l.b16 %v558
    %v593 = vpack.c.b16 %v578, %v577
    %v594 = vpack.c.b16 %v580, %v579
    %v595 = vpack.c.b16 %v582, %v581
    %v596 = vpack.c.b16 %v584, %v583
    %v597 = vpack.c.b16 %v586, %v585
    %v598 = vpack.c.b16 %v588, %v587
    %v599 = vpack.c.b16 %v590, %v589
    %v600 = vpack.c.b16 %v592, %v591
    %609 = vmatprep.subr.bf16.mxu0 0
    %610 = vmatpush1.bf16.msra.mxu0 %v600
    %611 = vmatprep.subr.bf16.mxu0 0
    %612 = vmatpush1.bf16.msra.mxu0 %v599
    %613 = vmatprep.subr.bf16.mxu0 0
    %614 = vmatpush1.bf16.msra.mxu0 %v598
    %615 = vmatprep.subr.bf16.mxu0 0
    %616 = vmatpush1.bf16.msra.mxu0 %v597
    %617 = vmatprep.subr.bf16.mxu0 0
    %618 = vmatpush1.bf16.msra.mxu0 %v596
    %619 = vmatprep.subr.bf16.mxu0 0
    %620 = vmatpush1.bf16.msra.mxu0 %v595
    %621 = vmatprep.subr.bf16.mxu0 0
    %622 = vmatpush1.bf16.msra.mxu0 %v594
    %623 = vmatprep.subr.bf16.mxu0 0
    %624 = vmatpush1.bf16.msra.mxu0 %v593
    %625 = vmatprep.subr.bf16.mxu0 0
    %626 = vmatpush2.bf16.msra.mxu0 0
    %627 = vmatprep.subr.bf16.mxu0 0
    %628 = vmatpush2.bf16.msra.mxu0 0
    %629 = vmatprep.subr.bf16.mxu0 0
    %630 = vmatpush2.bf16.msra.mxu0 0
    %631 = vmatprep.subr.bf16.mxu0 0
    %632 = vmatpush2.bf16.msra.mxu0 0
    %633 = vmatprep.subr.bf16.mxu0 0
    %634 = vmatpush2.bf16.msra.mxu0 0
    %635 = vmatprep.subr.bf16.mxu0 0
    %636 = vmatpush2.bf16.msra.mxu0 0
    %637 = vmatprep.subr.bf16.mxu0 0
    %638 = vmatpush2.bf16.msra.mxu0 0
    %639 = vmatprep.subr.bf16.mxu0 0
    %640 = vmatpush2.bf16.msra.mxu0 0
    %641 = vmatprep.mubr.bf16.mxu0 0
    %642 = vmatmul.mubr.bf16.gmra.mxu0 %v560
    %v643 = vpop.f32.mrf.mxu0
    %v644 = vadd.f32 %v559, %v643
    %v645 = vpop.f32.mrf.mxu0
    %v646 = vpop.f32.mrf.mxu0
    %v647 = vpop.f32.mrf.mxu0
    %648 = vdwg.mxu0
    %v649 = vadd.f32 %v644, %v538
    %v650 = vld [vmem:[#allocation2 + $0x200] sm:$0xf]
    %v651 = vld [vmem:[#allocation2 + $0x208] sm:$0xf]
    %v652 = vld [vmem:[#allocation2 + $0x210] sm:$0xf]
    %v653 = vld [vmem:[#allocation2 + $0x218] sm:$0xf]
    %v654 = vld [vmem:[#allocation2 + $0x220] sm:$0xf]
    %v655 = vld [vmem:[#allocation2 + $0x228] sm:$0xf]
    %v656 = vld [vmem:[#allocation2 + $0x230] sm:$0xf]
    %v657 = vld [vmem:[#allocation2 + $0x238] sm:$0xf]
    %v658 = vld [vmem:[#allocation2 + $0x240] sm:$0xf]
    %v659 = vld [vmem:[#allocation2 + $0x248] sm:$0xf]
    %v660 = vld [vmem:[#allocation2 + $0x250] sm:$0xf]
    %v661 = vld [vmem:[#allocation2 + $0x258] sm:$0xf]
    %v662 = vld [vmem:[#allocation2 + $0x260] sm:$0xf]
    %v663 = vld [vmem:[#allocation2 + $0x268] sm:$0xf]
    %v664 = vld [vmem:[#allocation2 + $0x270] sm:$0xf]
    %v665 = vld [vmem:[#allocation2 + $0x278] sm:$0xf]
    %v666 = vld [vmem:[#allocation2 + $0x280] sm:$0xf]
    %v667 = vld [vmem:[#allocation2 + $0x288] sm:$0xf]
    %v668 = vld [vmem:[#allocation2 + $0x290] sm:$0xf]
    %v669 = vld [vmem:[#allocation2 + $0x298] sm:$0xf]
    %v670 = vld [vmem:[#allocation2 + $0x2a0] sm:$0xf]
    %v671 = vld [vmem:[#allocation2 + $0x2a8] sm:$0xf]
    %v672 = vld [vmem:[#allocation2 + $0x2b0] sm:$0xf]
    %v673 = vld [vmem:[#allocation2 + $0x2b8] sm:$0xf]
    %v674 = vld [vmem:[#allocation2 + $0x2c0] sm:$0xf]
    %v675 = vld [vmem:[#allocation2 + $0x2c8] sm:$0xf]
    %v676 = vld [vmem:[#allocation2 + $0x2d0] sm:$0xf]
    %v677 = vld [vmem:[#allocation2 + $0x2d8] sm:$0xf]
    %v678 = vld [vmem:[#allocation2 + $0x2e0] sm:$0xf]
    %v679 = vld [vmem:[#allocation2 + $0x2e8] sm:$0xf]
    %v680 = vld [vmem:[#allocation2 + $0x2f0] sm:$0xf]
    %v681 = vld [vmem:[#allocation2 + $0x2f8] sm:$0xf]
    %v682 = vld [vmem:[#allocation2 + $0x300] sm:$0xf]
    %v683 = vld [vmem:[#allocation2 + $0x308] sm:$0xf]
    %v684 = vld [vmem:[#allocation2 + $0x310] sm:$0xf]
    %v685 = vld [vmem:[#allocation2 + $0x318] sm:$0xf]
    %v686 = vld [vmem:[#allocation2 + $0x320] sm:$0xf]
    %v687 = vld [vmem:[#allocation2 + $0x328] sm:$0xf]
    %v688 = vld [vmem:[#allocation2 + $0x330] sm:$0xf]
    %v689 = vld [vmem:[#allocation2 + $0x338] sm:$0xf]
    %v690 = vld [vmem:[#allocation2 + $0x340] sm:$0xf]
    %v691 = vld [vmem:[#allocation2 + $0x348] sm:$0xf]
    %v692 = vld [vmem:[#allocation2 + $0x350] sm:$0xf]
    %v693 = vld [vmem:[#allocation2 + $0x358] sm:$0xf]
    %v694 = vld [vmem:[#allocation2 + $0x360] sm:$0xf]
    %v695 = vld [vmem:[#allocation2 + $0x368] sm:$0xf]
    %v696 = vld [vmem:[#allocation2 + $0x370] sm:$0xf]
    %v697 = vld [vmem:[#allocation2 + $0x378] sm:$0xf]
    %v698 = vld [vmem:[#allocation2 + $0x380] sm:$0xf]
    %v699 = vld [vmem:[#allocation2 + $0x388] sm:$0xf]
    %v700 = vld [vmem:[#allocation2 + $0x390] sm:$0xf]
    %v701 = vld [vmem:[#allocation2 + $0x398] sm:$0xf]
    %v702 = vld [vmem:[#allocation2 + $0x3a0] sm:$0xf]
    %v703 = vld [vmem:[#allocation2 + $0x3a8] sm:$0xf]
    %v704 = vld [vmem:[#allocation2 + $0x3b0] sm:$0xf]
    %v705 = vld [vmem:[#allocation2 + $0x3b8] sm:$0xf]
    %v706 = vld [vmem:[#allocation2 + $0x3c0] sm:$0xf]
    %v707 = vld [vmem:[#allocation2 + $0x3c8] sm:$0xf]
    %v708 = vld [vmem:[#allocation2 + $0x3d0] sm:$0xf]
    %v709 = vld [vmem:[#allocation2 + $0x3d8] sm:$0xf]
    %v710 = vld [vmem:[#allocation2 + $0x3e0] sm:$0xf]
    %v711 = vld [vmem:[#allocation2 + $0x3e8] sm:$0xf]
    %v712 = vld [vmem:[#allocation2 + $0x3f0] sm:$0xf]
    %v713 = vld [vmem:[#allocation2 + $0x3f8] sm:$0xf]
    %v714 = vld [vmem:[#allocation2 + $0x400] sm:$0xf]
    %v715 = vld [vmem:[#allocation2 + $0x408] sm:$0xf]
    %v716 = vld [vmem:[#allocation2 + $0x410] sm:$0xf]
    %v717 = vld [vmem:[#allocation2 + $0x418] sm:$0xf]
    %v718 = vld [vmem:[#allocation2 + $0x420] sm:$0xf]
    %v719 = vld [vmem:[#allocation2 + $0x428] sm:$0xf]
    %v720 = vld [vmem:[#allocation2 + $0x430] sm:$0xf]
    %v721 = vld [vmem:[#allocation2 + $0x438] sm:$0xf]
    %v722 = vld [vmem:[#allocation2 + $0x440] sm:$0xf]
    %v723 = vld [vmem:[#allocation2 + $0x448] sm:$0xf]
    %v724 = vld [vmem:[#allocation2 + $0x450] sm:$0xf]
    %v725 = vld [vmem:[#allocation2 + $0x458] sm:$0xf]
    %v726 = vld [vmem:[#allocation2 + $0x460] sm:$0xf]
    %v727 = vld [vmem:[#allocation2 + $0x468] sm:$0xf]
    %v728 = vld [vmem:[#allocation2 + $0x470] sm:$0xf]
    %v729 = vld [vmem:[#allocation2 + $0x478] sm:$0xf]
    %v730 = vld [vmem:[#allocation2 + $0x480] sm:$0xf]
    %v731 = vld [vmem:[#allocation2 + $0x488] sm:$0xf]
    %v732 = vld [vmem:[#allocation2 + $0x490] sm:$0xf]
    %v733 = vld [vmem:[#allocation2 + $0x498] sm:$0xf]
    %v734 = vld [vmem:[#allocation2 + $0x4a0] sm:$0xf]
    %v735 = vld [vmem:[#allocation2 + $0x4a8] sm:$0xf]
    %v736 = vld [vmem:[#allocation2 + $0x4b0] sm:$0xf]
    %v737 = vld [vmem:[#allocation2 + $0x4b8] sm:$0xf]
    %v738 = vld [vmem:[#allocation2 + $0x4c0] sm:$0xf]
    %v739 = vld [vmem:[#allocation2 + $0x4c8] sm:$0xf]
    %v740 = vld [vmem:[#allocation2 + $0x4d0] sm:$0xf]
    %v741 = vld [vmem:[#allocation2 + $0x4d8] sm:$0xf]
    %v742 = vld [vmem:[#allocation2 + $0x4e0] sm:$0xf]
    %v743 = vld [vmem:[#allocation2 + $0x4e8] sm:$0xf]
    %v744 = vld [vmem:[#allocation2 + $0x4f0] sm:$0xf]
    %v745 = vld [vmem:[#allocation2 + $0x4f8] sm:$0xf]
    %v746 = vld [vmem:[#allocation2 + $0x500] sm:$0xf]
    %v747 = vld [vmem:[#allocation2 + $0x508] sm:$0xf]
    %v748 = vld [vmem:[#allocation2 + $0x510] sm:$0xf]
    %v749 = vld [vmem:[#allocation2 + $0x518] sm:$0xf]
    %v750 = vld [vmem:[#allocation2 + $0x520] sm:$0xf]
    %v751 = vld [vmem:[#allocation2 + $0x528] sm:$0xf]
    %v752 = vld [vmem:[#allocation2 + $0x530] sm:$0xf]
    %v753 = vld [vmem:[#allocation2 + $0x538] sm:$0xf]
    %v754 = vld [vmem:[#allocation2 + $0x540] sm:$0xf]
    %v755 = vld [vmem:[#allocation2 + $0x548] sm:$0xf]
    %v756 = vld [vmem:[#allocation2 + $0x550] sm:$0xf]
    %v757 = vld [vmem:[#allocation2 + $0x558] sm:$0xf]
    %v758 = vld [vmem:[#allocation2 + $0x560] sm:$0xf]
    %v759 = vld [vmem:[#allocation2 + $0x568] sm:$0xf]
    %v760 = vld [vmem:[#allocation2 + $0x570] sm:$0xf]
    %v761 = vld [vmem:[#allocation2 + $0x578] sm:$0xf]
    %v762 = vld [vmem:[#allocation2 + $0x580] sm:$0xf]
    %v763 = vld [vmem:[#allocation2 + $0x588] sm:$0xf]
    %v764 = vld [vmem:[#allocation2 + $0x590] sm:$0xf]
    %v765 = vld [vmem:[#allocation2 + $0x598] sm:$0xf]
    %v766 = vld [vmem:[#allocation2 + $0x5a0] sm:$0xf]
    %v767 = vld [vmem:[#allocation2 + $0x5a8] sm:$0xf]
    %v768 = vld [vmem:[#allocation2 + $0x5b0] sm:$0xf]
    %v769 = vld [vmem:[#allocation2 + $0x5b8] sm:$0xf]
    %v770 = vld [vmem:[#allocation2 + $0x5c0] sm:$0xf]
    %v771 = vld [vmem:[#allocation2 + $0x5c8] sm:$0xf]
    %v772 = vld [vmem:[#allocation2 + $0x5d0] sm:$0xf]
    %v773 = vld [vmem:[#allocation2 + $0x5d8] sm:$0xf]
    %v774 = vld [vmem:[#allocation2 + $0x5e0] sm:$0xf]
    %v775 = vld [vmem:[#allocation2 + $0x5e8] sm:$0xf]
    %v776 = vld [vmem:[#allocation2 + $0x5f0] sm:$0xf]
    %v777 = vld [vmem:[#allocation2 + $0x5f8] sm:$0xf]
    %v778 = vld [vmem:[#allocation2 + $0x600] sm:$0xf]
    %v779 = vld [vmem:[#allocation2 + $0x608] sm:$0xf]
    %v780 = vld [vmem:[#allocation2 + $0x610] sm:$0xf]
    %v781 = vld [vmem:[#allocation2 + $0x618] sm:$0xf]
    %v782 = vld [vmem:[#allocation2 + $0x620] sm:$0xf]
    %v783 = vld [vmem:[#allocation2 + $0x628] sm:$0xf]
    %v784 = vld [vmem:[#allocation2 + $0x630] sm:$0xf]
    %v785 = vld [vmem:[#allocation2 + $0x638] sm:$0xf]
    %v786 = vld [vmem:[#allocation2 + $0x640] sm:$0xf]
    %v787 = vld [vmem:[#allocation2 + $0x648] sm:$0xf]
    %v788 = vld [vmem:[#allocation2 + $0x650] sm:$0xf]
    %v789 = vld [vmem:[#allocation2 + $0x658] sm:$0xf]
    %v790 = vld [vmem:[#allocation2 + $0x660] sm:$0xf]
    %v791 = vld [vmem:[#allocation2 + $0x668] sm:$0xf]
    %v792 = vld [vmem:[#allocation2 + $0x670] sm:$0xf]
    %v793 = vld [vmem:[#allocation2 + $0x678] sm:$0xf]
    %vm794 = vcmp.ge.f32.partialorder %v649, -2.2
    %v795 = vsel %vm794, 1, 0
    %v796 = vcvt.s32.f32 %v795
    %vm797 = vcmp.ge.f32.partialorder %v649, -1.8
    %v798 = vsel %vm797, 1, 0
    %v799 = vcvt.s32.f32 %v798
    %vm800 = vcmp.ge.f32.partialorder %v649, -1.4
    %v801 = vsel %vm800, 1, 0
    %v802 = vcvt.s32.f32 %v801
    %vm803 = vcmp.ge.f32.partialorder %v649, -1.0
    %v804 = vsel %vm803, 1, 0
    %v805 = vcvt.s32.f32 %v804
    %vm806 = vcmp.ge.f32.partialorder %v649, -0.6
    %v807 = vsel %vm806, 1, 0
    %v808 = vcvt.s32.f32 %v807
    %vm809 = vcmp.ge.f32.partialorder %v649, -0.2
    %v810 = vsel %vm809, 1, 0
    %v811 = vcvt.s32.f32 %v810
    %vm812 = vcmp.ge.f32.partialorder %v649, 0.2
    %v813 = vsel %vm812, 1, 0
    %v814 = vcvt.s32.f32 %v813
    %vm815 = vcmp.ge.f32.partialorder %v649, 0.6
    %v816 = vsel %vm815, 1, 0
    %v817 = vcvt.s32.f32 %v816
    %vm818 = vcmp.ge.f32.partialorder %v649, 1.0
    %v819 = vsel %vm818, 1, 0
    %v820 = vcvt.s32.f32 %v819
    %vm821 = vcmp.ge.f32.partialorder %v649, 1.4
    %v822 = vsel %vm821, 1, 0
    %v823 = vcvt.s32.f32 %v822
    %vm824 = vcmp.ge.f32.partialorder %v649, 1.8
    %v825 = vsel %vm824, 1, 0
    %v826 = vcvt.s32.f32 %v825
    %vm827 = vcmp.ge.f32.partialorder %v649, 2.2
    %v828 = vsel %vm827, 1, 0
    %v829 = vcvt.s32.f32 %v828
    %v830 = vsub.f32 %v796, %v799
    %v831 = vsub.f32 %v799, %v802
    %v832 = vsub.f32 %v802, %v805
    %v833 = vsub.f32 %v805, %v808
    %v834 = vsub.f32 %v808, %v811
    %v835 = vsub.f32 %v811, %v814
    %v836 = vsub.f32 %v814, %v817
    %v837 = vsub.f32 %v817, %v820
    %v838 = vsub.f32 %v820, %v823
    %v839 = vsub.f32 %v823, %v826
    %v840 = vsub.f32 %v826, %v829
    %v841 = vsub.f32 %v649, -2.2
    %v842 = vmul.f32 %v841, 2.5
    %v843 = vmul.f32 %v842, %v830
    %v844 = vsub.f32 -1.4, %v649
    %v845 = vmul.f32 %v844, 2.5
    %v846 = vmul.f32 %v845, %v831
    %v847 = vadd.f32 %v843, %v846
    %v848 = vsub.f32 %v649, -1.8
    %v849 = vmul.f32 %v848, 2.5
    %v850 = vmul.f32 %v849, %v831
    %v851 = vsub.f32 -1.0, %v649
    %v852 = vmul.f32 %v851, 2.5
    %v853 = vmul.f32 %v852, %v832
    %v854 = vadd.f32 %v850, %v853
    %v855 = vsub.f32 %v649, -1.4
    %v856 = vmul.f32 %v855, 2.5
    %v857 = vmul.f32 %v856, %v832
    %v858 = vsub.f32 -0.6, %v649
    %v859 = vmul.f32 %v858, 2.5
    %v860 = vmul.f32 %v859, %v833
    %v861 = vadd.f32 %v857, %v860
    %v862 = vsub.f32 %v649, -1.0
    %v863 = vmul.f32 %v862, 2.5
    %v864 = vmul.f32 %v863, %v833
    %v865 = vsub.f32 -0.2, %v649
    %v866 = vmul.f32 %v865, 2.5
    %v867 = vmul.f32 %v866, %v834
    %v868 = vadd.f32 %v864, %v867
    %v869 = vsub.f32 %v649, -0.6
    %v870 = vmul.f32 %v869, 2.5
    %v871 = vmul.f32 %v870, %v834
    %v872 = vsub.f32 0.2, %v649
    %v873 = vmul.f32 %v872, 2.5
    %v874 = vmul.f32 %v873, %v835
    %v875 = vadd.f32 %v871, %v874
    %v876 = vsub.f32 %v649, -0.2
    %v877 = vmul.f32 %v876, 2.5
    %v878 = vmul.f32 %v877, %v835
    %v879 = vsub.f32 0.6, %v649
    %v880 = vmul.f32 %v879, 2.5
    %v881 = vmul.f32 %v880, %v836
    %v882 = vadd.f32 %v878, %v881
    %v883 = vsub.f32 %v649, 0.2
    %v884 = vmul.f32 %v883, 2.5
    %v885 = vmul.f32 %v884, %v836
    %v886 = vsub.f32 1.0, %v649
    %v887 = vmul.f32 %v886, 2.5
    %v888 = vmul.f32 %v887, %v837
    %v889 = vadd.f32 %v885, %v888
    %v890 = vsub.f32 %v649, 0.6
    %v891 = vmul.f32 %v890, 2.5
    %v892 = vmul.f32 %v891, %v837
    %v893 = vsub.f32 1.4, %v649
    %v894 = vmul.f32 %v893, 2.5
    %v895 = vmul.f32 %v894, %v838
    %v896 = vadd.f32 %v892, %v895
    %v897 = vsub.f32 %v649, 1.0
    %v898 = vmul.f32 %v897, 2.5
    %v899 = vmul.f32 %v898, %v838
    %v900 = vsub.f32 1.8, %v649
    %v901 = vmul.f32 %v900, 2.5
    %v902 = vmul.f32 %v901, %v839
    %v903 = vadd.f32 %v899, %v902
    %v904 = vsub.f32 %v649, 1.4
    %v905 = vmul.f32 %v904, 2.5
    %v906 = vmul.f32 %v905, %v839
    %v907 = vsub.f32 2.2, %v649
    %v908 = vmul.f32 %v907, 2.5
    %v909 = vmul.f32 %v908, %v840
    %v910 = vadd.f32 %v906, %v909
    %v911 = vmul.f32 %v841, 1.25
    %v912 = vmul.f32 %v911, %v847
    %v913 = vmul.f32 %v851, 1.25
    %v914 = vmul.f32 %v913, %v854
    %v915 = vadd.f32 %v912, %v914
    %v916 = vmul.f32 %v848, 1.25
    %v917 = vmul.f32 %v916, %v854
    %v918 = vmul.f32 %v858, 1.25
    %v919 = vmul.f32 %v918, %v861
    %v920 = vadd.f32 %v917, %v919
    %v921 = vmul.f32 %v855, 1.25
    %v922 = vmul.f32 %v921, %v861
    %v923 = vmul.f32 %v865, 1.25
    %v924 = vmul.f32 %v923, %v868
    %v925 = vadd.f32 %v922, %v924
    %v926 = vmul.f32 %v862, 1.25
    %v927 = vmul.f32 %v926, %v868
    %v928 = vmul.f32 %v872, 1.25
    %v929 = vmul.f32 %v928, %v875
    %v930 = vadd.f32 %v927, %v929
    %v931 = vmul.f32 %v869, 1.25
    %v932 = vmul.f32 %v931, %v875
    %v933 = vmul.f32 %v879, 1.25
    %v934 = vmul.f32 %v933, %v882
    %v935 = vadd.f32 %v932, %v934
    %v936 = vmul.f32 %v876, 1.25
    %v937 = vmul.f32 %v936, %v882
    %v938 = vmul.f32 %v886, 1.25
    %v939 = vmul.f32 %v938, %v889
    %v940 = vadd.f32 %v937, %v939
    %v941 = vmul.f32 %v883, 1.25
    %v942 = vmul.f32 %v941, %v889
    %v943 = vmul.f32 %v893, 1.25
    %v944 = vmul.f32 %v943, %v896
    %v945 = vadd.f32 %v942, %v944
    %v946 = vmul.f32 %v890, 1.25
    %v947 = vmul.f32 %v946, %v896
    %v948 = vmul.f32 %v900, 1.25
    %v949 = vmul.f32 %v948, %v903
    %v950 = vadd.f32 %v947, %v949
    %v951 = vmul.f32 %v897, 1.25
    %v952 = vmul.f32 %v951, %v903
    %v953 = vmul.f32 %v907, 1.25
    %v954 = vmul.f32 %v953, %v910
    %v955 = vadd.f32 %v952, %v954
    %v956 = vmul.f32 %v841, 0.8333333
    %v957 = vmul.f32 %v956, %v915
    %v958 = vmul.f32 %v858, 0.8333333
    %v959 = vmul.f32 %v958, %v920
    %v960 = vadd.f32 %v957, %v959
    %v961 = vmul.f32 %v848, 0.8333333
    %v962 = vmul.f32 %v961, %v920
    %v963 = vmul.f32 %v865, 0.8333333
    %v964 = vmul.f32 %v963, %v925
    %v965 = vadd.f32 %v962, %v964
    %v966 = vmul.f32 %v855, 0.8333333
    %v967 = vmul.f32 %v966, %v925
    %v968 = vmul.f32 %v872, 0.8333333
    %v969 = vmul.f32 %v968, %v930
    %v970 = vadd.f32 %v967, %v969
    %v971 = vmul.f32 %v862, 0.8333333
    %v972 = vmul.f32 %v971, %v930
    %v973 = vmul.f32 %v879, 0.8333333
    %v974 = vmul.f32 %v973, %v935
    %v975 = vadd.f32 %v972, %v974
    %v976 = vmul.f32 %v869, 0.8333333
    %v977 = vmul.f32 %v976, %v935
    %v978 = vmul.f32 %v886, 0.8333333
    %v979 = vmul.f32 %v978, %v940
    %v980 = vadd.f32 %v977, %v979
    %v981 = vmul.f32 %v876, 0.8333333
    %v982 = vmul.f32 %v981, %v940
    %v983 = vmul.f32 %v893, 0.8333333
    %v984 = vmul.f32 %v983, %v945
    %v985 = vadd.f32 %v982, %v984
    %v986 = vmul.f32 %v883, 0.8333333
    %v987 = vmul.f32 %v986, %v945
    %v988 = vmul.f32 %v900, 0.8333333
    %v989 = vmul.f32 %v988, %v950
    %v990 = vadd.f32 %v987, %v989
    %v991 = vmul.f32 %v890, 0.8333333
    %v992 = vmul.f32 %v991, %v950
    %v993 = vmul.f32 %v907, 0.8333333
    %v994 = vmul.f32 %v993, %v955
    %v995 = vadd.f32 %v992, %v994
    %v996 = vxor.u32 %v649, 2147483648
    %v997 = vmul.f32 %v996, 1.442695
    %v998 = vpow.pop %v997
    %v999 = vadd.f32 %v998, 1.0
    %v1000 = vrcp.pop %v999
    %v1001 = vmul.f32 1.0, %v1000
    %v1002 = vmul.f32 %v649, %v1001
    %v1003 = vpack.c.bf16 %v1002, %v1002
    %v1004 = vpack.c.bf16 %v960, %v960
    %v1005 = vpack.c.bf16 %v965, %v965
    %v1006 = vpack.c.bf16 %v970, %v970
    %v1007 = vpack.c.bf16 %v975, %v975
    %v1008 = vpack.c.bf16 %v980, %v980
    %v1009 = vpack.c.bf16 %v985, %v985
    %v1010 = vpack.c.bf16 %v990, %v990
    %v1011 = vpack.c.bf16 %v995, %v995
    %v1156 = vunpack.c.l.b16 %v650
    %v1157 = vunpack.c.l.b16 %v651
    %v1158 = vunpack.c.l.b16 %v652
    %v1159 = vunpack.c.l.b16 %v653
    %v1160 = vunpack.c.l.b16 %v654
    %v1161 = vunpack.c.l.b16 %v655
    %v1162 = vunpack.c.l.b16 %v656
    %v1163 = vunpack.c.l.b16 %v657
    %v1164 = vunpack.c.l.b16 %v658
    %v1165 = vunpack.c.l.b16 %v659
    %v1166 = vunpack.c.l.b16 %v660
    %v1167 = vunpack.c.l.b16 %v661
    %v1168 = vunpack.c.l.b16 %v662
    %v1169 = vunpack.c.l.b16 %v663
    %v1170 = vunpack.c.l.b16 %v664
    %v1171 = vunpack.c.l.b16 %v665
    %v1172 = vunpack.c.l.b16 %v666
    %v1173 = vunpack.c.l.b16 %v667
    %v1174 = vunpack.c.l.b16 %v668
    %v1175 = vunpack.c.l.b16 %v669
    %v1176 = vunpack.c.l.b16 %v670
    %v1177 = vunpack.c.l.b16 %v671
    %v1178 = vunpack.c.l.b16 %v672
    %v1179 = vunpack.c.l.b16 %v673
    %v1180 = vunpack.c.l.b16 %v674
    %v1181 = vunpack.c.l.b16 %v675
    %v1182 = vunpack.c.l.b16 %v676
    %v1183 = vunpack.c.l.b16 %v677
    %v1184 = vunpack.c.l.b16 %v678
    %v1185 = vunpack.c.l.b16 %v679
    %v1186 = vunpack.c.l.b16 %v680
    %v1187 = vunpack.c.l.b16 %v681
    %v1188 = vunpack.c.l.b16 %v682
    %v1189 = vunpack.c.l.b16 %v683
    %v1190 = vunpack.c.l.b16 %v684
    %v1191 = vunpack.c.l.b16 %v685
    %v1192 = vunpack.c.l.b16 %v686
    %v1193 = vunpack.c.l.b16 %v687
    %v1194 = vunpack.c.l.b16 %v688
    %v1195 = vunpack.c.l.b16 %v689
    %v1196 = vunpack.c.l.b16 %v690
    %v1197 = vunpack.c.l.b16 %v691
    %v1198 = vunpack.c.l.b16 %v692
    %v1199 = vunpack.c.l.b16 %v693
    %v1200 = vunpack.c.l.b16 %v694
    %v1201 = vunpack.c.l.b16 %v695
    %v1202 = vunpack.c.l.b16 %v696
    %v1203 = vunpack.c.l.b16 %v697
    %v1204 = vunpack.c.l.b16 %v698
    %v1205 = vunpack.c.l.b16 %v699
    %v1206 = vunpack.c.l.b16 %v700
    %v1207 = vunpack.c.l.b16 %v701
    %v1208 = vunpack.c.l.b16 %v702
    %v1209 = vunpack.c.l.b16 %v703
    %v1210 = vunpack.c.l.b16 %v704
    %v1211 = vunpack.c.l.b16 %v705
    %v1212 = vunpack.c.l.b16 %v706
    %v1213 = vunpack.c.l.b16 %v707
    %v1214 = vunpack.c.l.b16 %v708
    %v1215 = vunpack.c.l.b16 %v709
    %v1216 = vunpack.c.l.b16 %v710
    %v1217 = vunpack.c.l.b16 %v711
    %v1218 = vunpack.c.l.b16 %v712
    %v1219 = vunpack.c.l.b16 %v713
    %v1220 = vunpack.c.l.b16 %v714
    %v1221 = vunpack.c.l.b16 %v715
    %v1222 = vunpack.c.l.b16 %v716
    %v1223 = vunpack.c.l.b16 %v717
    %v1224 = vunpack.c.l.b16 %v718
    %v1225 = vunpack.c.l.b16 %v719
    %v1226 = vunpack.c.l.b16 %v720
    %v1227 = vunpack.c.l.b16 %v721
    %v1228 = vunpack.c.l.b16 %v722
    %v1229 = vunpack.c.l.b16 %v723
    %v1230 = vunpack.c.l.b16 %v724
    %v1231 = vunpack.c.l.b16 %v725
    %v1232 = vunpack.c.l.b16 %v726
    %v1233 = vunpack.c.l.b16 %v727
    %v1234 = vunpack.c.l.b16 %v728
    %v1235 = vunpack.c.l.b16 %v729
    %v1236 = vunpack.c.l.b16 %v730
    %v1237 = vunpack.c.l.b16 %v731
    %v1238 = vunpack.c.l.b16 %v732
    %v1239 = vunpack.c.l.b16 %v733
    %v1240 = vunpack.c.l.b16 %v734
    %v1241 = vunpack.c.l.b16 %v735
    %v1242 = vunpack.c.l.b16 %v736
    %v1243 = vunpack.c.l.b16 %v737
    %v1244 = vunpack.c.l.b16 %v738
    %v1245 = vunpack.c.l.b16 %v739
    %v1246 = vunpack.c.l.b16 %v740
    %v1247 = vunpack.c.l.b16 %v741
    %v1248 = vunpack.c.l.b16 %v742
    %v1249 = vunpack.c.l.b16 %v743
    %v1250 = vunpack.c.l.b16 %v744
    %v1251 = vunpack.c.l.b16 %v745
    %v1252 = vunpack.c.l.b16 %v746
    %v1253 = vunpack.c.l.b16 %v747
    %v1254 = vunpack.c.l.b16 %v748
    %v1255 = vunpack.c.l.b16 %v749
    %v1256 = vunpack.c.l.b16 %v750
    %v1257 = vunpack.c.l.b16 %v751
    %v1258 = vunpack.c.l.b16 %v752
    %v1259 = vunpack.c.l.b16 %v753
    %v1260 = vunpack.c.l.b16 %v754
    %v1261 = vunpack.c.l.b16 %v755
    %v1262 = vunpack.c.l.b16 %v756
    %v1263 = vunpack.c.l.b16 %v757
    %v1264 = vunpack.c.l.b16 %v758
    %v1265 = vunpack.c.l.b16 %v759
    %v1266 = vunpack.c.l.b16 %v760
    %v1267 = vunpack.c.l.b16 %v761
    %v1268 = vunpack.c.l.b16 %v762
    %v1269 = vunpack.c.l.b16 %v763
    %v1270 = vunpack.c.l.b16 %v764
    %v1271 = vunpack.c.l.b16 %v765
    %v1272 = vunpack.c.l.b16 %v766
    %v1273 = vunpack.c.l.b16 %v767
    %v1274 = vunpack.c.l.b16 %v768
    %v1275 = vunpack.c.l.b16 %v769
    %v1276 = vunpack.c.l.b16 %v770
    %v1277 = vunpack.c.l.b16 %v771
    %v1278 = vunpack.c.l.b16 %v772
    %v1279 = vunpack.c.l.b16 %v773
    %v1280 = vunpack.c.l.b16 %v774
    %v1281 = vunpack.c.l.b16 %v775
    %v1282 = vunpack.c.l.b16 %v776
    %v1283 = vunpack.c.l.b16 %v777
    %v1284 = vunpack.c.l.b16 %v778
    %v1285 = vunpack.c.l.b16 %v779
    %v1286 = vunpack.c.l.b16 %v780
    %v1287 = vunpack.c.l.b16 %v781
    %v1288 = vunpack.c.l.b16 %v782
    %v1289 = vunpack.c.l.b16 %v783
    %v1290 = vunpack.c.l.b16 %v784
    %v1291 = vunpack.c.l.b16 %v785
    %v1292 = vunpack.c.l.b16 %v786
    %v1293 = vunpack.c.l.b16 %v787
    %v1294 = vunpack.c.l.b16 %v788
    %v1295 = vunpack.c.l.b16 %v789
    %v1296 = vunpack.c.l.b16 %v790
    %v1297 = vunpack.c.l.b16 %v791
    %v1298 = vunpack.c.l.b16 %v792
    %v1299 = vunpack.c.l.b16 %v793
    %v1300 = vpack.c.b16 %v1157, %v1156
    %v1301 = vpack.c.b16 %v1159, %v1158
    %v1302 = vpack.c.b16 %v1161, %v1160
    %v1303 = vpack.c.b16 %v1163, %v1162
    %v1304 = vpack.c.b16 %v1165, %v1164
    %v1305 = vpack.c.b16 %v1167, %v1166
    %v1306 = vpack.c.b16 %v1169, %v1168
    %v1307 = vpack.c.b16 %v1171, %v1170
    %v1308 = vpack.c.b16 %v1173, %v1172
    %v1309 = vpack.c.b16 %v1175, %v1174
    %v1310 = vpack.c.b16 %v1177, %v1176
    %v1311 = vpack.c.b16 %v1179, %v1178
    %v1312 = vpack.c.b16 %v1181, %v1180
    %v1313 = vpack.c.b16 %v1183, %v1182
    %v1314 = vpack.c.b16 %v1185, %v1184
    %v1315 = vpack.c.b16 %v1187, %v1186
    %v1316 = vpack.c.b16 %v1189, %v1188
    %v1317 = vpack.c.b16 %v1191, %v1190
    %v1318 = vpack.c.b16 %v1193, %v1192
    %v1319 = vpack.c.b16 %v1195, %v1194
    %v1320 = vpack.c.b16 %v1197, %v1196
    %v1321 = vpack.c.b16 %v1199, %v1198
    %v1322 = vpack.c.b16 %v1201, %v1200
    %v1323 = vpack.c.b16 %v1203, %v1202
    %v1324 = vpack.c.b16 %v1205, %v1204
    %v1325 = vpack.c.b16 %v1207, %v1206
    %v1326 = vpack.c.b16 %v1209, %v1208
    %v1327 = vpack.c.b16 %v1211, %v1210
    %v1328 = vpack.c.b16 %v1213, %v1212
    %v1329 = vpack.c.b16 %v1215, %v1214
    %v1330 = vpack.c.b16 %v1217, %v1216
    %v1331 = vpack.c.b16 %v1219, %v1218
    %v1332 = vpack.c.b16 %v1221, %v1220
    %v1333 = vpack.c.b16 %v1223, %v1222
    %v1334 = vpack.c.b16 %v1225, %v1224
    %v1335 = vpack.c.b16 %v1227, %v1226
    %v1336 = vpack.c.b16 %v1229, %v1228
    %v1337 = vpack.c.b16 %v1231, %v1230
    %v1338 = vpack.c.b16 %v1233, %v1232
    %v1339 = vpack.c.b16 %v1235, %v1234
    %v1340 = vpack.c.b16 %v1237, %v1236
    %v1341 = vpack.c.b16 %v1239, %v1238
    %v1342 = vpack.c.b16 %v1241, %v1240
    %v1343 = vpack.c.b16 %v1243, %v1242
    %v1344 = vpack.c.b16 %v1245, %v1244
    %v1345 = vpack.c.b16 %v1247, %v1246
    %v1346 = vpack.c.b16 %v1249, %v1248
    %v1347 = vpack.c.b16 %v1251, %v1250
    %v1348 = vpack.c.b16 %v1253, %v1252
    %v1349 = vpack.c.b16 %v1255, %v1254
    %v1350 = vpack.c.b16 %v1257, %v1256
    %v1351 = vpack.c.b16 %v1259, %v1258
    %v1352 = vpack.c.b16 %v1261, %v1260
    %v1353 = vpack.c.b16 %v1263, %v1262
    %v1354 = vpack.c.b16 %v1265, %v1264
    %v1355 = vpack.c.b16 %v1267, %v1266
    %v1356 = vpack.c.b16 %v1269, %v1268
    %v1357 = vpack.c.b16 %v1271, %v1270
    %v1358 = vpack.c.b16 %v1273, %v1272
    %v1359 = vpack.c.b16 %v1275, %v1274
    %v1360 = vpack.c.b16 %v1277, %v1276
    %v1361 = vpack.c.b16 %v1279, %v1278
    %v1362 = vpack.c.b16 %v1281, %v1280
    %v1363 = vpack.c.b16 %v1283, %v1282
    %v1364 = vpack.c.b16 %v1285, %v1284
    %v1365 = vpack.c.b16 %v1287, %v1286
    %v1366 = vpack.c.b16 %v1289, %v1288
    %v1367 = vpack.c.b16 %v1291, %v1290
    %v1368 = vpack.c.b16 %v1293, %v1292
    %v1369 = vpack.c.b16 %v1295, %v1294
    %v1370 = vpack.c.b16 %v1297, %v1296
    %v1371 = vpack.c.b16 %v1299, %v1298
    %1444 = vmatprep.subr.bf16.mxu0 0
    %1445 = vmatpush1.bf16.msra.mxu0 %v1307
    %1446 = vmatprep.subr.bf16.mxu0 0
    %1447 = vmatpush1.bf16.msra.mxu0 %v1306
    %1448 = vmatprep.subr.bf16.mxu0 0
    %1449 = vmatpush1.bf16.msra.mxu0 %v1305
    %1450 = vmatprep.subr.bf16.mxu0 0
    %1451 = vmatpush1.bf16.msra.mxu0 %v1304
    %1452 = vmatprep.subr.bf16.mxu0 0
    %1453 = vmatpush1.bf16.msra.mxu0 %v1303
    %1454 = vmatprep.subr.bf16.mxu0 0
    %1455 = vmatpush1.bf16.msra.mxu0 %v1302
    %1456 = vmatprep.subr.bf16.mxu0 0
    %1457 = vmatpush1.bf16.msra.mxu0 %v1301
    %1458 = vmatprep.subr.bf16.mxu0 0
    %1459 = vmatpush1.bf16.msra.mxu0 %v1300
    %1460 = vmatprep.subr.bf16.mxu0 0
    %1461 = vmatpush2.bf16.msra.mxu0 %v1315
    %1462 = vmatprep.subr.bf16.mxu0 0
    %1463 = vmatpush2.bf16.msra.mxu0 %v1314
    %1464 = vmatprep.subr.bf16.mxu0 0
    %1465 = vmatpush2.bf16.msra.mxu0 %v1313
    %1466 = vmatprep.subr.bf16.mxu0 0
    %1467 = vmatpush2.bf16.msra.mxu0 %v1312
    %1468 = vmatprep.subr.bf16.mxu0 0
    %1469 = vmatpush2.bf16.msra.mxu0 %v1311
    %1470 = vmatprep.subr.bf16.mxu0 0
    %1471 = vmatpush2.bf16.msra.mxu0 %v1310
    %1472 = vmatprep.subr.bf16.mxu0 0
    %1473 = vmatpush2.bf16.msra.mxu0 %v1309
    %1474 = vmatprep.subr.bf16.mxu0 0
    %1475 = vmatpush2.bf16.msra.mxu0 %v1308
    %1476 = vmatprep.mubr.bf16.mxu0 %v1004
    %1477 = vmatmul.mubr.bf16.gmra.mxu0 %v1003
    %v1478 = vpop.f32.mrf.mxu0
    %v1479 = vadd.f32 0.0, %v1478
    %v1480 = vpop.f32.mrf.mxu0
    %v1481 = vpop.f32.mrf.mxu0
    %v1482 = vpop.f32.mrf.mxu0
    %1483 = vdwg.mxu0
    %1484 = vmatprep.subr.bf16.mxu0 0
    %1485 = vmatpush1.bf16.msra.mxu0 %v1323
    %1486 = vmatprep.subr.bf16.mxu0 0
    %1487 = vmatpush1.bf16.msra.mxu0 %v1322
    %1488 = vmatprep.subr.bf16.mxu0 0
    %1489 = vmatpush1.bf16.msra.mxu0 %v1321
    %1490 = vmatprep.subr.bf16.mxu0 0
    %1491 = vmatpush1.bf16.msra.mxu0 %v1320
    %1492 = vmatprep.subr.bf16.mxu0 0
    %1493 = vmatpush1.bf16.msra.mxu0 %v1319
    %1494 = vmatprep.subr.bf16.mxu0 0
    %1495 = vmatpush1.bf16.msra.mxu0 %v1318
    %1496 = vmatprep.subr.bf16.mxu0 0
    %1497 = vmatpush1.bf16.msra.mxu0 %v1317
    %1498 = vmatprep.subr.bf16.mxu0 0
    %1499 = vmatpush1.bf16.msra.mxu0 %v1316
    %1500 = vmatprep.subr.bf16.mxu0 0
    %1501 = vmatpush2.bf16.msra.mxu0 %v1331
    %1502 = vmatprep.subr.bf16.mxu0 0
    %1503 = vmatpush2.bf16.msra.mxu0 %v1330
    %1504 = vmatprep.subr.bf16.mxu0 0
    %1505 = vmatpush2.bf16.msra.mxu0 %v1329
    %1506 = vmatprep.subr.bf16.mxu0 0
    %1507 = vmatpush2.bf16.msra.mxu0 %v1328
    %1508 = vmatprep.subr.bf16.mxu0 0
    %1509 = vmatpush2.bf16.msra.mxu0 %v1327
    %1510 = vmatprep.subr.bf16.mxu0 0
    %1511 = vmatpush2.bf16.msra.mxu0 %v1326
    %1512 = vmatprep.subr.bf16.mxu0 0
    %1513 = vmatpush2.bf16.msra.mxu0 %v1325
    %1514 = vmatprep.subr.bf16.mxu0 0
    %1515 = vmatpush2.bf16.msra.mxu0 %v1324
    %1516 = vmatprep.mubr.bf16.mxu0 %v1006
    %1517 = vmatmul.mubr.bf16.gmra.mxu0 %v1005
    %v1518 = vpop.f32.mrf.mxu0
    %v1519 = vadd.f32 %v1479, %v1518
    %v1520 = vpop.f32.mrf.mxu0
    %v1521 = vpop.f32.mrf.mxu0
    %v1522 = vpop.f32.mrf.mxu0
    %1523 = vdwg.mxu0
    %1524 = vmatprep.subr.bf16.mxu0 0
    %1525 = vmatpush1.bf16.msra.mxu0 %v1339
    %1526 = vmatprep.subr.bf16.mxu0 0
    %1527 = vmatpush1.bf16.msra.mxu0 %v1338
    %1528 = vmatprep.subr.bf16.mxu0 0
    %1529 = vmatpush1.bf16.msra.mxu0 %v1337
    %1530 = vmatprep.subr.bf16.mxu0 0
    %1531 = vmatpush1.bf16.msra.mxu0 %v1336
    %1532 = vmatprep.subr.bf16.mxu0 0
    %1533 = vmatpush1.bf16.msra.mxu0 %v1335
    %1534 = vmatprep.subr.bf16.mxu0 0
    %1535 = vmatpush1.bf16.msra.mxu0 %v1334
    %1536 = vmatprep.subr.bf16.mxu0 0
    %1537 = vmatpush1.bf16.msra.mxu0 %v1333
    %1538 = vmatprep.subr.bf16.mxu0 0
    %1539 = vmatpush1.bf16.msra.mxu0 %v1332
    %1540 = vmatprep.subr.bf16.mxu0 0
    %1541 = vmatpush2.bf16.msra.mxu0 %v1347
    %1542 = vmatprep.subr.bf16.mxu0 0
    %1543 = vmatpush2.bf16.msra.mxu0 %v1346
    %1544 = vmatprep.subr.bf16.mxu0 0
    %1545 = vmatpush2.bf16.msra.mxu0 %v1345
    %1546 = vmatprep.subr.bf16.mxu0 0
    %1547 = vmatpush2.bf16.msra.mxu0 %v1344
    %1548 = vmatprep.subr.bf16.mxu0 0
    %1549 = vmatpush2.bf16.msra.mxu0 %v1343
    %1550 = vmatprep.subr.bf16.mxu0 0
    %1551 = vmatpush2.bf16.msra.mxu0 %v1342
    %1552 = vmatprep.subr.bf16.mxu0 0
    %1553 = vmatpush2.bf16.msra.mxu0 %v1341
    %1554 = vmatprep.subr.bf16.mxu0 0
    %1555 = vmatpush2.bf16.msra.mxu0 %v1340
    %1556 = vmatprep.mubr.bf16.mxu0 %v1008
    %1557 = vmatmul.mubr.bf16.gmra.mxu0 %v1007
    %v1558 = vpop.f32.mrf.mxu0
    %v1559 = vadd.f32 %v1519, %v1558
    %v1560 = vpop.f32.mrf.mxu0
    %v1561 = vpop.f32.mrf.mxu0
    %v1562 = vpop.f32.mrf.mxu0
    %1563 = vdwg.mxu0
    %1564 = vmatprep.subr.bf16.mxu0 0
    %1565 = vmatpush1.bf16.msra.mxu0 %v1355
    %1566 = vmatprep.subr.bf16.mxu0 0
    %1567 = vmatpush1.bf16.msra.mxu0 %v1354
    %1568 = vmatprep.subr.bf16.mxu0 0
    %1569 = vmatpush1.bf16.msra.mxu0 %v1353
    %1570 = vmatprep.subr.bf16.mxu0 0
    %1571 = vmatpush1.bf16.msra.mxu0 %v1352
    %1572 = vmatprep.subr.bf16.mxu0 0
    %1573 = vmatpush1.bf16.msra.mxu0 %v1351
    %1574 = vmatprep.subr.bf16.mxu0 0
    %1575 = vmatpush1.bf16.msra.mxu0 %v1350
    %1576 = vmatprep.subr.bf16.mxu0 0
    %1577 = vmatpush1.bf16.msra.mxu0 %v1349
    %1578 = vmatprep.subr.bf16.mxu0 0
    %1579 = vmatpush1.bf16.msra.mxu0 %v1348
    %1580 = vmatprep.subr.bf16.mxu0 0
    %1581 = vmatpush2.bf16.msra.mxu0 %v1363
    %1582 = vmatprep.subr.bf16.mxu0 0
    %1583 = vmatpush2.bf16.msra.mxu0 %v1362
    %1584 = vmatprep.subr.bf16.mxu0 0
    %1585 = vmatpush2.bf16.msra.mxu0 %v1361
    %1586 = vmatprep.subr.bf16.mxu0 0
    %1587 = vmatpush2.bf16.msra.mxu0 %v1360
    %1588 = vmatprep.subr.bf16.mxu0 0
    %1589 = vmatpush2.bf16.msra.mxu0 %v1359
    %1590 = vmatprep.subr.bf16.mxu0 0
    %1591 = vmatpush2.bf16.msra.mxu0 %v1358
    %1592 = vmatprep.subr.bf16.mxu0 0
    %1593 = vmatpush2.bf16.msra.mxu0 %v1357
    %1594 = vmatprep.subr.bf16.mxu0 0
    %1595 = vmatpush2.bf16.msra.mxu0 %v1356
    %1596 = vmatprep.mubr.bf16.mxu0 %v1010
    %1597 = vmatmul.mubr.bf16.gmra.mxu0 %v1009
    %v1598 = vpop.f32.mrf.mxu0
    %v1599 = vadd.f32 %v1559, %v1598
    %v1600 = vpop.f32.mrf.mxu0
    %v1601 = vpop.f32.mrf.mxu0
    %v1602 = vpop.f32.mrf.mxu0
    %1603 = vdwg.mxu0
    %1604 = vmatprep.subr.bf16.mxu0 0
    %1605 = vmatpush1.bf16.msra.mxu0 %v1371
    %1606 = vmatprep.subr.bf16.mxu0 0
    %1607 = vmatpush1.bf16.msra.mxu0 %v1370
    %1608 = vmatprep.subr.bf16.mxu0 0
    %1609 = vmatpush1.bf16.msra.mxu0 %v1369
    %1610 = vmatprep.subr.bf16.mxu0 0
    %1611 = vmatpush1.bf16.msra.mxu0 %v1368
    %1612 = vmatprep.subr.bf16.mxu0 0
    %1613 = vmatpush1.bf16.msra.mxu0 %v1367
    %1614 = vmatprep.subr.bf16.mxu0 0
    %1615 = vmatpush1.bf16.msra.mxu0 %v1366
    %1616 = vmatprep.subr.bf16.mxu0 0
    %1617 = vmatpush1.bf16.msra.mxu0 %v1365
    %1618 = vmatprep.subr.bf16.mxu0 0
    %1619 = vmatpush1.bf16.msra.mxu0 %v1364
    %1620 = vmatprep.subr.bf16.mxu0 0
    %1621 = vmatpush2.bf16.msra.mxu0 0
    %1622 = vmatprep.subr.bf16.mxu0 0
    %1623 = vmatpush2.bf16.msra.mxu0 0
    %1624 = vmatprep.subr.bf16.mxu0 0
    %1625 = vmatpush2.bf16.msra.mxu0 0
    %1626 = vmatprep.subr.bf16.mxu0 0
    %1627 = vmatpush2.bf16.msra.mxu0 0
    %1628 = vmatprep.subr.bf16.mxu0 0
    %1629 = vmatpush2.bf16.msra.mxu0 0
    %1630 = vmatprep.subr.bf16.mxu0 0
    %1631 = vmatpush2.bf16.msra.mxu0 0
    %1632 = vmatprep.subr.bf16.mxu0 0
    %1633 = vmatpush2.bf16.msra.mxu0 0
    %1634 = vmatprep.subr.bf16.mxu0 0
    %1635 = vmatpush2.bf16.msra.mxu0 0
    %1636 = vmatprep.mubr.bf16.mxu0 0
    %1637 = vmatmul.mubr.bf16.gmra.mxu0 %v1011
    %v1638 = vpop.f32.mrf.mxu0
    %v1639 = vadd.f32 %v1599, %v1638
    %v1640 = vpop.f32.mrf.mxu0
    %v1641 = vpop.f32.mrf.mxu0
    %v1642 = vpop.f32.mrf.mxu0
    %1643 = vdwg.mxu0
    %v1644 = vld [vmem:[#allocation2 + $0x680] sm:$0xf]
    %v1645 = vld [vmem:[#allocation2 + $0x688] sm:$0xf]
    %v1646 = vld [vmem:[#allocation2 + $0x690] sm:$0xf]
    %v1647 = vld [vmem:[#allocation2 + $0x698] sm:$0xf]
    %v1648 = vld [vmem:[#allocation2 + $0x6a0] sm:$0xf]
    %v1649 = vld [vmem:[#allocation2 + $0x6a8] sm:$0xf]
    %v1650 = vld [vmem:[#allocation2 + $0x6b0] sm:$0xf]
    %v1651 = vld [vmem:[#allocation2 + $0x6b8] sm:$0xf]
    %v1652 = vld [vmem:[#allocation2 + $0x6c0] sm:$0xf]
    %v1653 = vld [vmem:[#allocation2 + $0x6c8] sm:$0xf]
    %v1654 = vld [vmem:[#allocation2 + $0x6d0] sm:$0xf]
    %v1655 = vld [vmem:[#allocation2 + $0x6d8] sm:$0xf]
    %v1656 = vld [vmem:[#allocation2 + $0x6e0] sm:$0xf]
    %v1657 = vld [vmem:[#allocation2 + $0x6e8] sm:$0xf]
    %v1658 = vld [vmem:[#allocation2 + $0x6f0] sm:$0xf]
    %v1659 = vld [vmem:[#allocation2 + $0x6f8] sm:$0xf]
    %v1660 = vld [vmem:[#allocation2 + $0x700] sm:$0xf]
    %v1661 = vld [vmem:[#allocation2 + $0x708] sm:$0xf]
    %v1662 = vld [vmem:[#allocation2 + $0x710] sm:$0xf]
    %v1663 = vld [vmem:[#allocation2 + $0x718] sm:$0xf]
    %v1664 = vld [vmem:[#allocation2 + $0x720] sm:$0xf]
    %v1665 = vld [vmem:[#allocation2 + $0x728] sm:$0xf]
    %v1666 = vld [vmem:[#allocation2 + $0x730] sm:$0xf]
    %v1667 = vld [vmem:[#allocation2 + $0x738] sm:$0xf]
    %v1668 = vld [vmem:[#allocation2 + $0x740] sm:$0xf]
    %v1669 = vld [vmem:[#allocation2 + $0x748] sm:$0xf]
    %v1670 = vld [vmem:[#allocation2 + $0x750] sm:$0xf]
    %v1671 = vld [vmem:[#allocation2 + $0x758] sm:$0xf]
    %v1672 = vld [vmem:[#allocation2 + $0x760] sm:$0xf]
    %v1673 = vld [vmem:[#allocation2 + $0x768] sm:$0xf]
    %v1674 = vld [vmem:[#allocation2 + $0x770] sm:$0xf]
    %v1675 = vld [vmem:[#allocation2 + $0x778] sm:$0xf]
    %v1676 = vld [vmem:[#allocation2 + $0x780] sm:$0xf]
    %v1677 = vld [vmem:[#allocation2 + $0x788] sm:$0xf]
    %v1678 = vld [vmem:[#allocation2 + $0x790] sm:$0xf]
    %v1679 = vld [vmem:[#allocation2 + $0x798] sm:$0xf]
    %v1680 = vld [vmem:[#allocation2 + $0x7a0] sm:$0xf]
    %v1681 = vld [vmem:[#allocation2 + $0x7a8] sm:$0xf]
    %v1682 = vld [vmem:[#allocation2 + $0x7b0] sm:$0xf]
    %v1683 = vld [vmem:[#allocation2 + $0x7b8] sm:$0xf]
    %v1684 = vld [vmem:[#allocation2 + $0x7c0] sm:$0xf]
    %v1685 = vld [vmem:[#allocation2 + $0x7c8] sm:$0xf]
    %v1686 = vld [vmem:[#allocation2 + $0x7d0] sm:$0xf]
    %v1687 = vld [vmem:[#allocation2 + $0x7d8] sm:$0xf]
    %v1688 = vld [vmem:[#allocation2 + $0x7e0] sm:$0xf]
    %v1689 = vld [vmem:[#allocation2 + $0x7e8] sm:$0xf]
    %v1690 = vld [vmem:[#allocation2 + $0x7f0] sm:$0xf]
    %v1691 = vld [vmem:[#allocation2 + $0x7f8] sm:$0xf]
    %v1692 = vld [vmem:[#allocation2 + $0x800] sm:$0xf]
    %v1693 = vld [vmem:[#allocation2 + $0x808] sm:$0xf]
    %v1694 = vld [vmem:[#allocation2 + $0x810] sm:$0xf]
    %v1695 = vld [vmem:[#allocation2 + $0x818] sm:$0xf]
    %v1696 = vld [vmem:[#allocation2 + $0x820] sm:$0xf]
    %v1697 = vld [vmem:[#allocation2 + $0x828] sm:$0xf]
    %v1698 = vld [vmem:[#allocation2 + $0x830] sm:$0xf]
    %v1699 = vld [vmem:[#allocation2 + $0x838] sm:$0xf]
    %v1700 = vld [vmem:[#allocation2 + $0x840] sm:$0xf]
    %v1701 = vld [vmem:[#allocation2 + $0x848] sm:$0xf]
    %v1702 = vld [vmem:[#allocation2 + $0x850] sm:$0xf]
    %v1703 = vld [vmem:[#allocation2 + $0x858] sm:$0xf]
    %v1704 = vld [vmem:[#allocation2 + $0x860] sm:$0xf]
    %v1705 = vld [vmem:[#allocation2 + $0x868] sm:$0xf]
    %v1706 = vld [vmem:[#allocation2 + $0x870] sm:$0xf]
    %v1707 = vld [vmem:[#allocation2 + $0x878] sm:$0xf]
    %v1708 = vld [vmem:[#allocation2 + $0x880] sm:$0xf]
    %v1709 = vld [vmem:[#allocation2 + $0x888] sm:$0xf]
    %v1710 = vld [vmem:[#allocation2 + $0x890] sm:$0xf]
    %v1711 = vld [vmem:[#allocation2 + $0x898] sm:$0xf]
    %v1712 = vld [vmem:[#allocation2 + $0x8a0] sm:$0xf]
    %v1713 = vld [vmem:[#allocation2 + $0x8a8] sm:$0xf]
    %v1714 = vld [vmem:[#allocation2 + $0x8b0] sm:$0xf]
    %v1715 = vld [vmem:[#allocation2 + $0x8b8] sm:$0xf]
    %v1716 = vld [vmem:[#allocation2 + $0x8c0] sm:$0xf]
    %v1717 = vld [vmem:[#allocation2 + $0x8c8] sm:$0xf]
    %v1718 = vld [vmem:[#allocation2 + $0x8d0] sm:$0xf]
    %v1719 = vld [vmem:[#allocation2 + $0x8d8] sm:$0xf]
    %v1720 = vld [vmem:[#allocation2 + $0x8e0] sm:$0xf]
    %v1721 = vld [vmem:[#allocation2 + $0x8e8] sm:$0xf]
    %v1722 = vld [vmem:[#allocation2 + $0x8f0] sm:$0xf]
    %v1723 = vld [vmem:[#allocation2 + $0x8f8] sm:$0xf]
    %v1724 = vld [vmem:[#allocation2 + $0x900] sm:$0xf]
    %v1725 = vld [vmem:[#allocation2 + $0x908] sm:$0xf]
    %v1726 = vld [vmem:[#allocation2 + $0x910] sm:$0xf]
    %v1727 = vld [vmem:[#allocation2 + $0x918] sm:$0xf]
    %v1728 = vld [vmem:[#allocation2 + $0x920] sm:$0xf]
    %v1729 = vld [vmem:[#allocation2 + $0x928] sm:$0xf]
    %v1730 = vld [vmem:[#allocation2 + $0x930] sm:$0xf]
    %v1731 = vld [vmem:[#allocation2 + $0x938] sm:$0xf]
    %v1732 = vld [vmem:[#allocation2 + $0x940] sm:$0xf]
    %v1733 = vld [vmem:[#allocation2 + $0x948] sm:$0xf]
    %v1734 = vld [vmem:[#allocation2 + $0x950] sm:$0xf]
    %v1735 = vld [vmem:[#allocation2 + $0x958] sm:$0xf]
    %v1736 = vld [vmem:[#allocation2 + $0x960] sm:$0xf]
    %v1737 = vld [vmem:[#allocation2 + $0x968] sm:$0xf]
    %v1738 = vld [vmem:[#allocation2 + $0x970] sm:$0xf]
    %v1739 = vld [vmem:[#allocation2 + $0x978] sm:$0xf]
    %v1740 = vld [vmem:[#allocation2 + $0x980] sm:$0xf]
    %v1741 = vld [vmem:[#allocation2 + $0x988] sm:$0xf]
    %v1742 = vld [vmem:[#allocation2 + $0x990] sm:$0xf]
    %v1743 = vld [vmem:[#allocation2 + $0x998] sm:$0xf]
    %v1744 = vld [vmem:[#allocation2 + $0x9a0] sm:$0xf]
    %v1745 = vld [vmem:[#allocation2 + $0x9a8] sm:$0xf]
    %v1746 = vld [vmem:[#allocation2 + $0x9b0] sm:$0xf]
    %v1747 = vld [vmem:[#allocation2 + $0x9b8] sm:$0xf]
    %v1748 = vld [vmem:[#allocation2 + $0x9c0] sm:$0xf]
    %v1749 = vld [vmem:[#allocation2 + $0x9c8] sm:$0xf]
    %v1750 = vld [vmem:[#allocation2 + $0x9d0] sm:$0xf]
    %v1751 = vld [vmem:[#allocation2 + $0x9d8] sm:$0xf]
    %v1752 = vld [vmem:[#allocation2 + $0x9e0] sm:$0xf]
    %v1753 = vld [vmem:[#allocation2 + $0x9e8] sm:$0xf]
    %v1754 = vld [vmem:[#allocation2 + $0x9f0] sm:$0xf]
    %v1755 = vld [vmem:[#allocation2 + $0x9f8] sm:$0xf]
    %v1756 = vld [vmem:[#allocation2 + $0xa00] sm:$0xf]
    %v1757 = vld [vmem:[#allocation2 + $0xa08] sm:$0xf]
    %v1758 = vld [vmem:[#allocation2 + $0xa10] sm:$0xf]
    %v1759 = vld [vmem:[#allocation2 + $0xa18] sm:$0xf]
    %v1760 = vld [vmem:[#allocation2 + $0xa20] sm:$0xf]
    %v1761 = vld [vmem:[#allocation2 + $0xa28] sm:$0xf]
    %v1762 = vld [vmem:[#allocation2 + $0xa30] sm:$0xf]
    %v1763 = vld [vmem:[#allocation2 + $0xa38] sm:$0xf]
    %v1764 = vld [vmem:[#allocation2 + $0xa40] sm:$0xf]
    %v1765 = vld [vmem:[#allocation2 + $0xa48] sm:$0xf]
    %v1766 = vld [vmem:[#allocation2 + $0xa50] sm:$0xf]
    %v1767 = vld [vmem:[#allocation2 + $0xa58] sm:$0xf]
    %v1768 = vld [vmem:[#allocation2 + $0xa60] sm:$0xf]
    %v1769 = vld [vmem:[#allocation2 + $0xa68] sm:$0xf]
    %v1770 = vld [vmem:[#allocation2 + $0xa70] sm:$0xf]
    %v1771 = vld [vmem:[#allocation2 + $0xa78] sm:$0xf]
    %v1772 = vld [vmem:[#allocation2 + $0xa80] sm:$0xf]
    %v1773 = vld [vmem:[#allocation2 + $0xa88] sm:$0xf]
    %v1774 = vld [vmem:[#allocation2 + $0xa90] sm:$0xf]
    %v1775 = vld [vmem:[#allocation2 + $0xa98] sm:$0xf]
    %v1776 = vld [vmem:[#allocation2 + $0xaa0] sm:$0xf]
    %v1777 = vld [vmem:[#allocation2 + $0xaa8] sm:$0xf]
    %v1778 = vld [vmem:[#allocation2 + $0xab0] sm:$0xf]
    %v1779 = vld [vmem:[#allocation2 + $0xab8] sm:$0xf]
    %v1780 = vld [vmem:[#allocation2 + $0xac0] sm:$0xf]
    %v1781 = vld [vmem:[#allocation2 + $0xac8] sm:$0xf]
    %v1782 = vld [vmem:[#allocation2 + $0xad0] sm:$0xf]
    %v1783 = vld [vmem:[#allocation2 + $0xad8] sm:$0xf]
    %v1784 = vld [vmem:[#allocation2 + $0xae0] sm:$0xf]
    %v1785 = vld [vmem:[#allocation2 + $0xae8] sm:$0xf]
    %v1786 = vld [vmem:[#allocation2 + $0xaf0] sm:$0xf]
    %v1787 = vld [vmem:[#allocation2 + $0xaf8] sm:$0xf]
    %vm1788 = vcmp.ge.f32.partialorder %v1639, -2.2
    %v1789 = vsel %vm1788, 1, 0
    %v1790 = vcvt.s32.f32 %v1789
    %vm1791 = vcmp.ge.f32.partialorder %v1639, -1.8
    %v1792 = vsel %vm1791, 1, 0
    %v1793 = vcvt.s32.f32 %v1792
    %vm1794 = vcmp.ge.f32.partialorder %v1639, -1.4
    %v1795 = vsel %vm1794, 1, 0
    %v1796 = vcvt.s32.f32 %v1795
    %vm1797 = vcmp.ge.f32.partialorder %v1639, -1.0
    %v1798 = vsel %vm1797, 1, 0
    %v1799 = vcvt.s32.f32 %v1798
    %vm1800 = vcmp.ge.f32.partialorder %v1639, -0.6
    %v1801 = vsel %vm1800, 1, 0
    %v1802 = vcvt.s32.f32 %v1801
    %vm1803 = vcmp.ge.f32.partialorder %v1639, -0.2
    %v1804 = vsel %vm1803, 1, 0
    %v1805 = vcvt.s32.f32 %v1804
    %vm1806 = vcmp.ge.f32.partialorder %v1639, 0.2
    %v1807 = vsel %vm1806, 1, 0
    %v1808 = vcvt.s32.f32 %v1807
    %vm1809 = vcmp.ge.f32.partialorder %v1639, 0.6
    %v1810 = vsel %vm1809, 1, 0
    %v1811 = vcvt.s32.f32 %v1810
    %vm1812 = vcmp.ge.f32.partialorder %v1639, 1.0
    %v1813 = vsel %vm1812, 1, 0
    %v1814 = vcvt.s32.f32 %v1813
    %vm1815 = vcmp.ge.f32.partialorder %v1639, 1.4
    %v1816 = vsel %vm1815, 1, 0
    %v1817 = vcvt.s32.f32 %v1816
    %vm1818 = vcmp.ge.f32.partialorder %v1639, 1.8
    %v1819 = vsel %vm1818, 1, 0
    %v1820 = vcvt.s32.f32 %v1819
    %vm1821 = vcmp.ge.f32.partialorder %v1639, 2.2
    %v1822 = vsel %vm1821, 1, 0
    %v1823 = vcvt.s32.f32 %v1822
    %v1824 = vsub.f32 %v1790, %v1793
    %v1825 = vsub.f32 %v1793, %v1796
    %v1826 = vsub.f32 %v1796, %v1799
    %v1827 = vsub.f32 %v1799, %v1802
    %v1828 = vsub.f32 %v1802, %v1805
    %v1829 = vsub.f32 %v1805, %v1808
    %v1830 = vsub.f32 %v1808, %v1811
    %v1831 = vsub.f32 %v1811, %v1814
    %v1832 = vsub.f32 %v1814, %v1817
    %v1833 = vsub.f32 %v1817, %v1820
    %v1834 = vsub.f32 %v1820, %v1823
    %v1835 = vsub.f32 %v1639, -2.2
    %v1836 = vmul.f32 %v1835, 2.5
    %v1837 = vmul.f32 %v1836, %v1824
    %v1838 = vsub.f32 -1.4, %v1639
    %v1839 = vmul.f32 %v1838, 2.5
    %v1840 = vmul.f32 %v1839, %v1825
    %v1841 = vadd.f32 %v1837, %v1840
    %v1842 = vsub.f32 %v1639, -1.8
    %v1843 = vmul.f32 %v1842, 2.5
    %v1844 = vmul.f32 %v1843, %v1825
    %v1845 = vsub.f32 -1.0, %v1639
    %v1846 = vmul.f32 %v1845, 2.5
    %v1847 = vmul.f32 %v1846, %v1826
    %v1848 = vadd.f32 %v1844, %v1847
    %v1849 = vsub.f32 %v1639, -1.4
    %v1850 = vmul.f32 %v1849, 2.5
    %v1851 = vmul.f32 %v1850, %v1826
    %v1852 = vsub.f32 -0.6, %v1639
    %v1853 = vmul.f32 %v1852, 2.5
    %v1854 = vmul.f32 %v1853, %v1827
    %v1855 = vadd.f32 %v1851, %v1854
    %v1856 = vsub.f32 %v1639, -1.0
    %v1857 = vmul.f32 %v1856, 2.5
    %v1858 = vmul.f32 %v1857, %v1827
    %v1859 = vsub.f32 -0.2, %v1639
    %v1860 = vmul.f32 %v1859, 2.5
    %v1861 = vmul.f32 %v1860, %v1828
    %v1862 = vadd.f32 %v1858, %v1861
    %v1863 = vsub.f32 %v1639, -0.6
    %v1864 = vmul.f32 %v1863, 2.5
    %v1865 = vmul.f32 %v1864, %v1828
    %v1866 = vsub.f32 0.2, %v1639
    %v1867 = vmul.f32 %v1866, 2.5
    %v1868 = vmul.f32 %v1867, %v1829
    %v1869 = vadd.f32 %v1865, %v1868
    %v1870 = vsub.f32 %v1639, -0.2
    %v1871 = vmul.f32 %v1870, 2.5
    %v1872 = vmul.f32 %v1871, %v1829
    %v1873 = vsub.f32 0.6, %v1639
    %v1874 = vmul.f32 %v1873, 2.5
    %v1875 = vmul.f32 %v1874, %v1830
    %v1876 = vadd.f32 %v1872, %v1875
    %v1877 = vsub.f32 %v1639, 0.2
    %v1878 = vmul.f32 %v1877, 2.5
    %v1879 = vmul.f32 %v1878, %v1830
    %v1880 = vsub.f32 1.0, %v1639
    %v1881 = vmul.f32 %v1880, 2.5
    %v1882 = vmul.f32 %v1881, %v1831
    %v1883 = vadd.f32 %v1879, %v1882
    %v1884 = vsub.f32 %v1639, 0.6
    %v1885 = vmul.f32 %v1884, 2.5
    %v1886 = vmul.f32 %v1885, %v1831
    %v1887 = vsub.f32 1.4, %v1639
    %v1888 = vmul.f32 %v1887, 2.5
    %v1889 = vmul.f32 %v1888, %v1832
    %v1890 = vadd.f32 %v1886, %v1889
    %v1891 = vsub.f32 %v1639, 1.0
    %v1892 = vmul.f32 %v1891, 2.5
    %v1893 = vmul.f32 %v1892, %v1832
    %v1894 = vsub.f32 1.8, %v1639
    %v1895 = vmul.f32 %v1894, 2.5
    %v1896 = vmul.f32 %v1895, %v1833
    %v1897 = vadd.f32 %v1893, %v1896
    %v1898 = vsub.f32 %v1639, 1.4
    %v1899 = vmul.f32 %v1898, 2.5
    %v1900 = vmul.f32 %v1899, %v1833
    %v1901 = vsub.f32 2.2, %v1639
    %v1902 = vmul.f32 %v1901, 2.5
    %v1903 = vmul.f32 %v1902, %v1834
    %v1904 = vadd.f32 %v1900, %v1903
    %v1905 = vmul.f32 %v1835, 1.25
    %v1906 = vmul.f32 %v1905, %v1841
    %v1907 = vmul.f32 %v1845, 1.25
    %v1908 = vmul.f32 %v1907, %v1848
    %v1909 = vadd.f32 %v1906, %v1908
    %v1910 = vmul.f32 %v1842, 1.25
    %v1911 = vmul.f32 %v1910, %v1848
    %v1912 = vmul.f32 %v1852, 1.25
    %v1913 = vmul.f32 %v1912, %v1855
    %v1914 = vadd.f32 %v1911, %v1913
    %v1915 = vmul.f32 %v1849, 1.25
    %v1916 = vmul.f32 %v1915, %v1855
    %v1917 = vmul.f32 %v1859, 1.25
    %v1918 = vmul.f32 %v1917, %v1862
    %v1919 = vadd.f32 %v1916, %v1918
    %v1920 = vmul.f32 %v1856, 1.25
    %v1921 = vmul.f32 %v1920, %v1862
    %v1922 = vmul.f32 %v1866, 1.25
    %v1923 = vmul.f32 %v1922, %v1869
    %v1924 = vadd.f32 %v1921, %v1923
    %v1925 = vmul.f32 %v1863, 1.25
    %v1926 = vmul.f32 %v1925, %v1869
    %v1927 = vmul.f32 %v1873, 1.25
    %v1928 = vmul.f32 %v1927, %v1876
    %v1929 = vadd.f32 %v1926, %v1928
    %v1930 = vmul.f32 %v1870, 1.25
    %v1931 = vmul.f32 %v1930, %v1876
    %v1932 = vmul.f32 %v1880, 1.25
    %v1933 = vmul.f32 %v1932, %v1883
    %v1934 = vadd.f32 %v1931, %v1933
    %v1935 = vmul.f32 %v1877, 1.25
    %v1936 = vmul.f32 %v1935, %v1883
    %v1937 = vmul.f32 %v1887, 1.25
    %v1938 = vmul.f32 %v1937, %v1890
    %v1939 = vadd.f32 %v1936, %v1938
    %v1940 = vmul.f32 %v1884, 1.25
    %v1941 = vmul.f32 %v1940, %v1890
    %v1942 = vmul.f32 %v1894, 1.25
    %v1943 = vmul.f32 %v1942, %v1897
    %v1944 = vadd.f32 %v1941, %v1943
    %v1945 = vmul.f32 %v1891, 1.25
    %v1946 = vmul.f32 %v1945, %v1897
    %v1947 = vmul.f32 %v1901, 1.25
    %v1948 = vmul.f32 %v1947, %v1904
    %v1949 = vadd.f32 %v1946, %v1948
    %v1950 = vmul.f32 %v1835, 0.8333333
    %v1951 = vmul.f32 %v1950, %v1909
    %v1952 = vmul.f32 %v1852, 0.8333333
    %v1953 = vmul.f32 %v1952, %v1914
    %v1954 = vadd.f32 %v1951, %v1953
    %v1955 = vmul.f32 %v1842, 0.8333333
    %v1956 = vmul.f32 %v1955, %v1914
    %v1957 = vmul.f32 %v1859, 0.8333333
    %v1958 = vmul.f32 %v1957, %v1919
    %v1959 = vadd.f32 %v1956, %v1958
    %v1960 = vmul.f32 %v1849, 0.8333333
    %v1961 = vmul.f32 %v1960, %v1919
    %v1962 = vmul.f32 %v1866, 0.8333333
    %v1963 = vmul.f32 %v1962, %v1924
    %v1964 = vadd.f32 %v1961, %v1963
    %v1965 = vmul.f32 %v1856, 0.8333333
    %v1966 = vmul.f32 %v1965, %v1924
    %v1967 = vmul.f32 %v1873, 0.8333333
    %v1968 = vmul.f32 %v1967, %v1929
    %v1969 = vadd.f32 %v1966, %v1968
    %v1970 = vmul.f32 %v1863, 0.8333333
    %v1971 = vmul.f32 %v1970, %v1929
    %v1972 = vmul.f32 %v1880, 0.8333333
    %v1973 = vmul.f32 %v1972, %v1934
    %v1974 = vadd.f32 %v1971, %v1973
    %v1975 = vmul.f32 %v1870, 0.8333333
    %v1976 = vmul.f32 %v1975, %v1934
    %v1977 = vmul.f32 %v1887, 0.8333333
    %v1978 = vmul.f32 %v1977, %v1939
    %v1979 = vadd.f32 %v1976, %v1978
    %v1980 = vmul.f32 %v1877, 0.8333333
    %v1981 = vmul.f32 %v1980, %v1939
    %v1982 = vmul.f32 %v1894, 0.8333333
    %v1983 = vmul.f32 %v1982, %v1944
    %v1984 = vadd.f32 %v1981, %v1983
    %v1985 = vmul.f32 %v1884, 0.8333333
    %v1986 = vmul.f32 %v1985, %v1944
    %v1987 = vmul.f32 %v1901, 0.8333333
    %v1988 = vmul.f32 %v1987, %v1949
    %v1989 = vadd.f32 %v1986, %v1988
    %v1990 = vxor.u32 %v1639, 2147483648
    %v1991 = vmul.f32 %v1990, 1.442695
    %v1992 = vpow.pop %v1991
    %v1993 = vadd.f32 %v1992, 1.0
    %v1994 = vrcp.pop %v1993
    %v1995 = vmul.f32 1.0, %v1994
    %v1996 = vmul.f32 %v1639, %v1995
    %v1997 = vpack.c.bf16 %v1996, %v1996
    %v1998 = vpack.c.bf16 %v1954, %v1954
    %v1999 = vpack.c.bf16 %v1959, %v1959
    %v2000 = vpack.c.bf16 %v1964, %v1964
    %v2001 = vpack.c.bf16 %v1969, %v1969
    %v2002 = vpack.c.bf16 %v1974, %v1974
    %v2003 = vpack.c.bf16 %v1979, %v1979
    %v2004 = vpack.c.bf16 %v1984, %v1984
    %v2005 = vpack.c.bf16 %v1989, %v1989
    %v2150 = vunpack.c.l.b16 %v1644
    %v2151 = vunpack.c.l.b16 %v1645
    %v2152 = vunpack.c.l.b16 %v1646
    %v2153 = vunpack.c.l.b16 %v1647
    %v2154 = vunpack.c.l.b16 %v1648
    %v2155 = vunpack.c.l.b16 %v1649
    %v2156 = vunpack.c.l.b16 %v1650
    %v2157 = vunpack.c.l.b16 %v1651
    %v2158 = vunpack.c.l.b16 %v1652
    %v2159 = vunpack.c.l.b16 %v1653
    %v2160 = vunpack.c.l.b16 %v1654
    %v2161 = vunpack.c.l.b16 %v1655
    %v2162 = vunpack.c.l.b16 %v1656
    %v2163 = vunpack.c.l.b16 %v1657
    %v2164 = vunpack.c.l.b16 %v1658
    %v2165 = vunpack.c.l.b16 %v1659
    %v2166 = vunpack.c.l.b16 %v1660
    %v2167 = vunpack.c.l.b16 %v1661
    %v2168 = vunpack.c.l.b16 %v1662
    %v2169 = vunpack.c.l.b16 %v1663
    %v2170 = vunpack.c.l.b16 %v1664
    %v2171 = vunpack.c.l.b16 %v1665
    %v2172 = vunpack.c.l.b16 %v1666
    %v2173 = vunpack.c.l.b16 %v1667
    %v2174 = vunpack.c.l.b16 %v1668
    %v2175 = vunpack.c.l.b16 %v1669
    %v2176 = vunpack.c.l.b16 %v1670
    %v2177 = vunpack.c.l.b16 %v1671
    %v2178 = vunpack.c.l.b16 %v1672
    %v2179 = vunpack.c.l.b16 %v1673
    %v2180 = vunpack.c.l.b16 %v1674
    %v2181 = vunpack.c.l.b16 %v1675
    %v2182 = vunpack.c.l.b16 %v1676
    %v2183 = vunpack.c.l.b16 %v1677
    %v2184 = vunpack.c.l.b16 %v1678
    %v2185 = vunpack.c.l.b16 %v1679
    %v2186 = vunpack.c.l.b16 %v1680
    %v2187 = vunpack.c.l.b16 %v1681
    %v2188 = vunpack.c.l.b16 %v1682
    %v2189 = vunpack.c.l.b16 %v1683
    %v2190 = vunpack.c.l.b16 %v1684
    %v2191 = vunpack.c.l.b16 %v1685
    %v2192 = vunpack.c.l.b16 %v1686
    %v2193 = vunpack.c.l.b16 %v1687
    %v2194 = vunpack.c.l.b16 %v1688
    %v2195 = vunpack.c.l.b16 %v1689
    %v2196 = vunpack.c.l.b16 %v1690
    %v2197 = vunpack.c.l.b16 %v1691
    %v2198 = vunpack.c.l.b16 %v1692
    %v2199 = vunpack.c.l.b16 %v1693
    %v2200 = vunpack.c.l.b16 %v1694
    %v2201 = vunpack.c.l.b16 %v1695
    %v2202 = vunpack.c.l.b16 %v1696
    %v2203 = vunpack.c.l.b16 %v1697
    %v2204 = vunpack.c.l.b16 %v1698
    %v2205 = vunpack.c.l.b16 %v1699
    %v2206 = vunpack.c.l.b16 %v1700
    %v2207 = vunpack.c.l.b16 %v1701
    %v2208 = vunpack.c.l.b16 %v1702
    %v2209 = vunpack.c.l.b16 %v1703
    %v2210 = vunpack.c.l.b16 %v1704
    %v2211 = vunpack.c.l.b16 %v1705
    %v2212 = vunpack.c.l.b16 %v1706
    %v2213 = vunpack.c.l.b16 %v1707
    %v2214 = vunpack.c.l.b16 %v1708
    %v2215 = vunpack.c.l.b16 %v1709
    %v2216 = vunpack.c.l.b16 %v1710
    %v2217 = vunpack.c.l.b16 %v1711
    %v2218 = vunpack.c.l.b16 %v1712
    %v2219 = vunpack.c.l.b16 %v1713
    %v2220 = vunpack.c.l.b16 %v1714
    %v2221 = vunpack.c.l.b16 %v1715
    %v2222 = vunpack.c.l.b16 %v1716
    %v2223 = vunpack.c.l.b16 %v1717
    %v2224 = vunpack.c.l.b16 %v1718
    %v2225 = vunpack.c.l.b16 %v1719
    %v2226 = vunpack.c.l.b16 %v1720
    %v2227 = vunpack.c.l.b16 %v1721
    %v2228 = vunpack.c.l.b16 %v1722
    %v2229 = vunpack.c.l.b16 %v1723
    %v2230 = vunpack.c.l.b16 %v1724
    %v2231 = vunpack.c.l.b16 %v1725
    %v2232 = vunpack.c.l.b16 %v1726
    %v2233 = vunpack.c.l.b16 %v1727
    %v2234 = vunpack.c.l.b16 %v1728
    %v2235 = vunpack.c.l.b16 %v1729
    %v2236 = vunpack.c.l.b16 %v1730
    %v2237 = vunpack.c.l.b16 %v1731
    %v2238 = vunpack.c.l.b16 %v1732
    %v2239 = vunpack.c.l.b16 %v1733
    %v2240 = vunpack.c.l.b16 %v1734
    %v2241 = vunpack.c.l.b16 %v1735
    %v2242 = vunpack.c.l.b16 %v1736
    %v2243 = vunpack.c.l.b16 %v1737
    %v2244 = vunpack.c.l.b16 %v1738
    %v2245 = vunpack.c.l.b16 %v1739
    %v2246 = vunpack.c.l.b16 %v1740
    %v2247 = vunpack.c.l.b16 %v1741
    %v2248 = vunpack.c.l.b16 %v1742
    %v2249 = vunpack.c.l.b16 %v1743
    %v2250 = vunpack.c.l.b16 %v1744
    %v2251 = vunpack.c.l.b16 %v1745
    %v2252 = vunpack.c.l.b16 %v1746
    %v2253 = vunpack.c.l.b16 %v1747
    %v2254 = vunpack.c.l.b16 %v1748
    %v2255 = vunpack.c.l.b16 %v1749
    %v2256 = vunpack.c.l.b16 %v1750
    %v2257 = vunpack.c.l.b16 %v1751
    %v2258 = vunpack.c.l.b16 %v1752
    %v2259 = vunpack.c.l.b16 %v1753
    %v2260 = vunpack.c.l.b16 %v1754
    %v2261 = vunpack.c.l.b16 %v1755
    %v2262 = vunpack.c.l.b16 %v1756
    %v2263 = vunpack.c.l.b16 %v1757
    %v2264 = vunpack.c.l.b16 %v1758
    %v2265 = vunpack.c.l.b16 %v1759
    %v2266 = vunpack.c.l.b16 %v1760
    %v2267 = vunpack.c.l.b16 %v1761
    %v2268 = vunpack.c.l.b16 %v1762
    %v2269 = vunpack.c.l.b16 %v1763
    %v2270 = vunpack.c.l.b16 %v1764
    %v2271 = vunpack.c.l.b16 %v1765
    %v2272 = vunpack.c.l.b16 %v1766
    %v2273 = vunpack.c.l.b16 %v1767
    %v2274 = vunpack.c.l.b16 %v1768
    %v2275 = vunpack.c.l.b16 %v1769
    %v2276 = vunpack.c.l.b16 %v1770
    %v2277 = vunpack.c.l.b16 %v1771
    %v2278 = vunpack.c.l.b16 %v1772
    %v2279 = vunpack.c.l.b16 %v1773
    %v2280 = vunpack.c.l.b16 %v1774
    %v2281 = vunpack.c.l.b16 %v1775
    %v2282 = vunpack.c.l.b16 %v1776
    %v2283 = vunpack.c.l.b16 %v1777
    %v2284 = vunpack.c.l.b16 %v1778
    %v2285 = vunpack.c.l.b16 %v1779
    %v2286 = vunpack.c.l.b16 %v1780
    %v2287 = vunpack.c.l.b16 %v1781
    %v2288 = vunpack.c.l.b16 %v1782
    %v2289 = vunpack.c.l.b16 %v1783
    %v2290 = vunpack.c.l.b16 %v1784
    %v2291 = vunpack.c.l.b16 %v1785
    %v2292 = vunpack.c.l.b16 %v1786
    %v2293 = vunpack.c.l.b16 %v1787
    %v2294 = vpack.c.b16 %v2151, %v2150
    %v2295 = vpack.c.b16 %v2153, %v2152
    %v2296 = vpack.c.b16 %v2155, %v2154
    %v2297 = vpack.c.b16 %v2157, %v2156
    %v2298 = vpack.c.b16 %v2159, %v2158
    %v2299 = vpack.c.b16 %v2161, %v2160
    %v2300 = vpack.c.b16 %v2163, %v2162
    %v2301 = vpack.c.b16 %v2165, %v2164
    %v2302 = vpack.c.b16 %v2167, %v2166
    %v2303 = vpack.c.b16 %v2169, %v2168
    %v2304 = vpack.c.b16 %v2171, %v2170
    %v2305 = vpack.c.b16 %v2173, %v2172
    %v2306 = vpack.c.b16 %v2175, %v2174
    %v2307 = vpack.c.b16 %v2177, %v2176
    %v2308 = vpack.c.b16 %v2179, %v2178
    %v2309 = vpack.c.b16 %v2181, %v2180
    %v2310 = vpack.c.b16 %v2183, %v2182
    %v2311 = vpack.c.b16 %v2185, %v2184
    %v2312 = vpack.c.b16 %v2187, %v2186
    %v2313 = vpack.c.b16 %v2189, %v2188
    %v2314 = vpack.c.b16 %v2191, %v2190
    %v2315 = vpack.c.b16 %v2193, %v2192
    %v2316 = vpack.c.b16 %v2195, %v2194
    %v2317 = vpack.c.b16 %v2197, %v2196
    %v2318 = vpack.c.b16 %v2199, %v2198
    %v2319 = vpack.c.b16 %v2201, %v2200
    %v2320 = vpack.c.b16 %v2203, %v2202
    %v2321 = vpack.c.b16 %v2205, %v2204
    %v2322 = vpack.c.b16 %v2207, %v2206
    %v2323 = vpack.c.b16 %v2209, %v2208
    %v2324 = vpack.c.b16 %v2211, %v2210
    %v2325 = vpack.c.b16 %v2213, %v2212
    %v2326 = vpack.c.b16 %v2215, %v2214
    %v2327 = vpack.c.b16 %v2217, %v2216
    %v2328 = vpack.c.b16 %v2219, %v2218
    %v2329 = vpack.c.b16 %v2221, %v2220
    %v2330 = vpack.c.b16 %v2223, %v2222
    %v2331 = vpack.c.b16 %v2225, %v2224
    %v2332 = vpack.c.b16 %v2227, %v2226
    %v2333 = vpack.c.b16 %v2229, %v2228
    %v2334 = vpack.c.b16 %v2231, %v2230
    %v2335 = vpack.c.b16 %v2233, %v2232
    %v2336 = vpack.c.b16 %v2235, %v2234
    %v2337 = vpack.c.b16 %v2237, %v2236
    %v2338 = vpack.c.b16 %v2239, %v2238
    %v2339 = vpack.c.b16 %v2241, %v2240
    %v2340 = vpack.c.b16 %v2243, %v2242
    %v2341 = vpack.c.b16 %v2245, %v2244
    %v2342 = vpack.c.b16 %v2247, %v2246
    %v2343 = vpack.c.b16 %v2249, %v2248
    %v2344 = vpack.c.b16 %v2251, %v2250
    %v2345 = vpack.c.b16 %v2253, %v2252
    %v2346 = vpack.c.b16 %v2255, %v2254
    %v2347 = vpack.c.b16 %v2257, %v2256
    %v2348 = vpack.c.b16 %v2259, %v2258
    %v2349 = vpack.c.b16 %v2261, %v2260
    %v2350 = vpack.c.b16 %v2263, %v2262
    %v2351 = vpack.c.b16 %v2265, %v2264
    %v2352 = vpack.c.b16 %v2267, %v2266
    %v2353 = vpack.c.b16 %v2269, %v2268
    %v2354 = vpack.c.b16 %v2271, %v2270
    %v2355 = vpack.c.b16 %v2273, %v2272
    %v2356 = vpack.c.b16 %v2275, %v2274
    %v2357 = vpack.c.b16 %v2277, %v2276
    %v2358 = vpack.c.b16 %v2279, %v2278
    %v2359 = vpack.c.b16 %v2281, %v2280
    %v2360 = vpack.c.b16 %v2283, %v2282
    %v2361 = vpack.c.b16 %v2285, %v2284
    %v2362 = vpack.c.b16 %v2287, %v2286
    %v2363 = vpack.c.b16 %v2289, %v2288
    %v2364 = vpack.c.b16 %v2291, %v2290
    %v2365 = vpack.c.b16 %v2293, %v2292
    %2438 = vmatprep.subr.bf16.mxu0 0
    %2439 = vmatpush1.bf16.msra.mxu0 %v2301
    %2440 = vmatprep.subr.bf16.mxu0 0
    %2441 = vmatpush1.bf16.msra.mxu0 %v2300
    %2442 = vmatprep.subr.bf16.mxu0 0
    %2443 = vmatpush1.bf16.msra.mxu0 %v2299
    %2444 = vmatprep.subr.bf16.mxu0 0
    %2445 = vmatpush1.bf16.msra.mxu0 %v2298
    %2446 = vmatprep.subr.bf16.mxu0 0
    %2447 = vmatpush1.bf16.msra.mxu0 %v2297
    %2448 = vmatprep.subr.bf16.mxu0 0
    %2449 = vmatpush1.bf16.msra.mxu0 %v2296
    %2450 = vmatprep.subr.bf16.mxu0 0
    %2451 = vmatpush1.bf16.msra.mxu0 %v2295
    %2452 = vmatprep.subr.bf16.mxu0 0
    %2453 = vmatpush1.bf16.msra.mxu0 %v2294
    %2454 = vmatprep.subr.bf16.mxu0 0
    %2455 = vmatpush2.bf16.msra.mxu0 %v2309
    %2456 = vmatprep.subr.bf16.mxu0 0
    %2457 = vmatpush2.bf16.msra.mxu0 %v2308
    %2458 = vmatprep.subr.bf16.mxu0 0
    %2459 = vmatpush2.bf16.msra.mxu0 %v2307
    %2460 = vmatprep.subr.bf16.mxu0 0
    %2461 = vmatpush2.bf16.msra.mxu0 %v2306
    %2462 = vmatprep.subr.bf16.mxu0 0
    %2463 = vmatpush2.bf16.msra.mxu0 %v2305
    %2464 = vmatprep.subr.bf16.mxu0 0
    %2465 = vmatpush2.bf16.msra.mxu0 %v2304
    %2466 = vmatprep.subr.bf16.mxu0 0
    %2467 = vmatpush2.bf16.msra.mxu0 %v2303
    %2468 = vmatprep.subr.bf16.mxu0 0
    %2469 = vmatpush2.bf16.msra.mxu0 %v2302
    %2470 = vmatprep.mubr.bf16.mxu0 %v1998
    %2471 = vmatmul.mubr.bf16.gmra.mxu0 %v1997
    %v2472 = vpop.f32.mrf.mxu0
    %v2473 = vadd.f32 0.0, %v2472
    %v2474 = vpop.f32.mrf.mxu0
    %v2475 = vpop.f32.mrf.mxu0
    %v2476 = vpop.f32.mrf.mxu0
    %2477 = vdwg.mxu0
    %2478 = vmatprep.subr.bf16.mxu0 0
    %2479 = vmatpush1.bf16.msra.mxu0 %v2317
    %2480 = vmatprep.subr.bf16.mxu0 0
    %2481 = vmatpush1.bf16.msra.mxu0 %v2316
    %2482 = vmatprep.subr.bf16.mxu0 0
    %2483 = vmatpush1.bf16.msra.mxu0 %v2315
    %2484 = vmatprep.subr.bf16.mxu0 0
    %2485 = vmatpush1.bf16.msra.mxu0 %v2314
    %2486 = vmatprep.subr.bf16.mxu0 0
    %2487 = vmatpush1.bf16.msra.mxu0 %v2313
    %2488 = vmatprep.subr.bf16.mxu0 0
    %2489 = vmatpush1.bf16.msra.mxu0 %v2312
    %2490 = vmatprep.subr.bf16.mxu0 0
    %2491 = vmatpush1.bf16.msra.mxu0 %v2311
    %2492 = vmatprep.subr.bf16.mxu0 0
    %2493 = vmatpush1.bf16.msra.mxu0 %v2310
    %2494 = vmatprep.subr.bf16.mxu0 0
    %2495 = vmatpush2.bf16.msra.mxu0 %v2325
    %2496 = vmatprep.subr.bf16.mxu0 0
    %2497 = vmatpush2.bf16.msra.mxu0 %v2324
    %2498 = vmatprep.subr.bf16.mxu0 0
    %2499 = vmatpush2.bf16.msra.mxu0 %v2323
    %2500 = vmatprep.subr.bf16.mxu0 0
    %2501 = vmatpush2.bf16.msra.mxu0 %v2322
    %2502 = vmatprep.subr.bf16.mxu0 0
    %2503 = vmatpush2.bf16.msra.mxu0 %v2321
    %2504 = vmatprep.subr.bf16.mxu0 0
    %2505 = vmatpush2.bf16.msra.mxu0 %v2320
    %2506 = vmatprep.subr.bf16.mxu0 0
    %2507 = vmatpush2.bf16.msra.mxu0 %v2319
    %2508 = vmatprep.subr.bf16.mxu0 0
    %2509 = vmatpush2.bf16.msra.mxu0 %v2318
    %2510 = vmatprep.mubr.bf16.mxu0 %v2000
    %2511 = vmatmul.mubr.bf16.gmra.mxu0 %v1999
    %v2512 = vpop.f32.mrf.mxu0
    %v2513 = vadd.f32 %v2473, %v2512
    %v2514 = vpop.f32.mrf.mxu0
    %v2515 = vpop.f32.mrf.mxu0
    %v2516 = vpop.f32.mrf.mxu0
    %2517 = vdwg.mxu0
    %2518 = vmatprep.subr.bf16.mxu0 0
    %2519 = vmatpush1.bf16.msra.mxu0 %v2333
    %2520 = vmatprep.subr.bf16.mxu0 0
    %2521 = vmatpush1.bf16.msra.mxu0 %v2332
    %2522 = vmatprep.subr.bf16.mxu0 0
    %2523 = vmatpush1.bf16.msra.mxu0 %v2331
    %2524 = vmatprep.subr.bf16.mxu0 0
    %2525 = vmatpush1.bf16.msra.mxu0 %v2330
    %2526 = vmatprep.subr.bf16.mxu0 0
    %2527 = vmatpush1.bf16.msra.mxu0 %v2329
    %2528 = vmatprep.subr.bf16.mxu0 0
    %2529 = vmatpush1.bf16.msra.mxu0 %v2328
    %2530 = vmatprep.subr.bf16.mxu0 0
    %2531 = vmatpush1.bf16.msra.mxu0 %v2327
    %2532 = vmatprep.subr.bf16.mxu0 0
    %2533 = vmatpush1.bf16.msra.mxu0 %v2326
    %2534 = vmatprep.subr.bf16.mxu0 0
    %2535 = vmatpush2.bf16.msra.mxu0 %v2341
    %2536 = vmatprep.subr.bf16.mxu0 0
    %2537 = vmatpush2.bf16.msra.mxu0 %v2340
    %2538 = vmatprep.subr.bf16.mxu0 0
    %2539 = vmatpush2.bf16.msra.mxu0 %v2339
    %2540 = vmatprep.subr.bf16.mxu0 0
    %2541 = vmatpush2.bf16.msra.mxu0 %v2338
    %2542 = vmatprep.subr.bf16.mxu0 0
    %2543 = vmatpush2.bf16.msra.mxu0 %v2337
    %2544 = vmatprep.subr.bf16.mxu0 0
    %2545 = vmatpush2.bf16.msra.mxu0 %v2336
    %2546 = vmatprep.subr.bf16.mxu0 0
    %2547 = vmatpush2.bf16.msra.mxu0 %v2335
    %2548 = vmatprep.subr.bf16.mxu0 0
    %2549 = vmatpush2.bf16.msra.mxu0 %v2334
    %2550 = vmatprep.mubr.bf16.mxu0 %v2002
    %2551 = vmatmul.mubr.bf16.gmra.mxu0 %v2001
    %v2552 = vpop.f32.mrf.mxu0
    %v2553 = vadd.f32 %v2513, %v2552
    %v2554 = vpop.f32.mrf.mxu0
    %v2555 = vpop.f32.mrf.mxu0
    %v2556 = vpop.f32.mrf.mxu0
    %2557 = vdwg.mxu0
    %2558 = vmatprep.subr.bf16.mxu0 0
    %2559 = vmatpush1.bf16.msra.mxu0 %v2349
    %2560 = vmatprep.subr.bf16.mxu0 0
    %2561 = vmatpush1.bf16.msra.mxu0 %v2348
    %2562 = vmatprep.subr.bf16.mxu0 0
    %2563 = vmatpush1.bf16.msra.mxu0 %v2347
    %2564 = vmatprep.subr.bf16.mxu0 0
    %2565 = vmatpush1.bf16.msra.mxu0 %v2346
    %2566 = vmatprep.subr.bf16.mxu0 0
    %2567 = vmatpush1.bf16.msra.mxu0 %v2345
    %2568 = vmatprep.subr.bf16.mxu0 0
    %2569 = vmatpush1.bf16.msra.mxu0 %v2344
    %2570 = vmatprep.subr.bf16.mxu0 0
    %2571 = vmatpush1.bf16.msra.mxu0 %v2343
    %2572 = vmatprep.subr.bf16.mxu0 0
    %2573 = vmatpush1.bf16.msra.mxu0 %v2342
    %2574 = vmatprep.subr.bf16.mxu0 0
    %2575 = vmatpush2.bf16.msra.mxu0 %v2357
    %2576 = vmatprep.subr.bf16.mxu0 0
    %2577 = vmatpush2.bf16.msra.mxu0 %v2356
    %2578 = vmatprep.subr.bf16.mxu0 0
    %2579 = vmatpush2.bf16.msra.mxu0 %v2355
    %2580 = vmatprep.subr.bf16.mxu0 0
    %2581 = vmatpush2.bf16.msra.mxu0 %v2354
    %2582 = vmatprep.subr.bf16.mxu0 0
    %2583 = vmatpush2.bf16.msra.mxu0 %v2353
    %2584 = vmatprep.subr.bf16.mxu0 0
    %2585 = vmatpush2.bf16.msra.mxu0 %v2352
    %2586 = vmatprep.subr.bf16.mxu0 0
    %2587 = vmatpush2.bf16.msra.mxu0 %v2351
    %2588 = vmatprep.subr.bf16.mxu0 0
    %2589 = vmatpush2.bf16.msra.mxu0 %v2350
    %2590 = vmatprep.mubr.bf16.mxu0 %v2004
    %2591 = vmatmul.mubr.bf16.gmra.mxu0 %v2003
    %v2592 = vpop.f32.mrf.mxu0
    %v2593 = vadd.f32 %v2553, %v2592
    %v2594 = vpop.f32.mrf.mxu0
    %v2595 = vpop.f32.mrf.mxu0
    %v2596 = vpop.f32.mrf.mxu0
    %2597 = vdwg.mxu0
    %2598 = vmatprep.subr.bf16.mxu0 0
    %2599 = vmatpush1.bf16.msra.mxu0 %v2365
    %2600 = vmatprep.subr.bf16.mxu0 0
    %2601 = vmatpush1.bf16.msra.mxu0 %v2364
    %2602 = vmatprep.subr.bf16.mxu0 0
    %2603 = vmatpush1.bf16.msra.mxu0 %v2363
    %2604 = vmatprep.subr.bf16.mxu0 0
    %2605 = vmatpush1.bf16.msra.mxu0 %v2362
    %2606 = vmatprep.subr.bf16.mxu0 0
    %2607 = vmatpush1.bf16.msra.mxu0 %v2361
    %2608 = vmatprep.subr.bf16.mxu0 0
    %2609 = vmatpush1.bf16.msra.mxu0 %v2360
    %2610 = vmatprep.subr.bf16.mxu0 0
    %2611 = vmatpush1.bf16.msra.mxu0 %v2359
    %2612 = vmatprep.subr.bf16.mxu0 0
    %2613 = vmatpush1.bf16.msra.mxu0 %v2358
    %2614 = vmatprep.subr.bf16.mxu0 0
    %2615 = vmatpush2.bf16.msra.mxu0 0
    %2616 = vmatprep.subr.bf16.mxu0 0
    %2617 = vmatpush2.bf16.msra.mxu0 0
    %2618 = vmatprep.subr.bf16.mxu0 0
    %2619 = vmatpush2.bf16.msra.mxu0 0
    %2620 = vmatprep.subr.bf16.mxu0 0
    %2621 = vmatpush2.bf16.msra.mxu0 0
    %2622 = vmatprep.subr.bf16.mxu0 0
    %2623 = vmatpush2.bf16.msra.mxu0 0
    %2624 = vmatprep.subr.bf16.mxu0 0
    %2625 = vmatpush2.bf16.msra.mxu0 0
    %2626 = vmatprep.subr.bf16.mxu0 0
    %2627 = vmatpush2.bf16.msra.mxu0 0
    %2628 = vmatprep.subr.bf16.mxu0 0
    %2629 = vmatpush2.bf16.msra.mxu0 0
    %2630 = vmatprep.mubr.bf16.mxu0 0
    %2631 = vmatmul.mubr.bf16.gmra.mxu0 %v2005
    %v2632 = vpop.f32.mrf.mxu0
    %v2633 = vadd.f32 %v2593, %v2632
    %v2634 = vpop.f32.mrf.mxu0
    %v2635 = vpop.f32.mrf.mxu0
    %v2636 = vpop.f32.mrf.mxu0
    %2637 = vdwg.mxu0
    %v2638 = vsub.f32 %v2633, %v149
    %2640 = vset.pattern.permute.xlu0 0
    %2641 = vperm.xlu0 %2640, %v123
    %v2642 = vpop.permute.xlu0 %2641
    %v2644 = vmul.f32 %v2638, %v2642
    %v2645 = vmul.f32 %v2644, %v138
    %v2646 = vadd.f32 %v2645, %v129
    %2647 = vxpose.xlu0.b32.start [1/16] %v2646, 128
    %2648 = vxpose.xlu0.b32.cont [2/16] 0.0, 128
    %2649 = vxpose.xlu0.b32.cont [3/16] 0.0, 128
    %2650 = vxpose.xlu0.b32.cont [4/16] 0.0, 128
    %2651 = vxpose.xlu0.b32.cont [5/16] 0.0, 128
    %2652 = vxpose.xlu0.b32.cont [6/16] 0.0, 128
    %2653 = vxpose.xlu0.b32.cont [7/16] 0.0, 128
    %2654 = vxpose.xlu0.b32.cont [8/16] 0.0, 128
    %2655 = vxpose.xlu0.b32.cont [9/16] 0.0, 128
    %2656 = vxpose.xlu0.b32.cont [10/16] 0.0, 128
    %2657 = vxpose.xlu0.b32.cont [11/16] 0.0, 128
    %2658 = vxpose.xlu0.b32.cont [12/16] 0.0, 128
    %2659 = vxpose.xlu0.b32.cont [13/16] 0.0, 128
    %2660 = vxpose.xlu0.b32.cont [14/16] 0.0, 128
    %2661 = vxpose.xlu0.b32.cont [15/16] 0.0, 128
    %2662 = vxpose.xlu0.b32.end [16/16] 0.0, 128
    %v2663 = vpop.trf.xlu0
    %v2664 = vpop.trf.xlu0
    %v2665 = vpop.trf.xlu0
    %v2666 = vpop.trf.xlu0
    %v2667 = vpop.trf.xlu0
    %v2668 = vpop.trf.xlu0
    %v2669 = vpop.trf.xlu0
    %v2670 = vpop.trf.xlu0
    %v2671 = vpop.trf.xlu0
    %v2672 = vpop.trf.xlu0
    %v2673 = vpop.trf.xlu0
    %v2674 = vpop.trf.xlu0
    %v2675 = vpop.trf.xlu0
    %v2676 = vpop.trf.xlu0
    %v2677 = vpop.trf.xlu0
    %v2678 = vpop.trf.xlu0
    %vm2679 = vcmask 31744
    %2680 = vst.msk [vmem:[%s3] sm:$0xff] %vm2679, %v2663
    %v2682 = vrot.slane %v2646, 4
    %2684 = vxpose.xlu0.b32.start [1/16] %v2682, 128
    %2685 = vxpose.xlu0.b32.cont [2/16] 0.0, 128
    %2686 = vxpose.xlu0.b32.cont [3/16] 0.0, 128
    %2687 = vxpose.xlu0.b32.cont [4/16] 0.0, 128
    %2688 = vxpose.xlu0.b32.cont [5/16] 0.0, 128
    %2689 = vxpose.xlu0.b32.cont [6/16] 0.0, 128
    %2690 = vxpose.xlu0.b32.cont [7/16] 0.0, 128
    %2691 = vxpose.xlu0.b32.cont [8/16] 0.0, 128
    %2692 = vxpose.xlu0.b32.cont [9/16] 0.0, 128
    %2693 = vxpose.xlu0.b32.cont [10/16] 0.0, 128
    %2694 = vxpose.xlu0.b32.cont [11/16] 0.0, 128
    %2695 = vxpose.xlu0.b32.cont [12/16] 0.0, 128
    %2696 = vxpose.xlu0.b32.cont [13/16] 0.0, 128
    %2697 = vxpose.xlu0.b32.cont [14/16] 0.0, 128
    %2698 = vxpose.xlu0.b32.cont [15/16] 0.0, 128
    %2699 = vxpose.xlu0.b32.end [16/16] 0.0, 128
    %v2700 = vpop.trf.xlu0
    %v2701 = vpop.trf.xlu0
    %v2702 = vpop.trf.xlu0
    %v2703 = vpop.trf.xlu0
    %v2704 = vpop.trf.xlu0
    %v2705 = vpop.trf.xlu0
    %v2706 = vpop.trf.xlu0
    %v2707 = vpop.trf.xlu0
    %v2708 = vpop.trf.xlu0
    %v2709 = vpop.trf.xlu0
    %v2710 = vpop.trf.xlu0
    %v2711 = vpop.trf.xlu0
    %v2712 = vpop.trf.xlu0
    %v2713 = vpop.trf.xlu0
    %v2714 = vpop.trf.xlu0
    %v2715 = vpop.trf.xlu0
    %s2716 = scalar_lea.vmem %s3, 8
    %2717 = vst.msk [vmem:[%s2716] sm:$0xff] %vm2679, %v2700
    // Predicated region
    $region22: #{_forward.1} parent=1 // pred_check
      _
    $region23: #{_forward.1} parent=1 // pred_check_branch
      %2719 = sbr.rel (0) target = $region25
    $region24: #{_forward.1} parent=1 // pred_region
      _
    $region25: #{_forward.1} parent=1 // pred_fallthru
      _
    // Predicated region
    $region26: #{_forward.1} parent=1 // pred_check
      _
    $region27: #{_forward.1} parent=1 // pred_check_branch
      %2721 = sbr.rel (0) target = $region29
    $region28: #{_forward.1} parent=1 // pred_region
      _
    $region29: #{_forward.1} parent=1 // pred_fallthru
      _
    %2722 = vsyncpa [#allocation3], 1
    %2723 = vsyncpa [#allocation5], 1

</llo_original>
